<compile_context>
chip_gen: v7x
topology: tpu7x:2x2x1
jax: 0.10.0
libtpu: 0.0.40
codegen_flags: <defaults>
</compile_context>

<pallas_src>
import numpy as np
import jax
import jax.numpy as jnp
from jax.experimental import pallas as pl
from jax.experimental.pallas import tpu as pltpu

# ---------------- configuration (small, consistent with the module) ----------
DIM = 32                              # C  (input channels)
NUM_HEADS = 4                         # H
HEAD_DIM = DIM // NUM_HEADS           # 8
ATTN_DIM = HEAD_DIM * NUM_HEADS       # 32
WIN = 4                               # window_size
N = WIN * WIN                         # window_area = 16 tokens per window
B_ = 8                                # num_windows * batch
SCALE = HEAD_DIM ** (-0.5)
NEG_BIAS = -1e9                       # cross-window mask value (softmax -> 0)


# ---------------- relative position index (plain numpy glue) -----------------
def get_relative_position_index(win_h, win_w):
    coords = np.stack(np.meshgrid(np.arange(win_h), np.arange(win_w), indexing="ij"))
    coords_flat = coords.reshape(2, -1)                                  # (2, N)
    rel = coords_flat[:, :, None] - coords_flat[:, None, :]              # (2, N, N)
    rel = rel.transpose(1, 2, 0).astype(np.int64)                        # (N, N, 2)
    rel[:, :, 0] += win_h - 1
    rel[:, :, 1] += win_w - 1
    rel[:, :, 0] *= 2 * win_w - 1
    return rel.sum(-1)                                                   # (N, N)


# ---------------- Pallas kernel ----------------------------------------------
def wmsa_kernel(x_ref, xT_ref, wq_ref, bq_ref, wkT_ref, bk_ref, wv_ref, bv_ref,
                bias_ref, wproj_ref, bproj_ref, o_ref, ctx_ref):
    # x_ref: (T, C) with T = B_*N = 128 flattened tokens; xT_ref: (C, T).
    x = x_ref[...]

    # Projections: canonical (lhs-minor x rhs-major) MXU matmuls, no transposes.
    # Attention scale is already folded into wq/bq.
    q = jnp.dot(x, wq_ref[...], preferred_element_type=jnp.float32) + bq_ref[0]        # (T, A)
    kT = (jnp.dot(wkT_ref[...], xT_ref[...], preferred_element_type=jnp.float32)
          + bk_ref[...])                                                                # (A, T)
    v = jnp.dot(x, wv_ref[...], preferred_element_type=jnp.float32) + bv_ref[0]        # (T, A)

    for h in range(NUM_HEADS):                       # 4 static iterations
        lo = h * HEAD_DIM
        hi = lo + HEAD_DIM

        # Lane-dense block-diagonal scores over all T tokens.  bias_ref carries the
        # relative-position bias on same-window blocks (+ shifted-window mask, if
        # any) and -1e9 on cross-window entries, so softmax zeroes those.
        s = jnp.dot(q[:, lo:hi], kT[lo:hi, :], preferred_element_type=jnp.float32)     # (T, T)
        s = s + bias_ref[h]

        m = jnp.max(s, axis=-1, keepdims=True)
        e = jnp.exp(s - m)
        p = e * pl.reciprocal(jnp.sum(e, axis=-1, keepdims=True), approx=True)
        # TODO(synk): attn_drop / proj_drop are rate 0.0 in the module -> identity.

        ctx_ref[:, lo:hi] = jnp.dot(p, v[:, lo:hi], preferred_element_type=jnp.float32)

    out = jnp.dot(ctx_ref[...], wproj_ref[...], preferred_element_type=jnp.float32) + bproj_ref[0]
    o_ref[...] = out.astype(o_ref.dtype)


# ---------------- host-side parameter preparation -----------------------------
def prepare_params(w_qkv, b_qkv, rel_table, rel_index, w_proj, b_proj,
                   num_windows, attn_mask=None):
    """One-time prep: split fused qkv, fold SCALE into Q, pre-transpose K weight,
    and build the fused block-diagonal (rel-pos bias + window mask) tensor."""
    w_q = w_qkv[:, :ATTN_DIM] * SCALE                      # (C, A), scale folded
    w_kT = w_qkv[:, ATTN_DIM:2 * ATTN_DIM].T               # (A, C) -> kernel emits K^T directly
    w_v = w_qkv[:, 2 * ATTN_DIM:]                          # (C, A)
    b_q = b_qkv[:, :ATTN_DIM] * SCALE                      # (1, A)
    b_k = b_qkv[:, ATTN_DIM:2 * ATTN_DIM].T                # (A, 1) column (lane-broadcast add)
    b_v = b_qkv[:, 2 * ATTN_DIM:]                          # (1, A)

    # relative position bias: table[index] -> (N, N, H) -> (H, N, N)
    rel_bias = rel_table[rel_index.reshape(-1)].reshape(N, N, NUM_HEADS).transpose(2, 0, 1)

    # Fused block-diagonal bias over the flattened token axis (H, T, T):
    # same-window blocks get the rel-pos bias (+ optional shifted-window mask),
    # cross-window entries get NEG_BIAS.
    T = num_windows * N
    bias = jnp.full((NUM_HEADS, T, T), NEG_BIAS, dtype=jnp.float32)
    for w in range(num_windows):
        blk = rel_bias
        if attn_mask is not None:                          # (num_win, N, N) 0/-inf style mask
            blk = blk + attn_mask[w % attn_mask.shape[0]][None]
        bias = bias.at[:, w * N:(w + 1) * N, w * N:(w + 1) * N].set(blk)

    return (w_q, b_q, w_kT, b_k, w_v, b_v, bias, w_proj, b_proj)


# ---------------- wrapper ------------------------------------------------------
def qwindow_attention(x, params):
    """x: (B_, N, C) float32.  params from prepare_params."""
    w_q, b_q, w_kT, b_k, w_v, b_v, bias, w_proj, b_proj = params
    Bt, n, c = x.shape
    T = Bt * n

    x2 = x.reshape(T, c)          # free metadata reshape (tokens-major, lane = channels)
    xT = x2.T                     # (C, T): lets the kernel emit K^T with zero in-kernel transposes

    out2 = pl.pallas_call(
        wmsa_kernel,
        out_shape=jax.ShapeDtypeStruct((T, c), x.dtype),
        grid_spec=pltpu.PrefetchScalarGridSpec(
            num_scalar_prefetch=0,
            grid=(1,),
            in_specs=[
                pl.BlockSpec((T, c), lambda i: (0, 0)),             # x   (T, C)
                pl.BlockSpec((c, T), lambda i: (0, 0)),             # x^T (C, T)
                pl.BlockSpec((c, ATTN_DIM), lambda i: (0, 0)),      # w_q  (scale folded)
                pl.BlockSpec((1, ATTN_DIM), lambda i: (0, 0)),      # b_q
                pl.BlockSpec((ATTN_DIM, c), lambda i: (0, 0)),      # w_k^T
                pl.BlockSpec((ATTN_DIM, 1), lambda i: (0, 0)),      # b_k (column)
                pl.BlockSpec((c, ATTN_DIM), lambda i: (0, 0)),      # w_v
                pl.BlockSpec((1, ATTN_DIM), lambda i: (0, 0)),      # b_v
                pl.BlockSpec((NUM_HEADS, T, T), lambda i: (0, 0, 0)),  # fused bias (+mask)
                pl.BlockSpec((ATTN_DIM, c), lambda i: (0, 0)),      # w_proj
                pl.BlockSpec((1, c), lambda i: (0, 0)),             # b_proj
            ],
            out_specs=pl.BlockSpec((T, c), lambda i: (0, 0)),
            scratch_shapes=[pltpu.VMEM((T, ATTN_DIM), jnp.float32)],  # per-head ctx writeback
        ),
        compiler_params=pltpu.CompilerParams(dimension_semantics=("arbitrary",)),
    )(x2, xT, w_q, b_q, w_kT, b_k, w_v, b_v, bias, w_proj, b_proj)

    return out2.reshape(Bt, n, c)


# ---------------- pure-JAX reference (for correctness check) -----------------
def reference(x, w_qkv, b_qkv, rel_bias, w_proj, b_proj):
    Bt, n, c = x.shape
    qkv = x @ w_qkv + b_qkv[0]                                            # (B_, N, 3*attn_dim)
    qkv = qkv.reshape(Bt, n, 3, NUM_HEADS, HEAD_DIM).transpose(2, 0, 3, 1, 4)
    q, k, v = qkv[0], qkv[1], qkv[2]                                      # (B_, H, N, hd)
    attn = jnp.einsum("bhnd,bhmd->bhnm", q, k) * SCALE
    attn = attn + rel_bias[None]
    attn = jax.nn.softmax(attn, axis=-1)
    out = jnp.einsum("bhnm,bhmd->bhnd", attn, v)
    out = out.transpose(0, 2, 1, 3).reshape(Bt, n, ATTN_DIM)
    return out @ w_proj + b_proj[0]


# ---------------- main ---------------------------------------------------------
if __name__ == "__main__":
    key = jax.random.PRNGKey(0)
    k_x, k_tab, k_wq, k_bq, k_wp, k_bp = jax.random.split(key, 6)

    # input: (num_windows*B, window_area, dim)
    x = jax.random.normal(k_x, (B_, N, DIM), dtype=jnp.float32)

    # parameters (deterministic, synthetic)
    rel_table = 0.02 * jax.random.truncated_normal(
        k_tab, -2.0, 2.0, ((2 * WIN - 1) * (2 * WIN - 1), NUM_HEADS)
    ).astype(jnp.float32)
    w_qkv = 0.05 * jax.random.normal(k_wq, (DIM, 3 * ATTN_DIM), dtype=jnp.float32)
    b_qkv = 0.01 * jax.random.normal(k_bq, (1, 3 * ATTN_DIM), dtype=jnp.float32)
    w_proj = 0.05 * jax.random.normal(k_wp, (ATTN_DIM, DIM), dtype=jnp.float32)
    b_proj = 0.01 * jax.random.normal(k_bp, (1, DIM), dtype=jnp.float32)

    rel_index = jnp.asarray(get_relative_position_index(WIN, WIN))       # (N, N) int

    # host-side prep: split/scale/transpose weights + fused block-diag bias
    params = prepare_params(w_qkv, b_qkv, rel_table, rel_index, w_proj, b_proj,
                            num_windows=B_, attn_mask=None)

    out = qwindow_attention(x, params)
    out = jax.block_until_ready(out)

    # reference uses the original (unfolded) parameters
    rel_bias = rel_table[rel_index.reshape(-1)].reshape(N, N, NUM_HEADS).transpose(2, 0, 1)
    ref = reference(x, w_qkv, b_qkv, rel_bias, w_proj, b_proj)

    # tolerance relaxed for pl.reciprocal(approx=True)
    np.testing.assert_allclose(np.asarray(out), np.asarray(ref), rtol=2e-3, atol=2e-3)

    print("KERNEL_OK")
</pallas_src>

<mosaic_0001>
module attributes {stable_mosaic.version = 11 : i64} {
  func.func @wmsa_kernel(%arg0: i32, %arg1: memref<128x32xf32, #tpu.memory_space<vmem>>, %arg2: memref<32x128xf32, #tpu.memory_space<vmem>>, %arg3: memref<32x32xf32, #tpu.memory_space<vmem>>, %arg4: memref<1x32xf32, #tpu.memory_space<vmem>>, %arg5: memref<32x32xf32, #tpu.memory_space<vmem>>, %arg6: memref<32x1xf32, #tpu.memory_space<vmem>>, %arg7: memref<32x32xf32, #tpu.memory_space<vmem>>, %arg8: memref<1x32xf32, #tpu.memory_space<vmem>>, %arg9: memref<4x128x128xf32, #tpu.memory_space<vmem>>, %arg10: memref<32x32xf32, #tpu.memory_space<vmem>>, %arg11: memref<1x32xf32, #tpu.memory_space<vmem>>, %arg12: memref<128x32xf32, #tpu.memory_space<vmem>>, %arg13: memref<128x32xf32, #tpu.memory_space<vmem>>) attributes {dimension_semantics = [#tpu.dimension_semantics<arbitrary>], iteration_bounds = array<i64: 1>, scalar_prefetch = 0 : i64, scratch_operands = 1 : i64, tpu.core_type = #tpu.core_type<tc>, window_params = [{pipeline_mode = #tpu.pipeline_mode<synchronous>, transform_indices = @transform_0, window_bounds = array<i64: 128, 32>}, {pipeline_mode = #tpu.pipeline_mode<synchronous>, transform_indices = @transform_1, window_bounds = array<i64: 32, 128>}, {pipeline_mode = #tpu.pipeline_mode<synchronous>, transform_indices = @transform_2, window_bounds = array<i64: 32, 32>}, {pipeline_mode = #tpu.pipeline_mode<synchronous>, transform_indices = @transform_3, window_bounds = array<i64: 1, 32>}, {pipeline_mode = #tpu.pipeline_mode<synchronous>, transform_indices = @transform_4, window_bounds = array<i64: 32, 32>}, {pipeline_mode = #tpu.pipeline_mode<synchronous>, transform_indices = @transform_5, window_bounds = array<i64: 32, 1>}, {pipeline_mode = #tpu.pipeline_mode<synchronous>, transform_indices = @transform_6, window_bounds = array<i64: 32, 32>}, {pipeline_mode = #tpu.pipeline_mode<synchronous>, transform_indices = @transform_7, window_bounds = array<i64: 1, 32>}, {pipeline_mode = #tpu.pipeline_mode<synchronous>, transform_indices = @transform_8, window_bounds = array<i64: 4, 128, 128>}, {pipeline_mode = #tpu.pipeline_mode<synchronous>, transform_indices = @transform_9, window_bounds = array<i64: 32, 32>}, {pipeline_mode = #tpu.pipeline_mode<synchronous>, transform_indices = @transform_10, window_bounds = array<i64: 1, 32>}, {pipeline_mode = #tpu.pipeline_mode<synchronous>, transform_indices = @transform_11, window_bounds = array<i64: 128, 32>}]} {
    %c0 = arith.constant 0 : index
    %c0_0 = arith.constant 0 : index
    %0 = vector.load %arg1[%c0, %c0_0] : memref<128x32xf32, #tpu.memory_space<vmem>>, vector<128x32xf32>
    %c0_1 = arith.constant 0 : index
    %c0_2 = arith.constant 0 : index
    %1 = vector.load %arg3[%c0_1, %c0_2] : memref<32x32xf32, #tpu.memory_space<vmem>>, vector<32x32xf32>
    %cst = arith.constant dense<0.000000e+00> : vector<128x32xf32>
    %2 = tpu.matmul %0, %1, %cst {dimension_numbers = #tpu.dot_dimension_numbers<[1], [0], [0], [1], [0, 0, 1, 1], [], []>} : vector<128x32xf32>, vector<32x32xf32>, vector<128x32xf32> -> vector<128x32xf32>
    %c0_3 = arith.constant 0 : index
    %c0_4 = arith.constant 0 : index
    %3 = vector.load %arg4[%c0_3, %c0_4] : memref<1x32xf32, #tpu.memory_space<vmem>>, vector<1x32xf32>
    %4 = vector.shape_cast %3 : vector<1x32xf32> to vector<32xf32>
    %5 = vector.shape_cast %4 : vector<32xf32> to vector<1x32xf32>
    %6 = vector.broadcast %5 : vector<1x32xf32> to vector<128x32xf32>
    %7 = arith.addf %2, %6 : vector<128x32xf32>
    %c0_5 = arith.constant 0 : index
    %c0_6 = arith.constant 0 : index
    %8 = vector.load %arg5[%c0_5, %c0_6] : memref<32x32xf32, #tpu.memory_space<vmem>>, vector<32x32xf32>
    %c0_7 = arith.constant 0 : index
    %c0_8 = arith.constant 0 : index
    %9 = vector.load %arg2[%c0_7, %c0_8] : memref<32x128xf32, #tpu.memory_space<vmem>>, vector<32x128xf32>
    %cst_9 = arith.constant dense<0.000000e+00> : vector<32x128xf32>
    %10 = tpu.matmul %8, %9, %cst_9 {dimension_numbers = #tpu.dot_dimension_numbers<[1], [0], [0], [1], [0, 0, 1, 1], [], []>} : vector<32x32xf32>, vector<32x128xf32>, vector<32x128xf32> -> vector<32x128xf32>
    %c0_10 = arith.constant 0 : index
    %c0_11 = arith.constant 0 : index
    %11 = vector.load %arg6[%c0_10, %c0_11] : memref<32x1xf32, #tpu.memory_space<vmem>>, vector<32x1xf32>
    %12 = vector.broadcast %11 : vector<32x1xf32> to vector<32x128xf32>
    %13 = arith.addf %10, %12 : vector<32x128xf32>
    %c0_12 = arith.constant 0 : index
    %c0_13 = arith.constant 0 : index
    %14 = vector.load %arg7[%c0_12, %c0_13] : memref<32x32xf32, #tpu.memory_space<vmem>>, vector<32x32xf32>
    %cst_14 = arith.constant dense<0.000000e+00> : vector<128x32xf32>
    %15 = tpu.matmul %0, %14, %cst_14 {dimension_numbers = #tpu.dot_dimension_numbers<[1], [0], [0], [1], [0, 0, 1, 1], [], []>} : vector<128x32xf32>, vector<32x32xf32>, vector<128x32xf32> -> vector<128x32xf32>
    %c0_15 = arith.constant 0 : index
    %c0_16 = arith.constant 0 : index
    %16 = vector.load %arg8[%c0_15, %c0_16] : memref<1x32xf32, #tpu.memory_space<vmem>>, vector<1x32xf32>
    %17 = vector.shape_cast %16 : vector<1x32xf32> to vector<32xf32>
    %18 = vector.shape_cast %17 : vector<32xf32> to vector<1x32xf32>
    %19 = vector.broadcast %18 : vector<1x32xf32> to vector<128x32xf32>
    %20 = arith.addf %15, %19 : vector<128x32xf32>
    %21 = vector.extract_strided_slice %7 {offsets = [0, 0], sizes = [128, 8], strides = [1, 1]} : vector<128x32xf32> to vector<128x8xf32>
    %22 = vector.extract_strided_slice %13 {offsets = [0, 0], sizes = [8, 128], strides = [1, 1]} : vector<32x128xf32> to vector<8x128xf32>
    %cst_17 = arith.constant dense<0.000000e+00> : vector<128x128xf32>
    %23 = tpu.matmul %21, %22, %cst_17 {dimension_numbers = #tpu.dot_dimension_numbers<[1], [0], [0], [1], [0, 0, 1, 1], [], []>} : vector<128x8xf32>, vector<8x128xf32>, vector<128x128xf32> -> vector<128x128xf32>
    %c0_18 = arith.constant 0 : index
    %c0_19 = arith.constant 0 : index
    %c0_20 = arith.constant 0 : index
    %24 = vector.load %arg9[%c0_18, %c0_19, %c0_20] : memref<4x128x128xf32, #tpu.memory_space<vmem>>, vector<1x128x128xf32>
    %25 = vector.shape_cast %24 : vector<1x128x128xf32> to vector<128x128xf32>
    %26 = arith.addf %23, %25 : vector<128x128xf32>
    %cst_21 = arith.constant dense<0xFF800000> : vector<128xf32>
    %27 = vector.multi_reduction <maximumf>, %26, %cst_21 [1] : vector<128x128xf32> to vector<128xf32>
    %28 = vector.shape_cast %27 : vector<128xf32> to vector<128x1xf32>
    %29 = vector.broadcast %28 : vector<128x1xf32> to vector<128x128xf32>
    %30 = arith.subf %26, %29 : vector<128x128xf32>
    %31 = math.exp %30 : vector<128x128xf32>
    %cst_22 = arith.constant dense<0.000000e+00> : vector<128xf32>
    %32 = vector.multi_reduction <add>, %31, %cst_22 [1] : vector<128x128xf32> to vector<128xf32>
    %33 = vector.shape_cast %32 : vector<128xf32> to vector<128x1xf32>
    %34 = tpu.reciprocal %33 {approx = true} : vector<128x1xf32> -> vector<128x1xf32>
    %35 = vector.broadcast %34 : vector<128x1xf32> to vector<128x128xf32>
    %36 = arith.mulf %31, %35 : vector<128x128xf32>
    %37 = vector.extract_strided_slice %20 {offsets = [0, 0], sizes = [128, 8], strides = [1, 1]} : vector<128x32xf32> to vector<128x8xf32>
    %cst_23 = arith.constant dense<0.000000e+00> : vector<128x8xf32>
    %38 = tpu.matmul %36, %37, %cst_23 {dimension_numbers = #tpu.dot_dimension_numbers<[1], [0], [0], [1], [0, 0, 1, 1], [], []>} : vector<128x128xf32>, vector<128x8xf32>, vector<128x8xf32> -> vector<128x8xf32>
    %c0_24 = arith.constant 0 : index
    %c0_25 = arith.constant 0 : index
    %39 = vector.load %arg13[%c0_24, %c0_25] : memref<128x32xf32, #tpu.memory_space<vmem>>, vector<128x8xf32>
    tpu.vector_store %arg13[%c0_24, %c0_25], %38 {strides = array<i32>} : memref<128x32xf32, #tpu.memory_space<vmem>>, vector<128x8xf32>,
    %40 = vector.extract_strided_slice %7 {offsets = [0, 8], sizes = [128, 8], strides = [1, 1]} : vector<128x32xf32> to vector<128x8xf32>
    %41 = vector.extract_strided_slice %13 {offsets = [8, 0], sizes = [8, 128], strides = [1, 1]} : vector<32x128xf32> to vector<8x128xf32>
    %cst_26 = arith.constant dense<0.000000e+00> : vector<128x128xf32>
    %42 = tpu.matmul %40, %41, %cst_26 {dimension_numbers = #tpu.dot_dimension_numbers<[1], [0], [0], [1], [0, 0, 1, 1], [], []>} : vector<128x8xf32>, vector<8x128xf32>, vector<128x128xf32> -> vector<128x128xf32>
    %c1 = arith.constant 1 : index
    %c0_27 = arith.constant 0 : index
    %c0_28 = arith.constant 0 : index
    %43 = vector.load %arg9[%c1, %c0_27, %c0_28] : memref<4x128x128xf32, #tpu.memory_space<vmem>>, vector<1x128x128xf32>
    %44 = vector.shape_cast %43 : vector<1x128x128xf32> to vector<128x128xf32>
    %45 = arith.addf %42, %44 : vector<128x128xf32>
    %cst_29 = arith.constant dense<0xFF800000> : vector<128xf32>
    %46 = vector.multi_reduction <maximumf>, %45, %cst_29 [1] : vector<128x128xf32> to vector<128xf32>
    %47 = vector.shape_cast %46 : vector<128xf32> to vector<128x1xf32>
    %48 = vector.broadcast %47 : vector<128x1xf32> to vector<128x128xf32>
    %49 = arith.subf %45, %48 : vector<128x128xf32>
    %50 = math.exp %49 : vector<128x128xf32>
    %cst_30 = arith.constant dense<0.000000e+00> : vector<128xf32>
    %51 = vector.multi_reduction <add>, %50, %cst_30 [1] : vector<128x128xf32> to vector<128xf32>
    %52 = vector.shape_cast %51 : vector<128xf32> to vector<128x1xf32>
    %53 = tpu.reciprocal %52 {approx = true} : vector<128x1xf32> -> vector<128x1xf32>
    %54 = vector.broadcast %53 : vector<128x1xf32> to vector<128x128xf32>
    %55 = arith.mulf %50, %54 : vector<128x128xf32>
    %56 = vector.extract_strided_slice %20 {offsets = [0, 8], sizes = [128, 8], strides = [1, 1]} : vector<128x32xf32> to vector<128x8xf32>
    %cst_31 = arith.constant dense<0.000000e+00> : vector<128x8xf32>
    %57 = tpu.matmul %55, %56, %cst_31 {dimension_numbers = #tpu.dot_dimension_numbers<[1], [0], [0], [1], [0, 0, 1, 1], [], []>} : vector<128x128xf32>, vector<128x8xf32>, vector<128x8xf32> -> vector<128x8xf32>
    %c0_32 = arith.constant 0 : index
    %c8 = arith.constant 8 : index
    %58 = vector.load %arg13[%c0_32, %c8] : memref<128x32xf32, #tpu.memory_space<vmem>>, vector<128x8xf32>
    tpu.vector_store %arg13[%c0_32, %c8], %57 {strides = array<i32>} : memref<128x32xf32, #tpu.memory_space<vmem>>, vector<128x8xf32>,
    %59 = vector.extract_strided_slice %7 {offsets = [0, 16], sizes = [128, 8], strides = [1, 1]} : vector<128x32xf32> to vector<128x8xf32>
    %60 = vector.extract_strided_slice %13 {offsets = [16, 0], sizes = [8, 128], strides = [1, 1]} : vector<32x128xf32> to vector<8x128xf32>
    %cst_33 = arith.constant dense<0.000000e+00> : vector<128x128xf32>
    %61 = tpu.matmul %59, %60, %cst_33 {dimension_numbers = #tpu.dot_dimension_numbers<[1], [0], [0], [1], [0, 0, 1, 1], [], []>} : vector<128x8xf32>, vector<8x128xf32>, vector<128x128xf32> -> vector<128x128xf32>
    %c2 = arith.constant 2 : index
    %c0_34 = arith.constant 0 : index
    %c0_35 = arith.constant 0 : index
    %62 = vector.load %arg9[%c2, %c0_34, %c0_35] : memref<4x128x128xf32, #tpu.memory_space<vmem>>, vector<1x128x128xf32>
    %63 = vector.shape_cast %62 : vector<1x128x128xf32> to vector<128x128xf32>
    %64 = arith.addf %61, %63 : vector<128x128xf32>
    %cst_36 = arith.constant dense<0xFF800000> : vector<128xf32>
    %65 = vector.multi_reduction <maximumf>, %64, %cst_36 [1] : vector<128x128xf32> to vector<128xf32>
    %66 = vector.shape_cast %65 : vector<128xf32> to vector<128x1xf32>
    %67 = vector.broadcast %66 : vector<128x1xf32> to vector<128x128xf32>
    %68 = arith.subf %64, %67 : vector<128x128xf32>
    %69 = math.exp %68 : vector<128x128xf32>
    %cst_37 = arith.constant dense<0.000000e+00> : vector<128xf32>
    %70 = vector.multi_reduction <add>, %69, %cst_37 [1] : vector<128x128xf32> to vector<128xf32>
    %71 = vector.shape_cast %70 : vector<128xf32> to vector<128x1xf32>
    %72 = tpu.reciprocal %71 {approx = true} : vector<128x1xf32> -> vector<128x1xf32>
    %73 = vector.broadcast %72 : vector<128x1xf32> to vector<128x128xf32>
    %74 = arith.mulf %69, %73 : vector<128x128xf32>
    %75 = vector.extract_strided_slice %20 {offsets = [0, 16], sizes = [128, 8], strides = [1, 1]} : vector<128x32xf32> to vector<128x8xf32>
    %cst_38 = arith.constant dense<0.000000e+00> : vector<128x8xf32>
    %76 = tpu.matmul %74, %75, %cst_38 {dimension_numbers = #tpu.dot_dimension_numbers<[1], [0], [0], [1], [0, 0, 1, 1], [], []>} : vector<128x128xf32>, vector<128x8xf32>, vector<128x8xf32> -> vector<128x8xf32>
    %c0_39 = arith.constant 0 : index
    %c16 = arith.constant 16 : index
    %77 = vector.load %arg13[%c0_39, %c16] : memref<128x32xf32, #tpu.memory_space<vmem>>, vector<128x8xf32>
    tpu.vector_store %arg13[%c0_39, %c16], %76 {strides = array<i32>} : memref<128x32xf32, #tpu.memory_space<vmem>>, vector<128x8xf32>,
    %78 = vector.extract_strided_slice %7 {offsets = [0, 24], sizes = [128, 8], strides = [1, 1]} : vector<128x32xf32> to vector<128x8xf32>
    %79 = vector.extract_strided_slice %13 {offsets = [24, 0], sizes = [8, 128], strides = [1, 1]} : vector<32x128xf32> to vector<8x128xf32>
    %cst_40 = arith.constant dense<0.000000e+00> : vector<128x128xf32>
    %80 = tpu.matmul %78, %79, %cst_40 {dimension_numbers = #tpu.dot_dimension_numbers<[1], [0], [0], [1], [0, 0, 1, 1], [], []>} : vector<128x8xf32>, vector<8x128xf32>, vector<128x128xf32> -> vector<128x128xf32>
    %c3 = arith.constant 3 : index
    %c0_41 = arith.constant 0 : index
    %c0_42 = arith.constant 0 : index
    %81 = vector.load %arg9[%c3, %c0_41, %c0_42] : memref<4x128x128xf32, #tpu.memory_space<vmem>>, vector<1x128x128xf32>
    %82 = vector.shape_cast %81 : vector<1x128x128xf32> to vector<128x128xf32>
    %83 = arith.addf %80, %82 : vector<128x128xf32>
    %cst_43 = arith.constant dense<0xFF800000> : vector<128xf32>
    %84 = vector.multi_reduction <maximumf>, %83, %cst_43 [1] : vector<128x128xf32> to vector<128xf32>
    %85 = vector.shape_cast %84 : vector<128xf32> to vector<128x1xf32>
    %86 = vector.broadcast %85 : vector<128x1xf32> to vector<128x128xf32>
    %87 = arith.subf %83, %86 : vector<128x128xf32>
    %88 = math.exp %87 : vector<128x128xf32>
    %cst_44 = arith.constant dense<0.000000e+00> : vector<128xf32>
    %89 = vector.multi_reduction <add>, %88, %cst_44 [1] : vector<128x128xf32> to vector<128xf32>
    %90 = vector.shape_cast %89 : vector<128xf32> to vector<128x1xf32>
    %91 = tpu.reciprocal %90 {approx = true} : vector<128x1xf32> -> vector<128x1xf32>
    %92 = vector.broadcast %91 : vector<128x1xf32> to vector<128x128xf32>
    %93 = arith.mulf %88, %92 : vector<128x128xf32>
    %94 = vector.extract_strided_slice %20 {offsets = [0, 24], sizes = [128, 8], strides = [1, 1]} : vector<128x32xf32> to vector<128x8xf32>
    %cst_45 = arith.constant dense<0.000000e+00> : vector<128x8xf32>
    %95 = tpu.matmul %93, %94, %cst_45 {dimension_numbers = #tpu.dot_dimension_numbers<[1], [0], [0], [1], [0, 0, 1, 1], [], []>} : vector<128x128xf32>, vector<128x8xf32>, vector<128x8xf32> -> vector<128x8xf32>
    %c0_46 = arith.constant 0 : index
    %c24 = arith.constant 24 : index
    %96 = vector.load %arg13[%c0_46, %c24] : memref<128x32xf32, #tpu.memory_space<vmem>>, vector<128x8xf32>
    tpu.vector_store %arg13[%c0_46, %c24], %95 {strides = array<i32>} : memref<128x32xf32, #tpu.memory_space<vmem>>, vector<128x8xf32>,
    %c0_47 = arith.constant 0 : index
    %c0_48 = arith.constant 0 : index
    %97 = vector.load %arg13[%c0_47, %c0_48] : memref<128x32xf32, #tpu.memory_space<vmem>>, vector<128x32xf32>
    %c0_49 = arith.constant 0 : index
    %c0_50 = arith.constant 0 : index
    %98 = vector.load %arg10[%c0_49, %c0_50] : memref<32x32xf32, #tpu.memory_space<vmem>>, vector<32x32xf32>
    %cst_51 = arith.constant dense<0.000000e+00> : vector<128x32xf32>
    %99 = tpu.matmul %97, %98, %cst_51 {dimension_numbers = #tpu.dot_dimension_numbers<[1], [0], [0], [1], [0, 0, 1, 1], [], []>} : vector<128x32xf32>, vector<32x32xf32>, vector<128x32xf32> -> vector<128x32xf32>
    %c0_52 = arith.constant 0 : index
    %c0_53 = arith.constant 0 : index
    %100 = vector.load %arg11[%c0_52, %c0_53] : memref<1x32xf32, #tpu.memory_space<vmem>>, vector<1x32xf32>
    %101 = vector.shape_cast %100 : vector<1x32xf32> to vector<32xf32>
    %102 = vector.shape_cast %101 : vector<32xf32> to vector<1x32xf32>
    %103 = vector.broadcast %102 : vector<1x32xf32> to vector<128x32xf32>
    %104 = arith.addf %99, %103 : vector<128x32xf32>
    %c0_54 = arith.constant 0 : index
    %c0_55 = arith.constant 0 : index
    %105 = vector.load %arg12[%c0_54, %c0_55] : memref<128x32xf32, #tpu.memory_space<vmem>>, vector<128x32xf32>
    tpu.vector_store %arg12[%c0_54, %c0_55], %104 {strides = array<i32>} : memref<128x32xf32, #tpu.memory_space<vmem>>, vector<128x32xf32>,
    return
  }
  func.func @transform_0(%arg0: i32) -> (i32, i32) {
    %c0_i32 = arith.constant 0 : i32
    %c0_i32_0 = arith.constant 0 : i32
    %c0_i32_1 = arith.constant 0 : i32
    return %c0_i32, %c0_i32_0 : i32, i32
  }
  func.func @transform_1(%arg0: i32) -> (i32, i32) {
    %c0_i32 = arith.constant 0 : i32
    %c0_i32_0 = arith.constant 0 : i32
    %c0_i32_1 = arith.constant 0 : i32
    return %c0_i32, %c0_i32_0 : i32, i32
  }
  func.func @transform_2(%arg0: i32) -> (i32, i32) {
    %c0_i32 = arith.constant 0 : i32
    %c0_i32_0 = arith.constant 0 : i32
    %c0_i32_1 = arith.constant 0 : i32
    return %c0_i32, %c0_i32_0 : i32, i32
  }
  func.func @transform_3(%arg0: i32) -> (i32, i32) {
    %c0_i32 = arith.constant 0 : i32
    %c0_i32_0 = arith.constant 0 : i32
    %c0_i32_1 = arith.constant 0 : i32
    return %c0_i32, %c0_i32_0 : i32, i32
  }
  func.func @transform_4(%arg0: i32) -> (i32, i32) {
    %c0_i32 = arith.constant 0 : i32
    %c0_i32_0 = arith.constant 0 : i32
    %c0_i32_1 = arith.constant 0 : i32
    return %c0_i32, %c0_i32_0 : i32, i32
  }
  func.func @transform_5(%arg0: i32) -> (i32, i32) {
    %c0_i32 = arith.constant 0 : i32
    %c0_i32_0 = arith.constant 0 : i32
    %c0_i32_1 = arith.constant 0 : i32
    return %c0_i32, %c0_i32_0 : i32, i32
  }
  func.func @transform_6(%arg0: i32) -> (i32, i32) {
    %c0_i32 = arith.constant 0 : i32
    %c0_i32_0 = arith.constant 0 : i32
    %c0_i32_1 = arith.constant 0 : i32
    return %c0_i32, %c0_i32_0 : i32, i32
  }
  func.func @transform_7(%arg0: i32) -> (i32, i32) {
    %c0_i32 = arith.constant 0 : i32
    %c0_i32_0 = arith.constant 0 : i32
    %c0_i32_1 = arith.constant 0 : i32
    return %c0_i32, %c0_i32_0 : i32, i32
  }
  func.func @transform_8(%arg0: i32) -> (i32, i32, i32) {
    %c0_i32 = arith.constant 0 : i32
    %c0_i32_0 = arith.constant 0 : i32
    %c0_i32_1 = arith.constant 0 : i32
    %c0_i32_2 = arith.constant 0 : i32
    return %c0_i32, %c0_i32_0, %c0_i32_1 : i32, i32, i32
  }
  func.func @transform_9(%arg0: i32) -> (i32, i32) {
    %c0_i32 = arith.constant 0 : i32
    %c0_i32_0 = arith.constant 0 : i32
    %c0_i32_1 = arith.constant 0 : i32
    return %c0_i32, %c0_i32_0 : i32, i32
  }
  func.func @transform_10(%arg0: i32) -> (i32, i32) {
    %c0_i32 = arith.constant 0 : i32
    %c0_i32_0 = arith.constant 0 : i32
    %c0_i32_1 = arith.constant 0 : i32
    return %c0_i32, %c0_i32_0 : i32, i32
  }
  func.func @transform_11(%arg0: i32) -> (i32, i32) {
    %c0_i32 = arith.constant 0 : i32
    %c0_i32_0 = arith.constant 0 : i32
    %c0_i32_1 = arith.constant 0 : i32
    return %c0_i32, %c0_i32_0 : i32, i32
  }
}

</mosaic_0001>

<llo_original>
// kernel: tpu_custom_call.1
$region0: #{tpu_custom_call.1}
  #allocation0 [shape = 'u32[]', space=smem, size = 0x4, offset = 0x4, fixed_abs, tag = 'smem constant byte address 0x4 - core index']
  #allocation1 [shape = 'u32[144,128]{1,0:T(1,128)}', space=vmem, size = 0x12000, scoped, tag = 'internal scratch']
  #allocation2 [shape = 'f32[128,32]{1,0:T(8,128)}', space=vmem, size = 0x10000, scoped, tag = 'scratch operand']
  %s0 = inlined_call_operand.vmem [shape: f32[128,32], index: 0, kind: input, shape index: {}]
  %s1 = inlined_call_operand.vmem [shape: f32[32,128], index: 1, kind: input, shape index: {}]
  %s2 = inlined_call_operand.vmem [shape: f32[32,32], index: 2, kind: input, shape index: {}]
  %s3 = inlined_call_operand.vmem [shape: f32[1,32], index: 3, kind: input, shape index: {}]
  %s4 = inlined_call_operand.vmem [shape: f32[32,32], index: 4, kind: input, shape index: {}]
  %s5 = inlined_call_operand.vmem [shape: f32[32,1], index: 5, kind: input, shape index: {}]
  %s6 = inlined_call_operand.vmem [shape: f32[32,32], index: 6, kind: input, shape index: {}]
  %s7 = inlined_call_operand.vmem [shape: f32[1,32], index: 7, kind: input, shape index: {}]
  %s8 = inlined_call_operand.hbm [shape: f32[4,128,128], index: 8, kind: input, shape index: {}]
  %s9 = inlined_call_operand.vmem [shape: f32[32,32], index: 9, kind: input, shape index: {}]
  %s10 = inlined_call_operand.vmem [shape: f32[1,32], index: 10, kind: input, shape index: {}]
  %s11 = inlined_call_operand.vmem [shape: f32[128,32], index: 11, kind: output, shape index: {}]
  %s12 = sld [smem:[#allocation0]]
  $region58: #{tpu_custom_call.1} parent=0
    _
  %s14 = ssub.s32 1, %s12
  %s15 = scalar_select 0, %s14, %s12
  $region1: #{tpu_custom_call.1} parent=0
    #allocation3 [shape = 'u8[262144]{0}', space=vmem, size = 0x40000, scoped, tag = 'input window, operand 8, single buffered']
    #allocation4 [shape = 's32[1]{0}', space=sflag, size = 0x4, scoped, tag = 'scoped memory for tpu_custom_call.1']
    %16 = vsyncpa [#allocation4], 0
    // Predicated region
    $region2: #{tpu_custom_call.1} parent=1 // pred_check
      _
    $region3: #{tpu_custom_call.1} parent=1 // pred_check_branch
      %18 = sbr.rel (0) target = $region5
    $region4: #{tpu_custom_call.1} parent=1 // pred_region
      _
    $region5: #{tpu_custom_call.1} parent=1 // pred_fallthru
      _
    // Predicated region
    $region6: #{tpu_custom_call.1} parent=1 // pred_check
      _
    $region7: #{tpu_custom_call.1} parent=1 // pred_check_branch
      %20 = sbr.rel (0) target = $region9
    $region8: #{tpu_custom_call.1} parent=1 // pred_region
      _
    $region9: #{tpu_custom_call.1} parent=1 // pred_fallthru
      _
    // Predicated region
    $region10: #{tpu_custom_call.1} parent=1 // pred_check
      _
    $region11: #{tpu_custom_call.1} parent=1 // pred_check_branch
      %22 = sbr.rel (0) target = $region13
    $region12: #{tpu_custom_call.1} parent=1 // pred_region
      _
    $region13: #{tpu_custom_call.1} parent=1 // pred_fallthru
      _
    // Predicated region
    $region14: #{tpu_custom_call.1} parent=1 // pred_check
      _
    $region15: #{tpu_custom_call.1} parent=1 // pred_check_branch
      %24 = sbr.rel (0) target = $region17
    $region16: #{tpu_custom_call.1} parent=1 // pred_region
      _
    $region17: #{tpu_custom_call.1} parent=1 // pred_fallthru
      _
    // Predicated region
    $region18: #{tpu_custom_call.1} parent=1 // pred_check
      _
    $region19: #{tpu_custom_call.1} parent=1 // pred_check_branch
      %26 = sbr.rel (0) target = $region21
    $region20: #{tpu_custom_call.1} parent=1 // pred_region
      _
    $region21: #{tpu_custom_call.1} parent=1 // pred_fallthru
      _
    // Predicated region
    $region22: #{tpu_custom_call.1} parent=1 // pred_check
      _
    $region23: #{tpu_custom_call.1} parent=1 // pred_check_branch
      %28 = sbr.rel (0) target = $region25
    $region24: #{tpu_custom_call.1} parent=1 // pred_region
      _
    $region25: #{tpu_custom_call.1} parent=1 // pred_fallthru
      _
    // Predicated region
    $region26: #{tpu_custom_call.1} parent=1 // pred_check
      _
    $region27: #{tpu_custom_call.1} parent=1 // pred_check_branch
      %30 = sbr.rel (0) target = $region29
    $region28: #{tpu_custom_call.1} parent=1 // pred_region
      _
    $region29: #{tpu_custom_call.1} parent=1 // pred_fallthru
      _
    // Predicated region
    $region30: #{tpu_custom_call.1} parent=1 // pred_check
      _
    $region31: #{tpu_custom_call.1} parent=1 // pred_check_branch
      %32 = sbr.rel (0) target = $region33
    $region32: #{tpu_custom_call.1} parent=1 // pred_region
      _
    $region33: #{tpu_custom_call.1} parent=1 // pred_fallthru
      _
    // Predicated region
    $region34: #{tpu_custom_call.1} parent=1 // pred_check
      _
    $region35: #{tpu_custom_call.1} parent=1 // pred_check_branch
      %34 = sbr.rel (0) target = $region37
    $region36: #{tpu_custom_call.1} parent=1 // pred_region
      %s36 = ssub.s32 8192, 8192
      %37 = vsyncadd [#allocation4], %s36
      %s38 = sshll.u32 [#allocation3], 4
      %s39 = int_to_ptr.vmem [resolvable:$true] %s38
      %44 = dma.hbm_to_vmem [thread:$0]  %s8, 8192, %s39, [#allocation4], 128, 128, 8
    $region37: #{tpu_custom_call.1} parent=1 // pred_fallthru
      _
    // Predicated region
    $region38: #{tpu_custom_call.1} parent=1 // pred_check
      _
    $region39: #{tpu_custom_call.1} parent=1 // pred_check_branch
      %46 = sbr.rel (0) target = $region41
    $region40: #{tpu_custom_call.1} parent=1 // pred_region
      _
    $region41: #{tpu_custom_call.1} parent=1 // pred_fallthru
      _
    // Predicated region
    $region42: #{tpu_custom_call.1} parent=1 // pred_check
      _
    $region43: #{tpu_custom_call.1} parent=1 // pred_check_branch
      %48 = sbr.rel (0) target = $region45
    $region44: #{tpu_custom_call.1} parent=1 // pred_region
      _
    $region45: #{tpu_custom_call.1} parent=1 // pred_fallthru
      _
    // Predicated region
    $region46: #{tpu_custom_call.1} parent=1 // pred_check
      _
    $region47: #{tpu_custom_call.1} parent=1 // pred_check_branch
      %50 = sbr.rel (0) target = $region49
    $region48: #{tpu_custom_call.1} parent=1 // pred_region
      %51 = dma.done [#allocation4], 8192
    $region49: #{tpu_custom_call.1} parent=1 // pred_fallthru
      _
    %v52 = vld [vmem:[%s0] sm:$0xff]
    %v53 = vld [vmem:[%s0 + $0x8] sm:$0xff]
    %v54 = vld [vmem:[%s0 + $0x10] sm:$0xff]
    %v55 = vld [vmem:[%s0 + $0x18] sm:$0xff]
    %v56 = vld [vmem:[%s0 + $0x20] sm:$0xff]
    %v57 = vld [vmem:[%s0 + $0x28] sm:$0xff]
    %v58 = vld [vmem:[%s0 + $0x30] sm:$0xff]
    %v59 = vld [vmem:[%s0 + $0x38] sm:$0xff]
    %v60 = vld [vmem:[%s0 + $0x40] sm:$0xff]
    %v61 = vld [vmem:[%s0 + $0x48] sm:$0xff]
    %v62 = vld [vmem:[%s0 + $0x50] sm:$0xff]
    %v63 = vld [vmem:[%s0 + $0x58] sm:$0xff]
    %v64 = vld [vmem:[%s0 + $0x60] sm:$0xff]
    %v65 = vld [vmem:[%s0 + $0x68] sm:$0xff]
    %v66 = vld [vmem:[%s0 + $0x70] sm:$0xff]
    %v67 = vld [vmem:[%s0 + $0x78] sm:$0xff]
    %v68 = vld [vmem:[%s2] sm:$0xff]
    %v69 = vld [vmem:[%s2 + $0x8] sm:$0xff]
    %v70 = vld [vmem:[%s2 + $0x10] sm:$0xff]
    %v71 = vld [vmem:[%s2 + $0x18] sm:$0xff]
    %v72 = vld [vmem:[%s3] sm:$0x1]
    %v74 = vlaneseq
    %v75 = vshrl.u32 %v74, 7
    %v76 = vsub.s32 0, %v75
    %v77 = vrot.slane %v72, %v76
    %vm79 = vcmask 261120
    %v81 = vsel %vm79, %v52, 0
    %v84 = vsel %vm79, %v53, 0
    %v87 = vsel %vm79, %v54, 0
    %v90 = vsel %vm79, %v55, 0
    %v93 = vsel %vm79, %v56, 0
    %v96 = vsel %vm79, %v57, 0
    %v99 = vsel %vm79, %v58, 0
    %v102 = vsel %vm79, %v59, 0
    %v105 = vsel %vm79, %v60, 0
    %v108 = vsel %vm79, %v61, 0
    %v111 = vsel %vm79, %v62, 0
    %v114 = vsel %vm79, %v63, 0
    %v117 = vsel %vm79, %v64, 0
    %v120 = vsel %vm79, %v65, 0
    %v123 = vsel %vm79, %v66, 0
    %v126 = vsel %vm79, %v67, 0
    %128 = vmatprep.subr.mxu0 0.0
    %129 = vmatpush1.msra.mxu0 %v68
    %130 = vmatprep.subr.mxu0 0.0
    %131 = vmatpush1.msra.mxu0 %v69
    %132 = vmatprep.subr.mxu0 0.0
    %133 = vmatpush1.msra.mxu0 %v70
    %134 = vmatprep.subr.mxu0 0.0
    %135 = vmatpush1.msra.mxu0 %v71
    %136 = vmatprep.subr.mxu0 0.0
    %137 = vmatpush1.msra.mxu0 0.0
    %138 = vmatprep.subr.mxu0 0.0
    %139 = vmatpush1.msra.mxu0 0.0
    %140 = vmatprep.subr.mxu0 0.0
    %141 = vmatpush1.msra.mxu0 0.0
    %142 = vmatprep.subr.mxu0 0.0
    %143 = vmatpush1.msra.mxu0 0.0
    %144 = vmatprep.subr.mxu0 0.0
    %145 = vmatpush1.msra.mxu0 0.0
    %146 = vmatprep.subr.mxu0 0.0
    %147 = vmatpush1.msra.mxu0 0.0
    %148 = vmatprep.subr.mxu0 0.0
    %149 = vmatpush1.msra.mxu0 0.0
    %150 = vmatprep.subr.mxu0 0.0
    %151 = vmatpush1.msra.mxu0 0.0
    %152 = vmatprep.subr.mxu0 0.0
    %153 = vmatpush1.msra.mxu0 0.0
    %154 = vmatprep.subr.mxu0 0.0
    %155 = vmatpush1.msra.mxu0 0.0
    %156 = vmatprep.subr.mxu0 0.0
    %157 = vmatpush1.msra.mxu0 0.0
    %158 = vmatprep.subr.mxu0 0.0
    %159 = vmatpush1.msra.mxu0 0.0
    %160 = vmatprep.subr.mxu0 0.0
    %161 = vmatpush1.msra.mxu0 0.0
    %162 = vmatprep.subr.mxu0 0.0
    %163 = vmatpush1.msra.mxu0 0.0
    %164 = vmatprep.subr.mxu0 0.0
    %165 = vmatpush1.msra.mxu0 0.0
    %166 = vmatprep.subr.mxu0 0.0
    %167 = vmatpush1.msra.mxu0 0.0
    %168 = vmatprep.subr.mxu0 0.0
    %169 = vmatpush1.msra.mxu0 0.0
    %170 = vmatprep.subr.mxu0 0.0
    %171 = vmatpush1.msra.mxu0 0.0
    %172 = vmatprep.subr.mxu0 0.0
    %173 = vmatpush1.msra.mxu0 0.0
    %174 = vmatprep.subr.mxu0 0.0
    %175 = vmatpush1.msra.mxu0 0.0
    %176 = vmatprep.subr.mxu0 0.0
    %177 = vmatpush1.msra.mxu0 0.0
    %178 = vmatprep.subr.mxu0 0.0
    %179 = vmatpush1.msra.mxu0 0.0
    %180 = vmatprep.subr.mxu0 0.0
    %181 = vmatpush1.msra.mxu0 0.0
    %182 = vmatprep.subr.mxu0 0.0
    %183 = vmatpush1.msra.mxu0 0.0
    %184 = vmatprep.subr.mxu0 0.0
    %185 = vmatpush1.msra.mxu0 0.0
    %186 = vmatprep.subr.mxu0 0.0
    %187 = vmatpush1.msra.mxu0 0.0
    %188 = vmatprep.subr.mxu0 0.0
    %189 = vmatpush1.msra.mxu0 0.0
    %190 = vmatprep.subr.mxu0 0.0
    %191 = vmatpush1.msra.mxu0 0.0
    %192 = vmatprep.mubr.f32.mxu0 0.0
    %193 = vmatmul.mubr.f32.gmra.mrb[0].mxu0 %v81
    %v194 = vpop.f32.mrb[0].mxu0
    %v195 = vadd.f32 %v77, %v194
    %v196 = vpop.f32.mrb[0].mxu0
    %197 = vmatprep.mubr.f32.mxu0 0.0
    %198 = vmatmul.mubr.f32.gmra.mrb[0].mxu0 %v84
    %v199 = vpop.f32.mrb[0].mxu0
    %v200 = vadd.f32 %v77, %v199
    %v201 = vpop.f32.mrb[0].mxu0
    %202 = vmatprep.mubr.f32.mxu0 0.0
    %203 = vmatmul.mubr.f32.gmra.mrb[0].mxu0 %v87
    %v204 = vpop.f32.mrb[0].mxu0
    %v205 = vadd.f32 %v77, %v204
    %v206 = vpop.f32.mrb[0].mxu0
    %207 = vmatprep.mubr.f32.mxu0 0.0
    %208 = vmatmul.mubr.f32.gmra.mrb[0].mxu0 %v90
    %v209 = vpop.f32.mrb[0].mxu0
    %v210 = vadd.f32 %v77, %v209
    %v211 = vpop.f32.mrb[0].mxu0
    %212 = vmatprep.mubr.f32.mxu0 0.0
    %213 = vmatmul.mubr.f32.gmra.mrb[0].mxu0 %v93
    %v214 = vpop.f32.mrb[0].mxu0
    %v215 = vadd.f32 %v77, %v214
    %v216 = vpop.f32.mrb[0].mxu0
    %217 = vmatprep.mubr.f32.mxu0 0.0
    %218 = vmatmul.mubr.f32.gmra.mrb[0].mxu0 %v96
    %v219 = vpop.f32.mrb[0].mxu0
    %v220 = vadd.f32 %v77, %v219
    %v221 = vpop.f32.mrb[0].mxu0
    %222 = vmatprep.mubr.f32.mxu0 0.0
    %223 = vmatmul.mubr.f32.gmra.mrb[0].mxu0 %v99
    %v224 = vpop.f32.mrb[0].mxu0
    %v225 = vadd.f32 %v77, %v224
    %v226 = vpop.f32.mrb[0].mxu0
    %227 = vmatprep.mubr.f32.mxu0 0.0
    %228 = vmatmul.mubr.f32.gmra.mrb[0].mxu0 %v102
    %v229 = vpop.f32.mrb[0].mxu0
    %v230 = vadd.f32 %v77, %v229
    %v231 = vpop.f32.mrb[0].mxu0
    %232 = vmatprep.mubr.f32.mxu0 0.0
    %233 = vmatmul.mubr.f32.gmra.mrb[0].mxu0 %v105
    %v234 = vpop.f32.mrb[0].mxu0
    %v235 = vadd.f32 %v77, %v234
    %v236 = vpop.f32.mrb[0].mxu0
    %237 = vmatprep.mubr.f32.mxu0 0.0
    %238 = vmatmul.mubr.f32.gmra.mrb[0].mxu0 %v108
    %v239 = vpop.f32.mrb[0].mxu0
    %v240 = vadd.f32 %v77, %v239
    %v241 = vpop.f32.mrb[0].mxu0
    %242 = vmatprep.mubr.f32.mxu0 0.0
    %243 = vmatmul.mubr.f32.gmra.mrb[0].mxu0 %v111
    %v244 = vpop.f32.mrb[0].mxu0
    %v245 = vadd.f32 %v77, %v244
    %v246 = vpop.f32.mrb[0].mxu0
    %247 = vmatprep.mubr.f32.mxu0 0.0
    %248 = vmatmul.mubr.f32.gmra.mrb[0].mxu0 %v114
    %v249 = vpop.f32.mrb[0].mxu0
    %v250 = vadd.f32 %v77, %v249
    %v251 = vpop.f32.mrb[0].mxu0
    %252 = vmatprep.mubr.f32.mxu0 0.0
    %253 = vmatmul.mubr.f32.gmra.mrb[0].mxu0 %v117
    %v254 = vpop.f32.mrb[0].mxu0
    %v255 = vadd.f32 %v77, %v254
    %v256 = vpop.f32.mrb[0].mxu0
    %257 = vmatprep.mubr.f32.mxu0 0.0
    %258 = vmatmul.mubr.f32.gmra.mrb[0].mxu0 %v120
    %v259 = vpop.f32.mrb[0].mxu0
    %v260 = vadd.f32 %v77, %v259
    %v261 = vpop.f32.mrb[0].mxu0
    %262 = vmatprep.mubr.f32.mxu0 0.0
    %263 = vmatmul.mubr.f32.gmra.mrb[0].mxu0 %v123
    %v264 = vpop.f32.mrb[0].mxu0
    %v265 = vadd.f32 %v77, %v264
    %v266 = vpop.f32.mrb[0].mxu0
    %267 = vmatprep.mubr.f32.mxu0 0.0
    %268 = vmatmul.mubr.f32.gmra.mrb[0].mxu0 %v126
    %v269 = vpop.f32.mrb[0].mxu0
    %v270 = vadd.f32 %v77, %v269
    %v271 = vpop.f32.mrb[0].mxu0
    %272 = vdwg.mxu0
    %v273 = vld [vmem:[%s4] sm:$0xff]
    %v274 = vld [vmem:[%s4 + $0x8] sm:$0xff]
    %v275 = vld [vmem:[%s4 + $0x10] sm:$0xff]
    %v276 = vld [vmem:[%s4 + $0x18] sm:$0xff]
    %v277 = vld [vmem:[%s1] sm:$0xff]
    %v278 = vld [vmem:[%s1 + $0x8] sm:$0xff]
    %v279 = vld [vmem:[%s1 + $0x10] sm:$0xff]
    %v280 = vld [vmem:[%s1 + $0x18] sm:$0xff]
    %v281 = vld [vmem:[%s5] sm:$0xff]
    %v282 = vld [vmem:[%s5 + $0x8] sm:$0xff]
    %v283 = vld [vmem:[%s5 + $0x10] sm:$0xff]
    %v284 = vld [vmem:[%s5 + $0x18] sm:$0xff]
    %286 = vset.pattern.permute.xlu0 0
    %287 = vperm.xlu0 %286, %v281
    %v288 = vpop.permute.xlu0 %287
    %291 = vset.pattern.permute.xlu0 0
    %292 = vperm.xlu0 %291, %v282
    %v293 = vpop.permute.xlu0 %292
    %296 = vset.pattern.permute.xlu0 0
    %297 = vperm.xlu0 %296, %v283
    %v298 = vpop.permute.xlu0 %297
    %301 = vset.pattern.permute.xlu0 0
    %302 = vperm.xlu0 %301, %v284
    %v303 = vpop.permute.xlu0 %302
    %v306 = vsel %vm79, %v273, 0
    %v309 = vsel %vm79, %v274, 0
    %v312 = vsel %vm79, %v275, 0
    %v315 = vsel %vm79, %v276, 0
    %317 = vmatprep.subr.mxu0 0.0
    %318 = vmatpush1.msra.mxu0 %v277
    %319 = vmatprep.subr.mxu0 0.0
    %320 = vmatpush1.msra.mxu0 %v278
    %321 = vmatprep.subr.mxu0 0.0
    %322 = vmatpush1.msra.mxu0 %v279
    %323 = vmatprep.subr.mxu0 0.0
    %324 = vmatpush1.msra.mxu0 %v280
    %325 = vmatprep.subr.mxu0 0.0
    %326 = vmatpush1.msra.mxu0 0.0
    %327 = vmatprep.subr.mxu0 0.0
    %328 = vmatpush1.msra.mxu0 0.0
    %329 = vmatprep.subr.mxu0 0.0
    %330 = vmatpush1.msra.mxu0 0.0
    %331 = vmatprep.subr.mxu0 0.0
    %332 = vmatpush1.msra.mxu0 0.0
    %333 = vmatprep.subr.mxu0 0.0
    %334 = vmatpush1.msra.mxu0 0.0
    %335 = vmatprep.subr.mxu0 0.0
    %336 = vmatpush1.msra.mxu0 0.0
    %337 = vmatprep.subr.mxu0 0.0
    %338 = vmatpush1.msra.mxu0 0.0
    %339 = vmatprep.subr.mxu0 0.0
    %340 = vmatpush1.msra.mxu0 0.0
    %341 = vmatprep.subr.mxu0 0.0
    %342 = vmatpush1.msra.mxu0 0.0
    %343 = vmatprep.subr.mxu0 0.0
    %344 = vmatpush1.msra.mxu0 0.0
    %345 = vmatprep.subr.mxu0 0.0
    %346 = vmatpush1.msra.mxu0 0.0
    %347 = vmatprep.subr.mxu0 0.0
    %348 = vmatpush1.msra.mxu0 0.0
    %349 = vmatprep.subr.mxu0 0.0
    %350 = vmatpush1.msra.mxu0 0.0
    %351 = vmatprep.subr.mxu0 0.0
    %352 = vmatpush1.msra.mxu0 0.0
    %353 = vmatprep.subr.mxu0 0.0
    %354 = vmatpush1.msra.mxu0 0.0
    %355 = vmatprep.subr.mxu0 0.0
    %356 = vmatpush1.msra.mxu0 0.0
    %357 = vmatprep.subr.mxu0 0.0
    %358 = vmatpush1.msra.mxu0 0.0
    %359 = vmatprep.subr.mxu0 0.0
    %360 = vmatpush1.msra.mxu0 0.0
    %361 = vmatprep.subr.mxu0 0.0
    %362 = vmatpush1.msra.mxu0 0.0
    %363 = vmatprep.subr.mxu0 0.0
    %364 = vmatpush1.msra.mxu0 0.0
    %365 = vmatprep.subr.mxu0 0.0
    %366 = vmatpush1.msra.mxu0 0.0
    %367 = vmatprep.subr.mxu0 0.0
    %368 = vmatpush1.msra.mxu0 0.0
    %369 = vmatprep.subr.mxu0 0.0
    %370 = vmatpush1.msra.mxu0 0.0
    %371 = vmatprep.subr.mxu0 0.0
    %372 = vmatpush1.msra.mxu0 0.0
    %373 = vmatprep.subr.mxu0 0.0
    %374 = vmatpush1.msra.mxu0 0.0
    %375 = vmatprep.subr.mxu0 0.0
    %376 = vmatpush1.msra.mxu0 0.0
    %377 = vmatprep.subr.mxu0 0.0
    %378 = vmatpush1.msra.mxu0 0.0
    %379 = vmatprep.subr.mxu0 0.0
    %380 = vmatpush1.msra.mxu0 0.0
    %381 = vmatprep.mubr.f32.mxu0 0.0
    %382 = vmatmul.mubr.f32.gmra.mrb[0].mxu0 %v306
    %v383 = vpop.f32.mrb[0].mxu0
    %v384 = vadd.f32 %v288, %v383
    %v385 = vpop.f32.mrb[0].mxu0
    %386 = vmatprep.mubr.f32.mxu0 0.0
    %387 = vmatmul.mubr.f32.gmra.mrb[0].mxu0 %v309
    %v388 = vpop.f32.mrb[0].mxu0
    %v389 = vadd.f32 %v293, %v388
    %v390 = vpop.f32.mrb[0].mxu0
    %391 = vmatprep.mubr.f32.mxu0 0.0
    %392 = vmatmul.mubr.f32.gmra.mrb[0].mxu0 %v312
    %v393 = vpop.f32.mrb[0].mxu0
    %v394 = vadd.f32 %v298, %v393
    %v395 = vpop.f32.mrb[0].mxu0
    %396 = vmatprep.mubr.f32.mxu0 0.0
    %397 = vmatmul.mubr.f32.gmra.mrb[0].mxu0 %v315
    %v398 = vpop.f32.mrb[0].mxu0
    %v399 = vadd.f32 %v303, %v398
    %v400 = vpop.f32.mrb[0].mxu0
    %401 = vdwg.mxu0
    %v402 = vld [vmem:[%s6] sm:$0xff]
    %v403 = vld [vmem:[%s6 + $0x8] sm:$0xff]
    %v404 = vld [vmem:[%s6 + $0x10] sm:$0xff]
    %v405 = vld [vmem:[%s6 + $0x18] sm:$0xff]
    %v406 = vld [vmem:[%s7] sm:$0x1]
    %v408 = vlaneseq
    %v409 = vshrl.u32 %v408, 7
    %v410 = vsub.s32 0, %v409
    %v411 = vrot.slane %v406, %v410
    %413 = vmatprep.subr.mxu0 0.0
    %414 = vmatpush1.msra.mxu0 %v402
    %415 = vmatprep.subr.mxu0 0.0
    %416 = vmatpush1.msra.mxu0 %v403
    %417 = vmatprep.subr.mxu0 0.0
    %418 = vmatpush1.msra.mxu0 %v404
    %419 = vmatprep.subr.mxu0 0.0
    %420 = vmatpush1.msra.mxu0 %v405
    %421 = vmatprep.subr.mxu0 0.0
    %422 = vmatpush1.msra.mxu0 0.0
    %423 = vmatprep.subr.mxu0 0.0
    %424 = vmatpush1.msra.mxu0 0.0
    %425 = vmatprep.subr.mxu0 0.0
    %426 = vmatpush1.msra.mxu0 0.0
    %427 = vmatprep.subr.mxu0 0.0
    %428 = vmatpush1.msra.mxu0 0.0
    %429 = vmatprep.subr.mxu0 0.0
    %430 = vmatpush1.msra.mxu0 0.0
    %431 = vmatprep.subr.mxu0 0.0
    %432 = vmatpush1.msra.mxu0 0.0
    %433 = vmatprep.subr.mxu0 0.0
    %434 = vmatpush1.msra.mxu0 0.0
    %435 = vmatprep.subr.mxu0 0.0
    %436 = vmatpush1.msra.mxu0 0.0
    %437 = vmatprep.subr.mxu0 0.0
    %438 = vmatpush1.msra.mxu0 0.0
    %439 = vmatprep.subr.mxu0 0.0
    %440 = vmatpush1.msra.mxu0 0.0
    %441 = vmatprep.subr.mxu0 0.0
    %442 = vmatpush1.msra.mxu0 0.0
    %443 = vmatprep.subr.mxu0 0.0
    %444 = vmatpush1.msra.mxu0 0.0
    %445 = vmatprep.subr.mxu0 0.0
    %446 = vmatpush1.msra.mxu0 0.0
    %447 = vmatprep.subr.mxu0 0.0
    %448 = vmatpush1.msra.mxu0 0.0
    %449 = vmatprep.subr.mxu0 0.0
    %450 = vmatpush1.msra.mxu0 0.0
    %451 = vmatprep.subr.mxu0 0.0
    %452 = vmatpush1.msra.mxu0 0.0
    %453 = vmatprep.subr.mxu0 0.0
    %454 = vmatpush1.msra.mxu0 0.0
    %455 = vmatprep.subr.mxu0 0.0
    %456 = vmatpush1.msra.mxu0 0.0
    %457 = vmatprep.subr.mxu0 0.0
    %458 = vmatpush1.msra.mxu0 0.0
    %459 = vmatprep.subr.mxu0 0.0
    %460 = vmatpush1.msra.mxu0 0.0
    %461 = vmatprep.subr.mxu0 0.0
    %462 = vmatpush1.msra.mxu0 0.0
    %463 = vmatprep.subr.mxu0 0.0
    %464 = vmatpush1.msra.mxu0 0.0
    %465 = vmatprep.subr.mxu0 0.0
    %466 = vmatpush1.msra.mxu0 0.0
    %467 = vmatprep.subr.mxu0 0.0
    %468 = vmatpush1.msra.mxu0 0.0
    %469 = vmatprep.subr.mxu0 0.0
    %470 = vmatpush1.msra.mxu0 0.0
    %471 = vmatprep.subr.mxu0 0.0
    %472 = vmatpush1.msra.mxu0 0.0
    %473 = vmatprep.subr.mxu0 0.0
    %474 = vmatpush1.msra.mxu0 0.0
    %475 = vmatprep.subr.mxu0 0.0
    %476 = vmatpush1.msra.mxu0 0.0
    %477 = vmatprep.mubr.f32.mxu0 0.0
    %478 = vmatmul.mubr.f32.gmra.mrb[0].mxu0 %v81
    %v479 = vpop.f32.mrb[0].mxu0
    %v480 = vadd.f32 %v411, %v479
    %v481 = vpop.f32.mrb[0].mxu0
    %482 = vmatprep.mubr.f32.mxu0 0.0
    %483 = vmatmul.mubr.f32.gmra.mrb[0].mxu0 %v84
    %v484 = vpop.f32.mrb[0].mxu0
    %v485 = vadd.f32 %v411, %v484
    %v486 = vpop.f32.mrb[0].mxu0
    %487 = vmatprep.mubr.f32.mxu0 0.0
    %488 = vmatmul.mubr.f32.gmra.mrb[0].mxu0 %v87
    %v489 = vpop.f32.mrb[0].mxu0
    %v490 = vadd.f32 %v411, %v489
    %v491 = vpop.f32.mrb[0].mxu0
    %492 = vmatprep.mubr.f32.mxu0 0.0
    %493 = vmatmul.mubr.f32.gmra.mrb[0].mxu0 %v90
    %v494 = vpop.f32.mrb[0].mxu0
    %v495 = vadd.f32 %v411, %v494
    %v496 = vpop.f32.mrb[0].mxu0
    %497 = vmatprep.mubr.f32.mxu0 0.0
    %498 = vmatmul.mubr.f32.gmra.mrb[0].mxu0 %v93
    %v499 = vpop.f32.mrb[0].mxu0
    %v500 = vadd.f32 %v411, %v499
    %v501 = vpop.f32.mrb[0].mxu0
    %502 = vmatprep.mubr.f32.mxu0 0.0
    %503 = vmatmul.mubr.f32.gmra.mrb[0].mxu0 %v96
    %v504 = vpop.f32.mrb[0].mxu0
    %v505 = vadd.f32 %v411, %v504
    %v506 = vpop.f32.mrb[0].mxu0
    %507 = vmatprep.mubr.f32.mxu0 0.0
    %508 = vmatmul.mubr.f32.gmra.mrb[0].mxu0 %v99
    %v509 = vpop.f32.mrb[0].mxu0
    %v510 = vadd.f32 %v411, %v509
    %v511 = vpop.f32.mrb[0].mxu0
    %512 = vmatprep.mubr.f32.mxu0 0.0
    %513 = vmatmul.mubr.f32.gmra.mrb[0].mxu0 %v102
    %v514 = vpop.f32.mrb[0].mxu0
    %v515 = vadd.f32 %v411, %v514
    %v516 = vpop.f32.mrb[0].mxu0
    %517 = vmatprep.mubr.f32.mxu0 0.0
    %518 = vmatmul.mubr.f32.gmra.mrb[0].mxu0 %v105
    %v519 = vpop.f32.mrb[0].mxu0
    %v520 = vadd.f32 %v411, %v519
    %v521 = vpop.f32.mrb[0].mxu0
    %522 = vmatprep.mubr.f32.mxu0 0.0
    %523 = vmatmul.mubr.f32.gmra.mrb[0].mxu0 %v108
    %v524 = vpop.f32.mrb[0].mxu0
    %v525 = vadd.f32 %v411, %v524
    %v526 = vpop.f32.mrb[0].mxu0
    %527 = vmatprep.mubr.f32.mxu0 0.0
    %528 = vmatmul.mubr.f32.gmra.mrb[0].mxu0 %v111
    %v529 = vpop.f32.mrb[0].mxu0
    %v530 = vadd.f32 %v411, %v529
    %v531 = vpop.f32.mrb[0].mxu0
    %532 = vmatprep.mubr.f32.mxu0 0.0
    %533 = vmatmul.mubr.f32.gmra.mrb[0].mxu0 %v114
    %v534 = vpop.f32.mrb[0].mxu0
    %v535 = vadd.f32 %v411, %v534
    %v536 = vpop.f32.mrb[0].mxu0
    %537 = vmatprep.mubr.f32.mxu0 0.0
    %538 = vmatmul.mubr.f32.gmra.mrb[0].mxu0 %v117
    %v539 = vpop.f32.mrb[0].mxu0
    %v540 = vadd.f32 %v411, %v539
    %v541 = vpop.f32.mrb[0].mxu0
    %542 = vmatprep.mubr.f32.mxu0 0.0
    %543 = vmatmul.mubr.f32.gmra.mrb[0].mxu0 %v120
    %v544 = vpop.f32.mrb[0].mxu0
    %v545 = vadd.f32 %v411, %v544
    %v546 = vpop.f32.mrb[0].mxu0
    %547 = vmatprep.mubr.f32.mxu0 0.0
    %548 = vmatmul.mubr.f32.gmra.mrb[0].mxu0 %v123
    %v549 = vpop.f32.mrb[0].mxu0
    %v550 = vadd.f32 %v411, %v549
    %v551 = vpop.f32.mrb[0].mxu0
    %552 = vmatprep.mubr.f32.mxu0 0.0
    %553 = vmatmul.mubr.f32.gmra.mrb[0].mxu0 %v126
    %v554 = vpop.f32.mrb[0].mxu0
    %v555 = vadd.f32 %v411, %v554
    %v556 = vpop.f32.mrb[0].mxu0
    %557 = vdwg.mxu0
    %v558 = vld [vmem:[#allocation3] sm:$0xff]
    %v559 = vld [vmem:[#allocation3 + $0x8] sm:$0xff]
    %v560 = vld [vmem:[#allocation3 + $0x10] sm:$0xff]
    %v561 = vld [vmem:[#allocation3 + $0x18] sm:$0xff]
    %v562 = vld [vmem:[#allocation3 + $0x20] sm:$0xff]
    %v563 = vld [vmem:[#allocation3 + $0x28] sm:$0xff]
    %v564 = vld [vmem:[#allocation3 + $0x30] sm:$0xff]
    %v565 = vld [vmem:[#allocation3 + $0x38] sm:$0xff]
    %v566 = vld [vmem:[#allocation3 + $0x40] sm:$0xff]
    %v567 = vld [vmem:[#allocation3 + $0x48] sm:$0xff]
    %v568 = vld [vmem:[#allocation3 + $0x50] sm:$0xff]
    %v569 = vld [vmem:[#allocation3 + $0x58] sm:$0xff]
    %v570 = vld [vmem:[#allocation3 + $0x60] sm:$0xff]
    %v571 = vld [vmem:[#allocation3 + $0x68] sm:$0xff]
    %v572 = vld [vmem:[#allocation3 + $0x70] sm:$0xff]
    %v573 = vld [vmem:[#allocation3 + $0x78] sm:$0xff]
    %vm574 = vcmask 64512
    %v576 = vsel %vm574, %v195, 0
    %v579 = vsel %vm574, %v200, 0
    %v582 = vsel %vm574, %v205, 0
    %v585 = vsel %vm574, %v210, 0
    %v588 = vsel %vm574, %v215, 0
    %v591 = vsel %vm574, %v220, 0
    %v594 = vsel %vm574, %v225, 0
    %v597 = vsel %vm574, %v230, 0
    %v600 = vsel %vm574, %v235, 0
    %v603 = vsel %vm574, %v240, 0
    %v606 = vsel %vm574, %v245, 0
    %v609 = vsel %vm574, %v250, 0
    %v612 = vsel %vm574, %v255, 0
    %v615 = vsel %vm574, %v260, 0
    %v618 = vsel %vm574, %v265, 0
    %v621 = vsel %vm574, %v270, 0
    %623 = vmatprep.subr.mxu0 0.0
    %624 = vmatpush1.msra.mxu0 %v384
    %625 = vmatprep.subr.mxu0 0.0
    %626 = vmatpush1.msra.mxu0 0.0
    %627 = vmatprep.subr.mxu0 0.0
    %628 = vmatpush1.msra.mxu0 0.0
    %629 = vmatprep.subr.mxu0 0.0
    %630 = vmatpush1.msra.mxu0 0.0
    %631 = vmatprep.subr.mxu0 0.0
    %632 = vmatpush1.msra.mxu0 0.0
    %633 = vmatprep.subr.mxu0 0.0
    %634 = vmatpush1.msra.mxu0 0.0
    %635 = vmatprep.subr.mxu0 0.0
    %636 = vmatpush1.msra.mxu0 0.0
    %637 = vmatprep.subr.mxu0 0.0
    %638 = vmatpush1.msra.mxu0 0.0
    %639 = vmatprep.subr.mxu0 0.0
    %640 = vmatpush1.msra.mxu0 0.0
    %641 = vmatprep.subr.mxu0 0.0
    %642 = vmatpush1.msra.mxu0 0.0
    %643 = vmatprep.subr.mxu0 0.0
    %644 = vmatpush1.msra.mxu0 0.0
    %645 = vmatprep.subr.mxu0 0.0
    %646 = vmatpush1.msra.mxu0 0.0
    %647 = vmatprep.subr.mxu0 0.0
    %648 = vmatpush1.msra.mxu0 0.0
    %649 = vmatprep.subr.mxu0 0.0
    %650 = vmatpush1.msra.mxu0 0.0
    %651 = vmatprep.subr.mxu0 0.0
    %652 = vmatpush1.msra.mxu0 0.0
    %653 = vmatprep.subr.mxu0 0.0
    %654 = vmatpush1.msra.mxu0 0.0
    %655 = vmatprep.subr.mxu0 0.0
    %656 = vmatpush1.msra.mxu0 0.0
    %657 = vmatprep.subr.mxu0 0.0
    %658 = vmatpush1.msra.mxu0 0.0
    %659 = vmatprep.subr.mxu0 0.0
    %660 = vmatpush1.msra.mxu0 0.0
    %661 = vmatprep.subr.mxu0 0.0
    %662 = vmatpush1.msra.mxu0 0.0
    %663 = vmatprep.subr.mxu0 0.0
    %664 = vmatpush1.msra.mxu0 0.0
    %665 = vmatprep.subr.mxu0 0.0
    %666 = vmatpush1.msra.mxu0 0.0
    %667 = vmatprep.subr.mxu0 0.0
    %668 = vmatpush1.msra.mxu0 0.0
    %669 = vmatprep.subr.mxu0 0.0
    %670 = vmatpush1.msra.mxu0 0.0
    %671 = vmatprep.subr.mxu0 0.0
    %672 = vmatpush1.msra.mxu0 0.0
    %673 = vmatprep.subr.mxu0 0.0
    %674 = vmatpush1.msra.mxu0 0.0
    %675 = vmatprep.subr.mxu0 0.0
    %676 = vmatpush1.msra.mxu0 0.0
    %677 = vmatprep.subr.mxu0 0.0
    %678 = vmatpush1.msra.mxu0 0.0
    %679 = vmatprep.subr.mxu0 0.0
    %680 = vmatpush1.msra.mxu0 0.0
    %681 = vmatprep.subr.mxu0 0.0
    %682 = vmatpush1.msra.mxu0 0.0
    %683 = vmatprep.subr.mxu0 0.0
    %684 = vmatpush1.msra.mxu0 0.0
    %685 = vmatprep.subr.mxu0 0.0
    %686 = vmatpush1.msra.mxu0 0.0
    %687 = vmatprep.mubr.f32.mxu0 0.0
    %688 = vmatmul.mubr.f32.gmra.mrb[0].mxu0 %v576
    %v689 = vpop.f32.mrb[0].mxu0
    %v690 = vadd.f32 %v558, %v689
    %v691 = vpop.f32.mrb[0].mxu0
    %692 = vmatprep.mubr.f32.mxu0 0.0
    %693 = vmatmul.mubr.f32.gmra.mrb[0].mxu0 %v579
    %v694 = vpop.f32.mrb[0].mxu0
    %v695 = vadd.f32 %v559, %v694
    %v696 = vpop.f32.mrb[0].mxu0
    %697 = vmatprep.mubr.f32.mxu0 0.0
    %698 = vmatmul.mubr.f32.gmra.mrb[0].mxu0 %v582
    %v699 = vpop.f32.mrb[0].mxu0
    %v700 = vadd.f32 %v560, %v699
    %v701 = vpop.f32.mrb[0].mxu0
    %702 = vmatprep.mubr.f32.mxu0 0.0
    %703 = vmatmul.mubr.f32.gmra.mrb[0].mxu0 %v585
    %v704 = vpop.f32.mrb[0].mxu0
    %v705 = vadd.f32 %v561, %v704
    %v706 = vpop.f32.mrb[0].mxu0
    %707 = vmatprep.mubr.f32.mxu0 0.0
    %708 = vmatmul.mubr.f32.gmra.mrb[0].mxu0 %v588
    %v709 = vpop.f32.mrb[0].mxu0
    %v710 = vadd.f32 %v562, %v709
    %v711 = vpop.f32.mrb[0].mxu0
    %712 = vmatprep.mubr.f32.mxu0 0.0
    %713 = vmatmul.mubr.f32.gmra.mrb[0].mxu0 %v591
    %v714 = vpop.f32.mrb[0].mxu0
    %v715 = vadd.f32 %v563, %v714
    %v716 = vpop.f32.mrb[0].mxu0
    %717 = vmatprep.mubr.f32.mxu0 0.0
    %718 = vmatmul.mubr.f32.gmra.mrb[0].mxu0 %v594
    %v719 = vpop.f32.mrb[0].mxu0
    %v720 = vadd.f32 %v564, %v719
    %v721 = vpop.f32.mrb[0].mxu0
    %722 = vmatprep.mubr.f32.mxu0 0.0
    %723 = vmatmul.mubr.f32.gmra.mrb[0].mxu0 %v597
    %v724 = vpop.f32.mrb[0].mxu0
    %v725 = vadd.f32 %v565, %v724
    %v726 = vpop.f32.mrb[0].mxu0
    %727 = vmatprep.mubr.f32.mxu0 0.0
    %728 = vmatmul.mubr.f32.gmra.mrb[0].mxu0 %v600
    %v729 = vpop.f32.mrb[0].mxu0
    %v730 = vadd.f32 %v566, %v729
    %v731 = vpop.f32.mrb[0].mxu0
    %732 = vmatprep.mubr.f32.mxu0 0.0
    %733 = vmatmul.mubr.f32.gmra.mrb[0].mxu0 %v603
    %v734 = vpop.f32.mrb[0].mxu0
    %v735 = vadd.f32 %v567, %v734
    %v736 = vpop.f32.mrb[0].mxu0
    %737 = vmatprep.mubr.f32.mxu0 0.0
    %738 = vmatmul.mubr.f32.gmra.mrb[0].mxu0 %v606
    %v739 = vpop.f32.mrb[0].mxu0
    %v740 = vadd.f32 %v568, %v739
    %v741 = vpop.f32.mrb[0].mxu0
    %742 = vmatprep.mubr.f32.mxu0 0.0
    %743 = vmatmul.mubr.f32.gmra.mrb[0].mxu0 %v609
    %v744 = vpop.f32.mrb[0].mxu0
    %v745 = vadd.f32 %v569, %v744
    %v746 = vpop.f32.mrb[0].mxu0
    %747 = vmatprep.mubr.f32.mxu0 0.0
    %748 = vmatmul.mubr.f32.gmra.mrb[0].mxu0 %v612
    %v749 = vpop.f32.mrb[0].mxu0
    %v750 = vadd.f32 %v570, %v749
    %v751 = vpop.f32.mrb[0].mxu0
    %752 = vmatprep.mubr.f32.mxu0 0.0
    %753 = vmatmul.mubr.f32.gmra.mrb[0].mxu0 %v615
    %v754 = vpop.f32.mrb[0].mxu0
    %v755 = vadd.f32 %v571, %v754
    %v756 = vpop.f32.mrb[0].mxu0
    %757 = vmatprep.mubr.f32.mxu0 0.0
    %758 = vmatmul.mubr.f32.gmra.mrb[0].mxu0 %v618
    %v759 = vpop.f32.mrb[0].mxu0
    %v760 = vadd.f32 %v572, %v759
    %v761 = vpop.f32.mrb[0].mxu0
    %762 = vmatprep.mubr.f32.mxu0 0.0
    %763 = vmatmul.mubr.f32.gmra.mrb[0].mxu0 %v621
    %v764 = vpop.f32.mrb[0].mxu0
    %v765 = vadd.f32 %v573, %v764
    %v766 = vpop.f32.mrb[0].mxu0
    %767 = vdwg.mxu0
    %768 = vmax.xlane.f32.xlu0 %v690
    %v769 = vpop.xlane.xlu0 %768
    %770 = vmax.xlane.f32.xlu0 %v695
    %v771 = vpop.xlane.xlu0 %770
    %772 = vmax.xlane.f32.xlu0 %v700
    %v773 = vpop.xlane.xlu0 %772
    %774 = vmax.xlane.f32.xlu0 %v705
    %v775 = vpop.xlane.xlu0 %774
    %776 = vmax.xlane.f32.xlu0 %v710
    %v777 = vpop.xlane.xlu0 %776
    %778 = vmax.xlane.f32.xlu0 %v715
    %v779 = vpop.xlane.xlu0 %778
    %780 = vmax.xlane.f32.xlu0 %v720
    %v781 = vpop.xlane.xlu0 %780
    %782 = vmax.xlane.f32.xlu0 %v725
    %v783 = vpop.xlane.xlu0 %782
    %784 = vmax.xlane.f32.xlu0 %v730
    %v785 = vpop.xlane.xlu0 %784
    %786 = vmax.xlane.f32.xlu0 %v735
    %v787 = vpop.xlane.xlu0 %786
    %788 = vmax.xlane.f32.xlu0 %v740
    %v789 = vpop.xlane.xlu0 %788
    %790 = vmax.xlane.f32.xlu0 %v745
    %v791 = vpop.xlane.xlu0 %790
    %792 = vmax.xlane.f32.xlu0 %v750
    %v793 = vpop.xlane.xlu0 %792
    %794 = vmax.xlane.f32.xlu0 %v755
    %v795 = vpop.xlane.xlu0 %794
    %796 = vmax.xlane.f32.xlu0 %v760
    %v797 = vpop.xlane.xlu0 %796
    %798 = vmax.xlane.f32.xlu0 %v765
    %v799 = vpop.xlane.xlu0 %798
    %v800 = vsub.f32 %v690, %v769
    %v801 = vsub.f32 %v695, %v771
    %v802 = vsub.f32 %v700, %v773
    %v803 = vsub.f32 %v705, %v775
    %v804 = vsub.f32 %v710, %v777
    %v805 = vsub.f32 %v715, %v779
    %v806 = vsub.f32 %v720, %v781
    %v807 = vsub.f32 %v725, %v783
    %v808 = vsub.f32 %v730, %v785
    %v809 = vsub.f32 %v735, %v787
    %v810 = vsub.f32 %v740, %v789
    %v811 = vsub.f32 %v745, %v791
    %v812 = vsub.f32 %v750, %v793
    %v813 = vsub.f32 %v755, %v795
    %v814 = vsub.f32 %v760, %v797
    %v815 = vsub.f32 %v765, %v799
    %v816 = vmul.f32 %v800, 1.442695
    %v817 = vpow.pop %v816
    %v818 = vmul.f32 %v801, 1.442695
    %v819 = vpow.pop %v818
    %v820 = vmul.f32 %v802, 1.442695
    %v821 = vpow.pop %v820
    %v822 = vmul.f32 %v803, 1.442695
    %v823 = vpow.pop %v822
    %v824 = vmul.f32 %v804, 1.442695
    %v825 = vpow.pop %v824
    %v826 = vmul.f32 %v805, 1.442695
    %v827 = vpow.pop %v826
    %v828 = vmul.f32 %v806, 1.442695
    %v829 = vpow.pop %v828
    %v830 = vmul.f32 %v807, 1.442695
    %v831 = vpow.pop %v830
    %v832 = vmul.f32 %v808, 1.442695
    %v833 = vpow.pop %v832
    %v834 = vmul.f32 %v809, 1.442695
    %v835 = vpow.pop %v834
    %v836 = vmul.f32 %v810, 1.442695
    %v837 = vpow.pop %v836
    %v838 = vmul.f32 %v811, 1.442695
    %v839 = vpow.pop %v838
    %v840 = vmul.f32 %v812, 1.442695
    %v841 = vpow.pop %v840
    %v842 = vmul.f32 %v813, 1.442695
    %v843 = vpow.pop %v842
    %v844 = vmul.f32 %v814, 1.442695
    %v845 = vpow.pop %v844
    %v846 = vmul.f32 %v815, 1.442695
    %v847 = vpow.pop %v846
    %848 = vadd.xlane.f32.xlu0 %v817
    %v849 = vpop.xlane.xlu0 %848
    %850 = vadd.xlane.f32.xlu0 %v819
    %v851 = vpop.xlane.xlu0 %850
    %852 = vadd.xlane.f32.xlu0 %v821
    %v853 = vpop.xlane.xlu0 %852
    %854 = vadd.xlane.f32.xlu0 %v823
    %v855 = vpop.xlane.xlu0 %854
    %856 = vadd.xlane.f32.xlu0 %v825
    %v857 = vpop.xlane.xlu0 %856
    %858 = vadd.xlane.f32.xlu0 %v827
    %v859 = vpop.xlane.xlu0 %858
    %860 = vadd.xlane.f32.xlu0 %v829
    %v861 = vpop.xlane.xlu0 %860
    %862 = vadd.xlane.f32.xlu0 %v831
    %v863 = vpop.xlane.xlu0 %862
    %864 = vadd.xlane.f32.xlu0 %v833
    %v865 = vpop.xlane.xlu0 %864
    %866 = vadd.xlane.f32.xlu0 %v835
    %v867 = vpop.xlane.xlu0 %866
    %868 = vadd.xlane.f32.xlu0 %v837
    %v869 = vpop.xlane.xlu0 %868
    %870 = vadd.xlane.f32.xlu0 %v839
    %v871 = vpop.xlane.xlu0 %870
    %872 = vadd.xlane.f32.xlu0 %v841
    %v873 = vpop.xlane.xlu0 %872
    %874 = vadd.xlane.f32.xlu0 %v843
    %v875 = vpop.xlane.xlu0 %874
    %876 = vadd.xlane.f32.xlu0 %v845
    %v877 = vpop.xlane.xlu0 %876
    %878 = vadd.xlane.f32.xlu0 %v847
    %v879 = vpop.xlane.xlu0 %878
    %v880 = vrcp.pop %v849
    %v881 = vrcp.pop %v851
    %v882 = vrcp.pop %v853
    %v883 = vrcp.pop %v855
    %v884 = vrcp.pop %v857
    %v885 = vrcp.pop %v859
    %v886 = vrcp.pop %v861
    %v887 = vrcp.pop %v863
    %v888 = vrcp.pop %v865
    %v889 = vrcp.pop %v867
    %v890 = vrcp.pop %v869
    %v891 = vrcp.pop %v871
    %v892 = vrcp.pop %v873
    %v893 = vrcp.pop %v875
    %v894 = vrcp.pop %v877
    %v895 = vrcp.pop %v879
    %v896 = vmul.f32 %v817, %v880
    %v897 = vmul.f32 %v819, %v881
    %v898 = vmul.f32 %v821, %v882
    %v899 = vmul.f32 %v823, %v883
    %v900 = vmul.f32 %v825, %v884
    %v901 = vmul.f32 %v827, %v885
    %v902 = vmul.f32 %v829, %v886
    %v903 = vmul.f32 %v831, %v887
    %v904 = vmul.f32 %v833, %v888
    %v905 = vmul.f32 %v835, %v889
    %v906 = vmul.f32 %v837, %v890
    %v907 = vmul.f32 %v839, %v891
    %v908 = vmul.f32 %v841, %v892
    %v909 = vmul.f32 %v843, %v893
    %v910 = vmul.f32 %v845, %v894
    %v911 = vmul.f32 %v847, %v895
    %912 = vmatprep.subr.mxu0 0.0
    %913 = vmatpush1.msra.mxu0 %v480
    %914 = vmatprep.subr.mxu0 0.0
    %915 = vmatpush1.msra.mxu0 %v485
    %916 = vmatprep.subr.mxu0 0.0
    %917 = vmatpush1.msra.mxu0 %v490
    %918 = vmatprep.subr.mxu0 0.0
    %919 = vmatpush1.msra.mxu0 %v495
    %920 = vmatprep.subr.mxu0 0.0
    %921 = vmatpush1.msra.mxu0 %v500
    %922 = vmatprep.subr.mxu0 0.0
    %923 = vmatpush1.msra.mxu0 %v505
    %924 = vmatprep.subr.mxu0 0.0
    %925 = vmatpush1.msra.mxu0 %v510
    %926 = vmatprep.subr.mxu0 0.0
    %927 = vmatpush1.msra.mxu0 %v515
    %928 = vmatprep.subr.mxu0 0.0
    %929 = vmatpush1.msra.mxu0 %v520
    %930 = vmatprep.subr.mxu0 0.0
    %931 = vmatpush1.msra.mxu0 %v525
    %932 = vmatprep.subr.mxu0 0.0
    %933 = vmatpush1.msra.mxu0 %v530
    %934 = vmatprep.subr.mxu0 0.0
    %935 = vmatpush1.msra.mxu0 %v535
    %936 = vmatprep.subr.mxu0 0.0
    %937 = vmatpush1.msra.mxu0 %v540
    %938 = vmatprep.subr.mxu0 0.0
    %939 = vmatpush1.msra.mxu0 %v545
    %940 = vmatprep.subr.mxu0 0.0
    %941 = vmatpush1.msra.mxu0 %v550
    %942 = vmatprep.subr.mxu0 0.0
    %943 = vmatpush1.msra.mxu0 %v555
    %944 = vmatprep.subr.mxu0 0.0
    %945 = vmatpush1.msra.mxu0 0.0
    %946 = vmatprep.subr.mxu0 0.0
    %947 = vmatpush1.msra.mxu0 0.0
    %948 = vmatprep.subr.mxu0 0.0
    %949 = vmatpush1.msra.mxu0 0.0
    %950 = vmatprep.subr.mxu0 0.0
    %951 = vmatpush1.msra.mxu0 0.0
    %952 = vmatprep.subr.mxu0 0.0
    %953 = vmatpush1.msra.mxu0 0.0
    %954 = vmatprep.subr.mxu0 0.0
    %955 = vmatpush1.msra.mxu0 0.0
    %956 = vmatprep.subr.mxu0 0.0
    %957 = vmatpush1.msra.mxu0 0.0
    %958 = vmatprep.subr.mxu0 0.0
    %959 = vmatpush1.msra.mxu0 0.0
    %960 = vmatprep.subr.mxu0 0.0
    %961 = vmatpush1.msra.mxu0 0.0
    %962 = vmatprep.subr.mxu0 0.0
    %963 = vmatpush1.msra.mxu0 0.0
    %964 = vmatprep.subr.mxu0 0.0
    %965 = vmatpush1.msra.mxu0 0.0
    %966 = vmatprep.subr.mxu0 0.0
    %967 = vmatpush1.msra.mxu0 0.0
    %968 = vmatprep.subr.mxu0 0.0
    %969 = vmatpush1.msra.mxu0 0.0
    %970 = vmatprep.subr.mxu0 0.0
    %971 = vmatpush1.msra.mxu0 0.0
    %972 = vmatprep.subr.mxu0 0.0
    %973 = vmatpush1.msra.mxu0 0.0
    %974 = vmatprep.subr.mxu0 0.0
    %975 = vmatpush1.msra.mxu0 0.0
    %976 = vmatprep.mubr.f32.mxu0 0.0
    %977 = vmatmul.mubr.f32.gmra.mrb[0].mxu0 %v896
    %v978 = vpop.f32.mrb[0].mxu0
    %v979 = vadd.f32 0.0, %v978
    %v980 = vpop.f32.mrb[0].mxu0
    %981 = vmatprep.mubr.f32.mxu0 0.0
    %982 = vmatmul.mubr.f32.gmra.mrb[0].mxu0 %v897
    %v983 = vpop.f32.mrb[0].mxu0
    %v984 = vadd.f32 0.0, %v983
    %v985 = vpop.f32.mrb[0].mxu0
    %986 = vmatprep.mubr.f32.mxu0 0.0
    %987 = vmatmul.mubr.f32.gmra.mrb[0].mxu0 %v898
    %v988 = vpop.f32.mrb[0].mxu0
    %v989 = vadd.f32 0.0, %v988
    %v990 = vpop.f32.mrb[0].mxu0
    %991 = vmatprep.mubr.f32.mxu0 0.0
    %992 = vmatmul.mubr.f32.gmra.mrb[0].mxu0 %v899
    %v993 = vpop.f32.mrb[0].mxu0
    %v994 = vadd.f32 0.0, %v993
    %v995 = vpop.f32.mrb[0].mxu0
    %996 = vmatprep.mubr.f32.mxu0 0.0
    %997 = vmatmul.mubr.f32.gmra.mrb[0].mxu0 %v900
    %v998 = vpop.f32.mrb[0].mxu0
    %v999 = vadd.f32 0.0, %v998
    %v1000 = vpop.f32.mrb[0].mxu0
    %1001 = vmatprep.mubr.f32.mxu0 0.0
    %1002 = vmatmul.mubr.f32.gmra.mrb[0].mxu0 %v901
    %v1003 = vpop.f32.mrb[0].mxu0
    %v1004 = vadd.f32 0.0, %v1003
    %v1005 = vpop.f32.mrb[0].mxu0
    %1006 = vmatprep.mubr.f32.mxu0 0.0
    %1007 = vmatmul.mubr.f32.gmra.mrb[0].mxu0 %v902
    %v1008 = vpop.f32.mrb[0].mxu0
    %v1009 = vadd.f32 0.0, %v1008
    %v1010 = vpop.f32.mrb[0].mxu0
    %1011 = vmatprep.mubr.f32.mxu0 0.0
    %1012 = vmatmul.mubr.f32.gmra.mrb[0].mxu0 %v903
    %v1013 = vpop.f32.mrb[0].mxu0
    %v1014 = vadd.f32 0.0, %v1013
    %v1015 = vpop.f32.mrb[0].mxu0
    %1016 = vmatprep.mubr.f32.mxu0 0.0
    %1017 = vmatmul.mubr.f32.gmra.mrb[0].mxu0 %v904
    %v1018 = vpop.f32.mrb[0].mxu0
    %v1019 = vadd.f32 0.0, %v1018
    %v1020 = vpop.f32.mrb[0].mxu0
    %1021 = vmatprep.mubr.f32.mxu0 0.0
    %1022 = vmatmul.mubr.f32.gmra.mrb[0].mxu0 %v905
    %v1023 = vpop.f32.mrb[0].mxu0
    %v1024 = vadd.f32 0.0, %v1023
    %v1025 = vpop.f32.mrb[0].mxu0
    %1026 = vmatprep.mubr.f32.mxu0 0.0
    %1027 = vmatmul.mubr.f32.gmra.mrb[0].mxu0 %v906
    %v1028 = vpop.f32.mrb[0].mxu0
    %v1029 = vadd.f32 0.0, %v1028
    %v1030 = vpop.f32.mrb[0].mxu0
    %1031 = vmatprep.mubr.f32.mxu0 0.0
    %1032 = vmatmul.mubr.f32.gmra.mrb[0].mxu0 %v907
    %v1033 = vpop.f32.mrb[0].mxu0
    %v1034 = vadd.f32 0.0, %v1033
    %v1035 = vpop.f32.mrb[0].mxu0
    %1036 = vmatprep.mubr.f32.mxu0 0.0
    %1037 = vmatmul.mubr.f32.gmra.mrb[0].mxu0 %v908
    %v1038 = vpop.f32.mrb[0].mxu0
    %v1039 = vadd.f32 0.0, %v1038
    %v1040 = vpop.f32.mrb[0].mxu0
    %1041 = vmatprep.mubr.f32.mxu0 0.0
    %1042 = vmatmul.mubr.f32.gmra.mrb[0].mxu0 %v909
    %v1043 = vpop.f32.mrb[0].mxu0
    %v1044 = vadd.f32 0.0, %v1043
    %v1045 = vpop.f32.mrb[0].mxu0
    %1046 = vmatprep.mubr.f32.mxu0 0.0
    %1047 = vmatmul.mubr.f32.gmra.mrb[0].mxu0 %v910
    %v1048 = vpop.f32.mrb[0].mxu0
    %v1049 = vadd.f32 0.0, %v1048
    %v1050 = vpop.f32.mrb[0].mxu0
    %1051 = vmatprep.mubr.f32.mxu0 0.0
    %1052 = vmatmul.mubr.f32.gmra.mrb[0].mxu0 %v911
    %v1053 = vpop.f32.mrb[0].mxu0
    %v1054 = vadd.f32 0.0, %v1053
    %v1055 = vpop.f32.mrb[0].mxu0
    %1056 = vdwg.mxu0
    %1057 = vst.msk [vmem:[#allocation2] sm:$0xff] %vm574, %v979
    %1058 = vst.msk [vmem:[#allocation2 + $0x8] sm:$0xff] %vm574, %v984
    %1059 = vst.msk [vmem:[#allocation2 + $0x10] sm:$0xff] %vm574, %v989
    %1060 = vst.msk [vmem:[#allocation2 + $0x18] sm:$0xff] %vm574, %v994
    %1061 = vst.msk [vmem:[#allocation2 + $0x20] sm:$0xff] %vm574, %v999
    %1062 = vst.msk [vmem:[#allocation2 + $0x28] sm:$0xff] %vm574, %v1004
    %1063 = vst.msk [vmem:[#allocation2 + $0x30] sm:$0xff] %vm574, %v1009
    %1064 = vst.msk [vmem:[#allocation2 + $0x38] sm:$0xff] %vm574, %v1014
    %1065 = vst.msk [vmem:[#allocation2 + $0x40] sm:$0xff] %vm574, %v1019
    %1066 = vst.msk [vmem:[#allocation2 + $0x48] sm:$0xff] %vm574, %v1024
    %1067 = vst.msk [vmem:[#allocation2 + $0x50] sm:$0xff] %vm574, %v1029
    %1068 = vst.msk [vmem:[#allocation2 + $0x58] sm:$0xff] %vm574, %v1034
    %1069 = vst.msk [vmem:[#allocation2 + $0x60] sm:$0xff] %vm574, %v1039
    %1070 = vst.msk [vmem:[#allocation2 + $0x68] sm:$0xff] %vm574, %v1044
    %1071 = vst.msk [vmem:[#allocation2 + $0x70] sm:$0xff] %vm574, %v1049
    %1072 = vst.msk [vmem:[#allocation2 + $0x78] sm:$0xff] %vm574, %v1054
    %s1073 = scalar_lea.vmem [#allocation3], 128
    %v1074 = vld [vmem:[%s1073] sm:$0xff]
    %v1075 = vld [vmem:[%s1073 + $0x8] sm:$0xff]
    %v1076 = vld [vmem:[%s1073 + $0x10] sm:$0xff]
    %v1077 = vld [vmem:[%s1073 + $0x18] sm:$0xff]
    %v1078 = vld [vmem:[%s1073 + $0x20] sm:$0xff]
    %v1079 = vld [vmem:[%s1073 + $0x28] sm:$0xff]
    %v1080 = vld [vmem:[%s1073 + $0x30] sm:$0xff]
    %v1081 = vld [vmem:[%s1073 + $0x38] sm:$0xff]
    %v1082 = vld [vmem:[%s1073 + $0x40] sm:$0xff]
    %v1083 = vld [vmem:[%s1073 + $0x48] sm:$0xff]
    %v1084 = vld [vmem:[%s1073 + $0x50] sm:$0xff]
    %v1085 = vld [vmem:[%s1073 + $0x58] sm:$0xff]
    %v1086 = vld [vmem:[%s1073 + $0x60] sm:$0xff]
    %v1087 = vld [vmem:[%s1073 + $0x68] sm:$0xff]
    %v1088 = vld [vmem:[%s1073 + $0x70] sm:$0xff]
    %v1089 = vld [vmem:[%s1073 + $0x78] sm:$0xff]
    %1090 = vrot.lane.b32.xlu0 %v195, 120
    %v1091 = vpop.permute.xlu0 %1090
    %1092 = vrot.lane.b32.xlu0 %v200, 120
    %v1093 = vpop.permute.xlu0 %1092
    %1094 = vrot.lane.b32.xlu0 %v205, 120
    %v1095 = vpop.permute.xlu0 %1094
    %1096 = vrot.lane.b32.xlu0 %v210, 120
    %v1097 = vpop.permute.xlu0 %1096
    %1098 = vrot.lane.b32.xlu0 %v215, 120
    %v1099 = vpop.permute.xlu0 %1098
    %1100 = vrot.lane.b32.xlu0 %v220, 120
    %v1101 = vpop.permute.xlu0 %1100
    %1102 = vrot.lane.b32.xlu0 %v225, 120
    %v1103 = vpop.permute.xlu0 %1102
    %1104 = vrot.lane.b32.xlu0 %v230, 120
    %v1105 = vpop.permute.xlu0 %1104
    %1106 = vrot.lane.b32.xlu0 %v235, 120
    %v1107 = vpop.permute.xlu0 %1106
    %1108 = vrot.lane.b32.xlu0 %v240, 120
    %v1109 = vpop.permute.xlu0 %1108
    %1110 = vrot.lane.b32.xlu0 %v245, 120
    %v1111 = vpop.permute.xlu0 %1110
    %1112 = vrot.lane.b32.xlu0 %v250, 120
    %v1113 = vpop.permute.xlu0 %1112
    %1114 = vrot.lane.b32.xlu0 %v255, 120
    %v1115 = vpop.permute.xlu0 %1114
    %1116 = vrot.lane.b32.xlu0 %v260, 120
    %v1117 = vpop.permute.xlu0 %1116
    %1118 = vrot.lane.b32.xlu0 %v265, 120
    %v1119 = vpop.permute.xlu0 %1118
    %1120 = vrot.lane.b32.xlu0 %v270, 120
    %v1121 = vpop.permute.xlu0 %1120
    %v1122 = vsel %vm574, %v1091, 0
    %v1124 = vsel %vm574, %v1093, 0
    %v1126 = vsel %vm574, %v1095, 0
    %v1128 = vsel %vm574, %v1097, 0
    %v1130 = vsel %vm574, %v1099, 0
    %v1132 = vsel %vm574, %v1101, 0
    %v1134 = vsel %vm574, %v1103, 0
    %v1136 = vsel %vm574, %v1105, 0
    %v1138 = vsel %vm574, %v1107, 0
    %v1140 = vsel %vm574, %v1109, 0
    %v1142 = vsel %vm574, %v1111, 0
    %v1144 = vsel %vm574, %v1113, 0
    %v1146 = vsel %vm574, %v1115, 0
    %v1148 = vsel %vm574, %v1117, 0
    %v1150 = vsel %vm574, %v1119, 0
    %v1152 = vsel %vm574, %v1121, 0
    %1154 = vmatprep.subr.mxu0 0.0
    %1155 = vmatpush1.msra.mxu0 %v389
    %1156 = vmatprep.subr.mxu0 0.0
    %1157 = vmatpush1.msra.mxu0 0.0
    %1158 = vmatprep.subr.mxu0 0.0
    %1159 = vmatpush1.msra.mxu0 0.0
    %1160 = vmatprep.subr.mxu0 0.0
    %1161 = vmatpush1.msra.mxu0 0.0
    %1162 = vmatprep.subr.mxu0 0.0
    %1163 = vmatpush1.msra.mxu0 0.0
    %1164 = vmatprep.subr.mxu0 0.0
    %1165 = vmatpush1.msra.mxu0 0.0
    %1166 = vmatprep.subr.mxu0 0.0
    %1167 = vmatpush1.msra.mxu0 0.0
    %1168 = vmatprep.subr.mxu0 0.0
    %1169 = vmatpush1.msra.mxu0 0.0
    %1170 = vmatprep.subr.mxu0 0.0
    %1171 = vmatpush1.msra.mxu0 0.0
    %1172 = vmatprep.subr.mxu0 0.0
    %1173 = vmatpush1.msra.mxu0 0.0
    %1174 = vmatprep.subr.mxu0 0.0
    %1175 = vmatpush1.msra.mxu0 0.0
    %1176 = vmatprep.subr.mxu0 0.0
    %1177 = vmatpush1.msra.mxu0 0.0
    %1178 = vmatprep.subr.mxu0 0.0
    %1179 = vmatpush1.msra.mxu0 0.0
    %1180 = vmatprep.subr.mxu0 0.0
    %1181 = vmatpush1.msra.mxu0 0.0
    %1182 = vmatprep.subr.mxu0 0.0
    %1183 = vmatpush1.msra.mxu0 0.0
    %1184 = vmatprep.subr.mxu0 0.0
    %1185 = vmatpush1.msra.mxu0 0.0
    %1186 = vmatprep.subr.mxu0 0.0
    %1187 = vmatpush1.msra.mxu0 0.0
    %1188 = vmatprep.subr.mxu0 0.0
    %1189 = vmatpush1.msra.mxu0 0.0
    %1190 = vmatprep.subr.mxu0 0.0
    %1191 = vmatpush1.msra.mxu0 0.0
    %1192 = vmatprep.subr.mxu0 0.0
    %1193 = vmatpush1.msra.mxu0 0.0
    %1194 = vmatprep.subr.mxu0 0.0
    %1195 = vmatpush1.msra.mxu0 0.0
    %1196 = vmatprep.subr.mxu0 0.0
    %1197 = vmatpush1.msra.mxu0 0.0
    %1198 = vmatprep.subr.mxu0 0.0
    %1199 = vmatpush1.msra.mxu0 0.0
    %1200 = vmatprep.subr.mxu0 0.0
    %1201 = vmatpush1.msra.mxu0 0.0
    %1202 = vmatprep.subr.mxu0 0.0
    %1203 = vmatpush1.msra.mxu0 0.0
    %1204 = vmatprep.subr.mxu0 0.0
    %1205 = vmatpush1.msra.mxu0 0.0
    %1206 = vmatprep.subr.mxu0 0.0
    %1207 = vmatpush1.msra.mxu0 0.0
    %1208 = vmatprep.subr.mxu0 0.0
    %1209 = vmatpush1.msra.mxu0 0.0
    %1210 = vmatprep.subr.mxu0 0.0
    %1211 = vmatpush1.msra.mxu0 0.0
    %1212 = vmatprep.subr.mxu0 0.0
    %1213 = vmatpush1.msra.mxu0 0.0
    %1214 = vmatprep.subr.mxu0 0.0
    %1215 = vmatpush1.msra.mxu0 0.0
    %1216 = vmatprep.subr.mxu0 0.0
    %1217 = vmatpush1.msra.mxu0 0.0
    %1218 = vmatprep.mubr.f32.mxu0 0.0
    %1219 = vmatmul.mubr.f32.gmra.mrb[0].mxu0 %v1122
    %v1220 = vpop.f32.mrb[0].mxu0
    %v1221 = vadd.f32 %v1074, %v1220
    %v1222 = vpop.f32.mrb[0].mxu0
    %1223 = vmatprep.mubr.f32.mxu0 0.0
    %1224 = vmatmul.mubr.f32.gmra.mrb[0].mxu0 %v1124
    %v1225 = vpop.f32.mrb[0].mxu0
    %v1226 = vadd.f32 %v1075, %v1225
    %v1227 = vpop.f32.mrb[0].mxu0
    %1228 = vmatprep.mubr.f32.mxu0 0.0
    %1229 = vmatmul.mubr.f32.gmra.mrb[0].mxu0 %v1126
    %v1230 = vpop.f32.mrb[0].mxu0
    %v1231 = vadd.f32 %v1076, %v1230
    %v1232 = vpop.f32.mrb[0].mxu0
    %1233 = vmatprep.mubr.f32.mxu0 0.0
    %1234 = vmatmul.mubr.f32.gmra.mrb[0].mxu0 %v1128
    %v1235 = vpop.f32.mrb[0].mxu0
    %v1236 = vadd.f32 %v1077, %v1235
    %v1237 = vpop.f32.mrb[0].mxu0
    %1238 = vmatprep.mubr.f32.mxu0 0.0
    %1239 = vmatmul.mubr.f32.gmra.mrb[0].mxu0 %v1130
    %v1240 = vpop.f32.mrb[0].mxu0
    %v1241 = vadd.f32 %v1078, %v1240
    %v1242 = vpop.f32.mrb[0].mxu0
    %1243 = vmatprep.mubr.f32.mxu0 0.0
    %1244 = vmatmul.mubr.f32.gmra.mrb[0].mxu0 %v1132
    %v1245 = vpop.f32.mrb[0].mxu0
    %v1246 = vadd.f32 %v1079, %v1245
    %v1247 = vpop.f32.mrb[0].mxu0
    %1248 = vmatprep.mubr.f32.mxu0 0.0
    %1249 = vmatmul.mubr.f32.gmra.mrb[0].mxu0 %v1134
    %v1250 = vpop.f32.mrb[0].mxu0
    %v1251 = vadd.f32 %v1080, %v1250
    %v1252 = vpop.f32.mrb[0].mxu0
    %1253 = vmatprep.mubr.f32.mxu0 0.0
    %1254 = vmatmul.mubr.f32.gmra.mrb[0].mxu0 %v1136
    %v1255 = vpop.f32.mrb[0].mxu0
    %v1256 = vadd.f32 %v1081, %v1255
    %v1257 = vpop.f32.mrb[0].mxu0
    %1258 = vmatprep.mubr.f32.mxu0 0.0
    %1259 = vmatmul.mubr.f32.gmra.mrb[0].mxu0 %v1138
    %v1260 = vpop.f32.mrb[0].mxu0
    %v1261 = vadd.f32 %v1082, %v1260
    %v1262 = vpop.f32.mrb[0].mxu0
    %1263 = vmatprep.mubr.f32.mxu0 0.0
    %1264 = vmatmul.mubr.f32.gmra.mrb[0].mxu0 %v1140
    %v1265 = vpop.f32.mrb[0].mxu0
    %v1266 = vadd.f32 %v1083, %v1265
    %v1267 = vpop.f32.mrb[0].mxu0
    %1268 = vmatprep.mubr.f32.mxu0 0.0
    %1269 = vmatmul.mubr.f32.gmra.mrb[0].mxu0 %v1142
    %v1270 = vpop.f32.mrb[0].mxu0
    %v1271 = vadd.f32 %v1084, %v1270
    %v1272 = vpop.f32.mrb[0].mxu0
    %1273 = vmatprep.mubr.f32.mxu0 0.0
    %1274 = vmatmul.mubr.f32.gmra.mrb[0].mxu0 %v1144
    %v1275 = vpop.f32.mrb[0].mxu0
    %v1276 = vadd.f32 %v1085, %v1275
    %v1277 = vpop.f32.mrb[0].mxu0
    %1278 = vmatprep.mubr.f32.mxu0 0.0
    %1279 = vmatmul.mubr.f32.gmra.mrb[0].mxu0 %v1146
    %v1280 = vpop.f32.mrb[0].mxu0
    %v1281 = vadd.f32 %v1086, %v1280
    %v1282 = vpop.f32.mrb[0].mxu0
    %1283 = vmatprep.mubr.f32.mxu0 0.0
    %1284 = vmatmul.mubr.f32.gmra.mrb[0].mxu0 %v1148
    %v1285 = vpop.f32.mrb[0].mxu0
    %v1286 = vadd.f32 %v1087, %v1285
    %v1287 = vpop.f32.mrb[0].mxu0
    %1288 = vmatprep.mubr.f32.mxu0 0.0
    %1289 = vmatmul.mubr.f32.gmra.mrb[0].mxu0 %v1150
    %v1290 = vpop.f32.mrb[0].mxu0
    %v1291 = vadd.f32 %v1088, %v1290
    %v1292 = vpop.f32.mrb[0].mxu0
    %1293 = vmatprep.mubr.f32.mxu0 0.0
    %1294 = vmatmul.mubr.f32.gmra.mrb[0].mxu0 %v1152
    %v1295 = vpop.f32.mrb[0].mxu0
    %v1296 = vadd.f32 %v1089, %v1295
    %v1297 = vpop.f32.mrb[0].mxu0
    %1298 = vdwg.mxu0
    %1299 = vmax.xlane.f32.xlu0 %v1221
    %v1300 = vpop.xlane.xlu0 %1299
    %1301 = vmax.xlane.f32.xlu0 %v1226
    %v1302 = vpop.xlane.xlu0 %1301
    %1303 = vmax.xlane.f32.xlu0 %v1231
    %v1304 = vpop.xlane.xlu0 %1303
    %1305 = vmax.xlane.f32.xlu0 %v1236
    %v1306 = vpop.xlane.xlu0 %1305
    %1307 = vmax.xlane.f32.xlu0 %v1241
    %v1308 = vpop.xlane.xlu0 %1307
    %1309 = vmax.xlane.f32.xlu0 %v1246
    %v1310 = vpop.xlane.xlu0 %1309
    %1311 = vmax.xlane.f32.xlu0 %v1251
    %v1312 = vpop.xlane.xlu0 %1311
    %1313 = vmax.xlane.f32.xlu0 %v1256
    %v1314 = vpop.xlane.xlu0 %1313
    %1315 = vmax.xlane.f32.xlu0 %v1261
    %v1316 = vpop.xlane.xlu0 %1315
    %1317 = vmax.xlane.f32.xlu0 %v1266
    %v1318 = vpop.xlane.xlu0 %1317
    %1319 = vmax.xlane.f32.xlu0 %v1271
    %v1320 = vpop.xlane.xlu0 %1319
    %1321 = vmax.xlane.f32.xlu0 %v1276
    %v1322 = vpop.xlane.xlu0 %1321
    %1323 = vmax.xlane.f32.xlu0 %v1281
    %v1324 = vpop.xlane.xlu0 %1323
    %1325 = vmax.xlane.f32.xlu0 %v1286
    %v1326 = vpop.xlane.xlu0 %1325
    %1327 = vmax.xlane.f32.xlu0 %v1291
    %v1328 = vpop.xlane.xlu0 %1327
    %1329 = vmax.xlane.f32.xlu0 %v1296
    %v1330 = vpop.xlane.xlu0 %1329
    %v1331 = vsub.f32 %v1221, %v1300
    %v1332 = vsub.f32 %v1226, %v1302
    %v1333 = vsub.f32 %v1231, %v1304
    %v1334 = vsub.f32 %v1236, %v1306
    %v1335 = vsub.f32 %v1241, %v1308
    %v1336 = vsub.f32 %v1246, %v1310
    %v1337 = vsub.f32 %v1251, %v1312
    %v1338 = vsub.f32 %v1256, %v1314
    %v1339 = vsub.f32 %v1261, %v1316
    %v1340 = vsub.f32 %v1266, %v1318
    %v1341 = vsub.f32 %v1271, %v1320
    %v1342 = vsub.f32 %v1276, %v1322
    %v1343 = vsub.f32 %v1281, %v1324
    %v1344 = vsub.f32 %v1286, %v1326
    %v1345 = vsub.f32 %v1291, %v1328
    %v1346 = vsub.f32 %v1296, %v1330
    %v1347 = vmul.f32 %v1331, 1.442695
    %v1348 = vpow.pop %v1347
    %v1349 = vmul.f32 %v1332, 1.442695
    %v1350 = vpow.pop %v1349
    %v1351 = vmul.f32 %v1333, 1.442695
    %v1352 = vpow.pop %v1351
    %v1353 = vmul.f32 %v1334, 1.442695
    %v1354 = vpow.pop %v1353
    %v1355 = vmul.f32 %v1335, 1.442695
    %v1356 = vpow.pop %v1355
    %v1357 = vmul.f32 %v1336, 1.442695
    %v1358 = vpow.pop %v1357
    %v1359 = vmul.f32 %v1337, 1.442695
    %v1360 = vpow.pop %v1359
    %v1361 = vmul.f32 %v1338, 1.442695
    %v1362 = vpow.pop %v1361
    %v1363 = vmul.f32 %v1339, 1.442695
    %v1364 = vpow.pop %v1363
    %v1365 = vmul.f32 %v1340, 1.442695
    %v1366 = vpow.pop %v1365
    %v1367 = vmul.f32 %v1341, 1.442695
    %v1368 = vpow.pop %v1367
    %v1369 = vmul.f32 %v1342, 1.442695
    %v1370 = vpow.pop %v1369
    %v1371 = vmul.f32 %v1343, 1.442695
    %v1372 = vpow.pop %v1371
    %v1373 = vmul.f32 %v1344, 1.442695
    %v1374 = vpow.pop %v1373
    %v1375 = vmul.f32 %v1345, 1.442695
    %v1376 = vpow.pop %v1375
    %v1377 = vmul.f32 %v1346, 1.442695
    %v1378 = vpow.pop %v1377
    %1379 = vadd.xlane.f32.xlu0 %v1348
    %v1380 = vpop.xlane.xlu0 %1379
    %1381 = vadd.xlane.f32.xlu0 %v1350
    %v1382 = vpop.xlane.xlu0 %1381
    %1383 = vadd.xlane.f32.xlu0 %v1352
    %v1384 = vpop.xlane.xlu0 %1383
    %1385 = vadd.xlane.f32.xlu0 %v1354
    %v1386 = vpop.xlane.xlu0 %1385
    %1387 = vadd.xlane.f32.xlu0 %v1356
    %v1388 = vpop.xlane.xlu0 %1387
    %1389 = vadd.xlane.f32.xlu0 %v1358
    %v1390 = vpop.xlane.xlu0 %1389
    %1391 = vadd.xlane.f32.xlu0 %v1360
    %v1392 = vpop.xlane.xlu0 %1391
    %1393 = vadd.xlane.f32.xlu0 %v1362
    %v1394 = vpop.xlane.xlu0 %1393
    %1395 = vadd.xlane.f32.xlu0 %v1364
    %v1396 = vpop.xlane.xlu0 %1395
    %1397 = vadd.xlane.f32.xlu0 %v1366
    %v1398 = vpop.xlane.xlu0 %1397
    %1399 = vadd.xlane.f32.xlu0 %v1368
    %v1400 = vpop.xlane.xlu0 %1399
    %1401 = vadd.xlane.f32.xlu0 %v1370
    %v1402 = vpop.xlane.xlu0 %1401
    %1403 = vadd.xlane.f32.xlu0 %v1372
    %v1404 = vpop.xlane.xlu0 %1403
    %1405 = vadd.xlane.f32.xlu0 %v1374
    %v1406 = vpop.xlane.xlu0 %1405
    %1407 = vadd.xlane.f32.xlu0 %v1376
    %v1408 = vpop.xlane.xlu0 %1407
    %1409 = vadd.xlane.f32.xlu0 %v1378
    %v1410 = vpop.xlane.xlu0 %1409
    %v1411 = vrcp.pop %v1380
    %v1412 = vrcp.pop %v1382
    %v1413 = vrcp.pop %v1384
    %v1414 = vrcp.pop %v1386
    %v1415 = vrcp.pop %v1388
    %v1416 = vrcp.pop %v1390
    %v1417 = vrcp.pop %v1392
    %v1418 = vrcp.pop %v1394
    %v1419 = vrcp.pop %v1396
    %v1420 = vrcp.pop %v1398
    %v1421 = vrcp.pop %v1400
    %v1422 = vrcp.pop %v1402
    %v1423 = vrcp.pop %v1404
    %v1424 = vrcp.pop %v1406
    %v1425 = vrcp.pop %v1408
    %v1426 = vrcp.pop %v1410
    %v1427 = vmul.f32 %v1348, %v1411
    %v1428 = vmul.f32 %v1350, %v1412
    %v1429 = vmul.f32 %v1352, %v1413
    %v1430 = vmul.f32 %v1354, %v1414
    %v1431 = vmul.f32 %v1356, %v1415
    %v1432 = vmul.f32 %v1358, %v1416
    %v1433 = vmul.f32 %v1360, %v1417
    %v1434 = vmul.f32 %v1362, %v1418
    %v1435 = vmul.f32 %v1364, %v1419
    %v1436 = vmul.f32 %v1366, %v1420
    %v1437 = vmul.f32 %v1368, %v1421
    %v1438 = vmul.f32 %v1370, %v1422
    %v1439 = vmul.f32 %v1372, %v1423
    %v1440 = vmul.f32 %v1374, %v1424
    %v1441 = vmul.f32 %v1376, %v1425
    %v1442 = vmul.f32 %v1378, %v1426
    %1459 = vrot.lane.b32.xlu0 %v480, 120
    %v1460 = vpop.permute.xlu0 %1459
    %1461 = vrot.lane.b32.xlu0 %v485, 120
    %v1462 = vpop.permute.xlu0 %1461
    %1463 = vrot.lane.b32.xlu0 %v490, 120
    %v1464 = vpop.permute.xlu0 %1463
    %1465 = vrot.lane.b32.xlu0 %v495, 120
    %v1466 = vpop.permute.xlu0 %1465
    %1467 = vrot.lane.b32.xlu0 %v500, 120
    %v1468 = vpop.permute.xlu0 %1467
    %1469 = vrot.lane.b32.xlu0 %v505, 120
    %v1470 = vpop.permute.xlu0 %1469
    %1471 = vrot.lane.b32.xlu0 %v510, 120
    %v1472 = vpop.permute.xlu0 %1471
    %1473 = vrot.lane.b32.xlu0 %v515, 120
    %v1474 = vpop.permute.xlu0 %1473
    %1475 = vrot.lane.b32.xlu0 %v520, 120
    %v1476 = vpop.permute.xlu0 %1475
    %1477 = vrot.lane.b32.xlu0 %v525, 120
    %v1478 = vpop.permute.xlu0 %1477
    %1479 = vrot.lane.b32.xlu0 %v530, 120
    %v1480 = vpop.permute.xlu0 %1479
    %1481 = vrot.lane.b32.xlu0 %v535, 120
    %v1482 = vpop.permute.xlu0 %1481
    %1483 = vrot.lane.b32.xlu0 %v540, 120
    %v1484 = vpop.permute.xlu0 %1483
    %1485 = vrot.lane.b32.xlu0 %v545, 120
    %v1486 = vpop.permute.xlu0 %1485
    %1487 = vrot.lane.b32.xlu0 %v550, 120
    %v1488 = vpop.permute.xlu0 %1487
    %1489 = vrot.lane.b32.xlu0 %v555, 120
    %v1490 = vpop.permute.xlu0 %1489
    %1507 = vmatprep.subr.mxu0 0.0
    %1508 = vmatpush1.msra.mxu0 %v1460
    %1509 = vmatprep.subr.mxu0 0.0
    %1510 = vmatpush1.msra.mxu0 %v1462
    %1511 = vmatprep.subr.mxu0 0.0
    %1512 = vmatpush1.msra.mxu0 %v1464
    %1513 = vmatprep.subr.mxu0 0.0
    %1514 = vmatpush1.msra.mxu0 %v1466
    %1515 = vmatprep.subr.mxu0 0.0
    %1516 = vmatpush1.msra.mxu0 %v1468
    %1517 = vmatprep.subr.mxu0 0.0
    %1518 = vmatpush1.msra.mxu0 %v1470
    %1519 = vmatprep.subr.mxu0 0.0
    %1520 = vmatpush1.msra.mxu0 %v1472
    %1521 = vmatprep.subr.mxu0 0.0
    %1522 = vmatpush1.msra.mxu0 %v1474
    %1523 = vmatprep.subr.mxu0 0.0
    %1524 = vmatpush1.msra.mxu0 %v1476
    %1525 = vmatprep.subr.mxu0 0.0
    %1526 = vmatpush1.msra.mxu0 %v1478
    %1527 = vmatprep.subr.mxu0 0.0
    %1528 = vmatpush1.msra.mxu0 %v1480
    %1529 = vmatprep.subr.mxu0 0.0
    %1530 = vmatpush1.msra.mxu0 %v1482
    %1531 = vmatprep.subr.mxu0 0.0
    %1532 = vmatpush1.msra.mxu0 %v1484
    %1533 = vmatprep.subr.mxu0 0.0
    %1534 = vmatpush1.msra.mxu0 %v1486
    %1535 = vmatprep.subr.mxu0 0.0
    %1536 = vmatpush1.msra.mxu0 %v1488
    %1537 = vmatprep.subr.mxu0 0.0
    %1538 = vmatpush1.msra.mxu0 %v1490
    %1539 = vmatprep.subr.mxu0 0.0
    %1540 = vmatpush1.msra.mxu0 0.0
    %1541 = vmatprep.subr.mxu0 0.0
    %1542 = vmatpush1.msra.mxu0 0.0
    %1543 = vmatprep.subr.mxu0 0.0
    %1544 = vmatpush1.msra.mxu0 0.0
    %1545 = vmatprep.subr.mxu0 0.0
    %1546 = vmatpush1.msra.mxu0 0.0
    %1547 = vmatprep.subr.mxu0 0.0
    %1548 = vmatpush1.msra.mxu0 0.0
    %1549 = vmatprep.subr.mxu0 0.0
    %1550 = vmatpush1.msra.mxu0 0.0
    %1551 = vmatprep.subr.mxu0 0.0
    %1552 = vmatpush1.msra.mxu0 0.0
    %1553 = vmatprep.subr.mxu0 0.0
    %1554 = vmatpush1.msra.mxu0 0.0
    %1555 = vmatprep.subr.mxu0 0.0
    %1556 = vmatpush1.msra.mxu0 0.0
    %1557 = vmatprep.subr.mxu0 0.0
    %1558 = vmatpush1.msra.mxu0 0.0
    %1559 = vmatprep.subr.mxu0 0.0
    %1560 = vmatpush1.msra.mxu0 0.0
    %1561 = vmatprep.subr.mxu0 0.0
    %1562 = vmatpush1.msra.mxu0 0.0
    %1563 = vmatprep.subr.mxu0 0.0
    %1564 = vmatpush1.msra.mxu0 0.0
    %1565 = vmatprep.subr.mxu0 0.0
    %1566 = vmatpush1.msra.mxu0 0.0
    %1567 = vmatprep.subr.mxu0 0.0
    %1568 = vmatpush1.msra.mxu0 0.0
    %1569 = vmatprep.subr.mxu0 0.0
    %1570 = vmatpush1.msra.mxu0 0.0
    %1571 = vmatprep.mubr.f32.mxu0 0.0
    %1572 = vmatmul.mubr.f32.gmra.mrb[0].mxu0 %v1427
    %v1573 = vpop.f32.mrb[0].mxu0
    %v1574 = vadd.f32 0.0, %v1573
    %v1575 = vpop.f32.mrb[0].mxu0
    %1576 = vmatprep.mubr.f32.mxu0 0.0
    %1577 = vmatmul.mubr.f32.gmra.mrb[0].mxu0 %v1428
    %v1578 = vpop.f32.mrb[0].mxu0
    %v1579 = vadd.f32 0.0, %v1578
    %v1580 = vpop.f32.mrb[0].mxu0
    %1581 = vmatprep.mubr.f32.mxu0 0.0
    %1582 = vmatmul.mubr.f32.gmra.mrb[0].mxu0 %v1429
    %v1583 = vpop.f32.mrb[0].mxu0
    %v1584 = vadd.f32 0.0, %v1583
    %v1585 = vpop.f32.mrb[0].mxu0
    %1586 = vmatprep.mubr.f32.mxu0 0.0
    %1587 = vmatmul.mubr.f32.gmra.mrb[0].mxu0 %v1430
    %v1588 = vpop.f32.mrb[0].mxu0
    %v1589 = vadd.f32 0.0, %v1588
    %v1590 = vpop.f32.mrb[0].mxu0
    %1591 = vmatprep.mubr.f32.mxu0 0.0
    %1592 = vmatmul.mubr.f32.gmra.mrb[0].mxu0 %v1431
    %v1593 = vpop.f32.mrb[0].mxu0
    %v1594 = vadd.f32 0.0, %v1593
    %v1595 = vpop.f32.mrb[0].mxu0
    %1596 = vmatprep.mubr.f32.mxu0 0.0
    %1597 = vmatmul.mubr.f32.gmra.mrb[0].mxu0 %v1432
    %v1598 = vpop.f32.mrb[0].mxu0
    %v1599 = vadd.f32 0.0, %v1598
    %v1600 = vpop.f32.mrb[0].mxu0
    %1601 = vmatprep.mubr.f32.mxu0 0.0
    %1602 = vmatmul.mubr.f32.gmra.mrb[0].mxu0 %v1433
    %v1603 = vpop.f32.mrb[0].mxu0
    %v1604 = vadd.f32 0.0, %v1603
    %v1605 = vpop.f32.mrb[0].mxu0
    %1606 = vmatprep.mubr.f32.mxu0 0.0
    %1607 = vmatmul.mubr.f32.gmra.mrb[0].mxu0 %v1434
    %v1608 = vpop.f32.mrb[0].mxu0
    %v1609 = vadd.f32 0.0, %v1608
    %v1610 = vpop.f32.mrb[0].mxu0
    %1611 = vmatprep.mubr.f32.mxu0 0.0
    %1612 = vmatmul.mubr.f32.gmra.mrb[0].mxu0 %v1435
    %v1613 = vpop.f32.mrb[0].mxu0
    %v1614 = vadd.f32 0.0, %v1613
    %v1615 = vpop.f32.mrb[0].mxu0
    %1616 = vmatprep.mubr.f32.mxu0 0.0
    %1617 = vmatmul.mubr.f32.gmra.mrb[0].mxu0 %v1436
    %v1618 = vpop.f32.mrb[0].mxu0
    %v1619 = vadd.f32 0.0, %v1618
    %v1620 = vpop.f32.mrb[0].mxu0
    %1621 = vmatprep.mubr.f32.mxu0 0.0
    %1622 = vmatmul.mubr.f32.gmra.mrb[0].mxu0 %v1437
    %v1623 = vpop.f32.mrb[0].mxu0
    %v1624 = vadd.f32 0.0, %v1623
    %v1625 = vpop.f32.mrb[0].mxu0
    %1626 = vmatprep.mubr.f32.mxu0 0.0
    %1627 = vmatmul.mubr.f32.gmra.mrb[0].mxu0 %v1438
    %v1628 = vpop.f32.mrb[0].mxu0
    %v1629 = vadd.f32 0.0, %v1628
    %v1630 = vpop.f32.mrb[0].mxu0
    %1631 = vmatprep.mubr.f32.mxu0 0.0
    %1632 = vmatmul.mubr.f32.gmra.mrb[0].mxu0 %v1439
    %v1633 = vpop.f32.mrb[0].mxu0
    %v1634 = vadd.f32 0.0, %v1633
    %v1635 = vpop.f32.mrb[0].mxu0
    %1636 = vmatprep.mubr.f32.mxu0 0.0
    %1637 = vmatmul.mubr.f32.gmra.mrb[0].mxu0 %v1440
    %v1638 = vpop.f32.mrb[0].mxu0
    %v1639 = vadd.f32 0.0, %v1638
    %v1640 = vpop.f32.mrb[0].mxu0
    %1641 = vmatprep.mubr.f32.mxu0 0.0
    %1642 = vmatmul.mubr.f32.gmra.mrb[0].mxu0 %v1441
    %v1643 = vpop.f32.mrb[0].mxu0
    %v1644 = vadd.f32 0.0, %v1643
    %v1645 = vpop.f32.mrb[0].mxu0
    %1646 = vmatprep.mubr.f32.mxu0 0.0
    %1647 = vmatmul.mubr.f32.gmra.mrb[0].mxu0 %v1442
    %v1648 = vpop.f32.mrb[0].mxu0
    %v1649 = vadd.f32 0.0, %v1648
    %v1650 = vpop.f32.mrb[0].mxu0
    %1651 = vdwg.mxu0
    %1668 = vrot.lane.b32.xlu0 %v1574, 8
    %v1669 = vpop.permute.xlu0 %1668
    %1670 = vrot.lane.b32.xlu0 %v1579, 8
    %v1671 = vpop.permute.xlu0 %1670
    %1672 = vrot.lane.b32.xlu0 %v1584, 8
    %v1673 = vpop.permute.xlu0 %1672
    %1674 = vrot.lane.b32.xlu0 %v1589, 8
    %v1675 = vpop.permute.xlu0 %1674
    %1676 = vrot.lane.b32.xlu0 %v1594, 8
    %v1677 = vpop.permute.xlu0 %1676
    %1678 = vrot.lane.b32.xlu0 %v1599, 8
    %v1679 = vpop.permute.xlu0 %1678
    %1680 = vrot.lane.b32.xlu0 %v1604, 8
    %v1681 = vpop.permute.xlu0 %1680
    %1682 = vrot.lane.b32.xlu0 %v1609, 8
    %v1683 = vpop.permute.xlu0 %1682
    %1684 = vrot.lane.b32.xlu0 %v1614, 8
    %v1685 = vpop.permute.xlu0 %1684
    %1686 = vrot.lane.b32.xlu0 %v1619, 8
    %v1687 = vpop.permute.xlu0 %1686
    %1688 = vrot.lane.b32.xlu0 %v1624, 8
    %v1689 = vpop.permute.xlu0 %1688
    %1690 = vrot.lane.b32.xlu0 %v1629, 8
    %v1691 = vpop.permute.xlu0 %1690
    %1692 = vrot.lane.b32.xlu0 %v1634, 8
    %v1693 = vpop.permute.xlu0 %1692
    %1694 = vrot.lane.b32.xlu0 %v1639, 8
    %v1695 = vpop.permute.xlu0 %1694
    %1696 = vrot.lane.b32.xlu0 %v1644, 8
    %v1697 = vpop.permute.xlu0 %1696
    %1698 = vrot.lane.b32.xlu0 %v1649, 8
    %v1699 = vpop.permute.xlu0 %1698
    %vm1716 = vcmask 130112
    %1717 = vst.msk [vmem:[#allocation2] sm:$0xff] %vm1716, %v1669
    %1718 = vst.msk [vmem:[#allocation2 + $0x8] sm:$0xff] %vm1716, %v1671
    %1719 = vst.msk [vmem:[#allocation2 + $0x10] sm:$0xff] %vm1716, %v1673
    %1720 = vst.msk [vmem:[#allocation2 + $0x18] sm:$0xff] %vm1716, %v1675
    %1721 = vst.msk [vmem:[#allocation2 + $0x20] sm:$0xff] %vm1716, %v1677
    %1722 = vst.msk [vmem:[#allocation2 + $0x28] sm:$0xff] %vm1716, %v1679
    %1723 = vst.msk [vmem:[#allocation2 + $0x30] sm:$0xff] %vm1716, %v1681
    %1724 = vst.msk [vmem:[#allocation2 + $0x38] sm:$0xff] %vm1716, %v1683
    %1725 = vst.msk [vmem:[#allocation2 + $0x40] sm:$0xff] %vm1716, %v1685
    %1726 = vst.msk [vmem:[#allocation2 + $0x48] sm:$0xff] %vm1716, %v1687
    %1727 = vst.msk [vmem:[#allocation2 + $0x50] sm:$0xff] %vm1716, %v1689
    %1728 = vst.msk [vmem:[#allocation2 + $0x58] sm:$0xff] %vm1716, %v1691
    %1729 = vst.msk [vmem:[#allocation2 + $0x60] sm:$0xff] %vm1716, %v1693
    %1730 = vst.msk [vmem:[#allocation2 + $0x68] sm:$0xff] %vm1716, %v1695
    %1731 = vst.msk [vmem:[#allocation2 + $0x70] sm:$0xff] %vm1716, %v1697
    %1732 = vst.msk [vmem:[#allocation2 + $0x78] sm:$0xff] %vm1716, %v1699
    %s1733 = scalar_lea.vmem [#allocation3], 256
    %v1734 = vld [vmem:[%s1733] sm:$0xff]
    %v1735 = vld [vmem:[%s1733 + $0x8] sm:$0xff]
    %v1736 = vld [vmem:[%s1733 + $0x10] sm:$0xff]
    %v1737 = vld [vmem:[%s1733 + $0x18] sm:$0xff]
    %v1738 = vld [vmem:[%s1733 + $0x20] sm:$0xff]
    %v1739 = vld [vmem:[%s1733 + $0x28] sm:$0xff]
    %v1740 = vld [vmem:[%s1733 + $0x30] sm:$0xff]
    %v1741 = vld [vmem:[%s1733 + $0x38] sm:$0xff]
    %v1742 = vld [vmem:[%s1733 + $0x40] sm:$0xff]
    %v1743 = vld [vmem:[%s1733 + $0x48] sm:$0xff]
    %v1744 = vld [vmem:[%s1733 + $0x50] sm:$0xff]
    %v1745 = vld [vmem:[%s1733 + $0x58] sm:$0xff]
    %v1746 = vld [vmem:[%s1733 + $0x60] sm:$0xff]
    %v1747 = vld [vmem:[%s1733 + $0x68] sm:$0xff]
    %v1748 = vld [vmem:[%s1733 + $0x70] sm:$0xff]
    %v1749 = vld [vmem:[%s1733 + $0x78] sm:$0xff]
    %1750 = vrot.lane.b32.xlu0 %v195, 112
    %v1751 = vpop.permute.xlu0 %1750
    %1752 = vrot.lane.b32.xlu0 %v200, 112
    %v1753 = vpop.permute.xlu0 %1752
    %1754 = vrot.lane.b32.xlu0 %v205, 112
    %v1755 = vpop.permute.xlu0 %1754
    %1756 = vrot.lane.b32.xlu0 %v210, 112
    %v1757 = vpop.permute.xlu0 %1756
    %1758 = vrot.lane.b32.xlu0 %v215, 112
    %v1759 = vpop.permute.xlu0 %1758
    %1760 = vrot.lane.b32.xlu0 %v220, 112
    %v1761 = vpop.permute.xlu0 %1760
    %1762 = vrot.lane.b32.xlu0 %v225, 112
    %v1763 = vpop.permute.xlu0 %1762
    %1764 = vrot.lane.b32.xlu0 %v230, 112
    %v1765 = vpop.permute.xlu0 %1764
    %1766 = vrot.lane.b32.xlu0 %v235, 112
    %v1767 = vpop.permute.xlu0 %1766
    %1768 = vrot.lane.b32.xlu0 %v240, 112
    %v1769 = vpop.permute.xlu0 %1768
    %1770 = vrot.lane.b32.xlu0 %v245, 112
    %v1771 = vpop.permute.xlu0 %1770
    %1772 = vrot.lane.b32.xlu0 %v250, 112
    %v1773 = vpop.permute.xlu0 %1772
    %1774 = vrot.lane.b32.xlu0 %v255, 112
    %v1775 = vpop.permute.xlu0 %1774
    %1776 = vrot.lane.b32.xlu0 %v260, 112
    %v1777 = vpop.permute.xlu0 %1776
    %1778 = vrot.lane.b32.xlu0 %v265, 112
    %v1779 = vpop.permute.xlu0 %1778
    %1780 = vrot.lane.b32.xlu0 %v270, 112
    %v1781 = vpop.permute.xlu0 %1780
    %v1782 = vsel %vm574, %v1751, 0
    %v1784 = vsel %vm574, %v1753, 0
    %v1786 = vsel %vm574, %v1755, 0
    %v1788 = vsel %vm574, %v1757, 0
    %v1790 = vsel %vm574, %v1759, 0
    %v1792 = vsel %vm574, %v1761, 0
    %v1794 = vsel %vm574, %v1763, 0
    %v1796 = vsel %vm574, %v1765, 0
    %v1798 = vsel %vm574, %v1767, 0
    %v1800 = vsel %vm574, %v1769, 0
    %v1802 = vsel %vm574, %v1771, 0
    %v1804 = vsel %vm574, %v1773, 0
    %v1806 = vsel %vm574, %v1775, 0
    %v1808 = vsel %vm574, %v1777, 0
    %v1810 = vsel %vm574, %v1779, 0
    %v1812 = vsel %vm574, %v1781, 0
    %1814 = vmatprep.subr.mxu0 0.0
    %1815 = vmatpush1.msra.mxu0 %v394
    %1816 = vmatprep.subr.mxu0 0.0
    %1817 = vmatpush1.msra.mxu0 0.0
    %1818 = vmatprep.subr.mxu0 0.0
    %1819 = vmatpush1.msra.mxu0 0.0
    %1820 = vmatprep.subr.mxu0 0.0
    %1821 = vmatpush1.msra.mxu0 0.0
    %1822 = vmatprep.subr.mxu0 0.0
    %1823 = vmatpush1.msra.mxu0 0.0
    %1824 = vmatprep.subr.mxu0 0.0
    %1825 = vmatpush1.msra.mxu0 0.0
    %1826 = vmatprep.subr.mxu0 0.0
    %1827 = vmatpush1.msra.mxu0 0.0
    %1828 = vmatprep.subr.mxu0 0.0
    %1829 = vmatpush1.msra.mxu0 0.0
    %1830 = vmatprep.subr.mxu0 0.0
    %1831 = vmatpush1.msra.mxu0 0.0
    %1832 = vmatprep.subr.mxu0 0.0
    %1833 = vmatpush1.msra.mxu0 0.0
    %1834 = vmatprep.subr.mxu0 0.0
    %1835 = vmatpush1.msra.mxu0 0.0
    %1836 = vmatprep.subr.mxu0 0.0
    %1837 = vmatpush1.msra.mxu0 0.0
    %1838 = vmatprep.subr.mxu0 0.0
    %1839 = vmatpush1.msra.mxu0 0.0
    %1840 = vmatprep.subr.mxu0 0.0
    %1841 = vmatpush1.msra.mxu0 0.0
    %1842 = vmatprep.subr.mxu0 0.0
    %1843 = vmatpush1.msra.mxu0 0.0
    %1844 = vmatprep.subr.mxu0 0.0
    %1845 = vmatpush1.msra.mxu0 0.0
    %1846 = vmatprep.subr.mxu0 0.0
    %1847 = vmatpush1.msra.mxu0 0.0
    %1848 = vmatprep.subr.mxu0 0.0
    %1849 = vmatpush1.msra.mxu0 0.0
    %1850 = vmatprep.subr.mxu0 0.0
    %1851 = vmatpush1.msra.mxu0 0.0
    %1852 = vmatprep.subr.mxu0 0.0
    %1853 = vmatpush1.msra.mxu0 0.0
    %1854 = vmatprep.subr.mxu0 0.0
    %1855 = vmatpush1.msra.mxu0 0.0
    %1856 = vmatprep.subr.mxu0 0.0
    %1857 = vmatpush1.msra.mxu0 0.0
    %1858 = vmatprep.subr.mxu0 0.0
    %1859 = vmatpush1.msra.mxu0 0.0
    %1860 = vmatprep.subr.mxu0 0.0
    %1861 = vmatpush1.msra.mxu0 0.0
    %1862 = vmatprep.subr.mxu0 0.0
    %1863 = vmatpush1.msra.mxu0 0.0
    %1864 = vmatprep.subr.mxu0 0.0
    %1865 = vmatpush1.msra.mxu0 0.0
    %1866 = vmatprep.subr.mxu0 0.0
    %1867 = vmatpush1.msra.mxu0 0.0
    %1868 = vmatprep.subr.mxu0 0.0
    %1869 = vmatpush1.msra.mxu0 0.0
    %1870 = vmatprep.subr.mxu0 0.0
    %1871 = vmatpush1.msra.mxu0 0.0
    %1872 = vmatprep.subr.mxu0 0.0
    %1873 = vmatpush1.msra.mxu0 0.0
    %1874 = vmatprep.subr.mxu0 0.0
    %1875 = vmatpush1.msra.mxu0 0.0
    %1876 = vmatprep.subr.mxu0 0.0
    %1877 = vmatpush1.msra.mxu0 0.0
    %1878 = vmatprep.mubr.f32.mxu0 0.0
    %1879 = vmatmul.mubr.f32.gmra.mrb[0].mxu0 %v1782
    %v1880 = vpop.f32.mrb[0].mxu0
    %v1881 = vadd.f32 %v1734, %v1880
    %v1882 = vpop.f32.mrb[0].mxu0
    %1883 = vmatprep.mubr.f32.mxu0 0.0
    %1884 = vmatmul.mubr.f32.gmra.mrb[0].mxu0 %v1784
    %v1885 = vpop.f32.mrb[0].mxu0
    %v1886 = vadd.f32 %v1735, %v1885
    %v1887 = vpop.f32.mrb[0].mxu0
    %1888 = vmatprep.mubr.f32.mxu0 0.0
    %1889 = vmatmul.mubr.f32.gmra.mrb[0].mxu0 %v1786
    %v1890 = vpop.f32.mrb[0].mxu0
    %v1891 = vadd.f32 %v1736, %v1890
    %v1892 = vpop.f32.mrb[0].mxu0
    %1893 = vmatprep.mubr.f32.mxu0 0.0
    %1894 = vmatmul.mubr.f32.gmra.mrb[0].mxu0 %v1788
    %v1895 = vpop.f32.mrb[0].mxu0
    %v1896 = vadd.f32 %v1737, %v1895
    %v1897 = vpop.f32.mrb[0].mxu0
    %1898 = vmatprep.mubr.f32.mxu0 0.0
    %1899 = vmatmul.mubr.f32.gmra.mrb[0].mxu0 %v1790
    %v1900 = vpop.f32.mrb[0].mxu0
    %v1901 = vadd.f32 %v1738, %v1900
    %v1902 = vpop.f32.mrb[0].mxu0
    %1903 = vmatprep.mubr.f32.mxu0 0.0
    %1904 = vmatmul.mubr.f32.gmra.mrb[0].mxu0 %v1792
    %v1905 = vpop.f32.mrb[0].mxu0
    %v1906 = vadd.f32 %v1739, %v1905
    %v1907 = vpop.f32.mrb[0].mxu0
    %1908 = vmatprep.mubr.f32.mxu0 0.0
    %1909 = vmatmul.mubr.f32.gmra.mrb[0].mxu0 %v1794
    %v1910 = vpop.f32.mrb[0].mxu0
    %v1911 = vadd.f32 %v1740, %v1910
    %v1912 = vpop.f32.mrb[0].mxu0
    %1913 = vmatprep.mubr.f32.mxu0 0.0
    %1914 = vmatmul.mubr.f32.gmra.mrb[0].mxu0 %v1796
    %v1915 = vpop.f32.mrb[0].mxu0
    %v1916 = vadd.f32 %v1741, %v1915
    %v1917 = vpop.f32.mrb[0].mxu0
    %1918 = vmatprep.mubr.f32.mxu0 0.0
    %1919 = vmatmul.mubr.f32.gmra.mrb[0].mxu0 %v1798
    %v1920 = vpop.f32.mrb[0].mxu0
    %v1921 = vadd.f32 %v1742, %v1920
    %v1922 = vpop.f32.mrb[0].mxu0
    %1923 = vmatprep.mubr.f32.mxu0 0.0
    %1924 = vmatmul.mubr.f32.gmra.mrb[0].mxu0 %v1800
    %v1925 = vpop.f32.mrb[0].mxu0
    %v1926 = vadd.f32 %v1743, %v1925
    %v1927 = vpop.f32.mrb[0].mxu0
    %1928 = vmatprep.mubr.f32.mxu0 0.0
    %1929 = vmatmul.mubr.f32.gmra.mrb[0].mxu0 %v1802
    %v1930 = vpop.f32.mrb[0].mxu0
    %v1931 = vadd.f32 %v1744, %v1930
    %v1932 = vpop.f32.mrb[0].mxu0
    %1933 = vmatprep.mubr.f32.mxu0 0.0
    %1934 = vmatmul.mubr.f32.gmra.mrb[0].mxu0 %v1804
    %v1935 = vpop.f32.mrb[0].mxu0
    %v1936 = vadd.f32 %v1745, %v1935
    %v1937 = vpop.f32.mrb[0].mxu0
    %1938 = vmatprep.mubr.f32.mxu0 0.0
    %1939 = vmatmul.mubr.f32.gmra.mrb[0].mxu0 %v1806
    %v1940 = vpop.f32.mrb[0].mxu0
    %v1941 = vadd.f32 %v1746, %v1940
    %v1942 = vpop.f32.mrb[0].mxu0
    %1943 = vmatprep.mubr.f32.mxu0 0.0
    %1944 = vmatmul.mubr.f32.gmra.mrb[0].mxu0 %v1808
    %v1945 = vpop.f32.mrb[0].mxu0
    %v1946 = vadd.f32 %v1747, %v1945
    %v1947 = vpop.f32.mrb[0].mxu0
    %1948 = vmatprep.mubr.f32.mxu0 0.0
    %1949 = vmatmul.mubr.f32.gmra.mrb[0].mxu0 %v1810
    %v1950 = vpop.f32.mrb[0].mxu0
    %v1951 = vadd.f32 %v1748, %v1950
    %v1952 = vpop.f32.mrb[0].mxu0
    %1953 = vmatprep.mubr.f32.mxu0 0.0
    %1954 = vmatmul.mubr.f32.gmra.mrb[0].mxu0 %v1812
    %v1955 = vpop.f32.mrb[0].mxu0
    %v1956 = vadd.f32 %v1749, %v1955
    %v1957 = vpop.f32.mrb[0].mxu0
    %1958 = vdwg.mxu0
    %1959 = vmax.xlane.f32.xlu0 %v1881
    %v1960 = vpop.xlane.xlu0 %1959
    %1961 = vmax.xlane.f32.xlu0 %v1886
    %v1962 = vpop.xlane.xlu0 %1961
    %1963 = vmax.xlane.f32.xlu0 %v1891
    %v1964 = vpop.xlane.xlu0 %1963
    %1965 = vmax.xlane.f32.xlu0 %v1896
    %v1966 = vpop.xlane.xlu0 %1965
    %1967 = vmax.xlane.f32.xlu0 %v1901
    %v1968 = vpop.xlane.xlu0 %1967
    %1969 = vmax.xlane.f32.xlu0 %v1906
    %v1970 = vpop.xlane.xlu0 %1969
    %1971 = vmax.xlane.f32.xlu0 %v1911
    %v1972 = vpop.xlane.xlu0 %1971
    %1973 = vmax.xlane.f32.xlu0 %v1916
    %v1974 = vpop.xlane.xlu0 %1973
    %1975 = vmax.xlane.f32.xlu0 %v1921
    %v1976 = vpop.xlane.xlu0 %1975
    %1977 = vmax.xlane.f32.xlu0 %v1926
    %v1978 = vpop.xlane.xlu0 %1977
    %1979 = vmax.xlane.f32.xlu0 %v1931
    %v1980 = vpop.xlane.xlu0 %1979
    %1981 = vmax.xlane.f32.xlu0 %v1936
    %v1982 = vpop.xlane.xlu0 %1981
    %1983 = vmax.xlane.f32.xlu0 %v1941
    %v1984 = vpop.xlane.xlu0 %1983
    %1985 = vmax.xlane.f32.xlu0 %v1946
    %v1986 = vpop.xlane.xlu0 %1985
    %1987 = vmax.xlane.f32.xlu0 %v1951
    %v1988 = vpop.xlane.xlu0 %1987
    %1989 = vmax.xlane.f32.xlu0 %v1956
    %v1990 = vpop.xlane.xlu0 %1989
    %v1991 = vsub.f32 %v1881, %v1960
    %v1992 = vsub.f32 %v1886, %v1962
    %v1993 = vsub.f32 %v1891, %v1964
    %v1994 = vsub.f32 %v1896, %v1966
    %v1995 = vsub.f32 %v1901, %v1968
    %v1996 = vsub.f32 %v1906, %v1970
    %v1997 = vsub.f32 %v1911, %v1972
    %v1998 = vsub.f32 %v1916, %v1974
    %v1999 = vsub.f32 %v1921, %v1976
    %v2000 = vsub.f32 %v1926, %v1978
    %v2001 = vsub.f32 %v1931, %v1980
    %v2002 = vsub.f32 %v1936, %v1982
    %v2003 = vsub.f32 %v1941, %v1984
    %v2004 = vsub.f32 %v1946, %v1986
    %v2005 = vsub.f32 %v1951, %v1988
    %v2006 = vsub.f32 %v1956, %v1990
    %v2007 = vmul.f32 %v1991, 1.442695
    %v2008 = vpow.pop %v2007
    %v2009 = vmul.f32 %v1992, 1.442695
    %v2010 = vpow.pop %v2009
    %v2011 = vmul.f32 %v1993, 1.442695
    %v2012 = vpow.pop %v2011
    %v2013 = vmul.f32 %v1994, 1.442695
    %v2014 = vpow.pop %v2013
    %v2015 = vmul.f32 %v1995, 1.442695
    %v2016 = vpow.pop %v2015
    %v2017 = vmul.f32 %v1996, 1.442695
    %v2018 = vpow.pop %v2017
    %v2019 = vmul.f32 %v1997, 1.442695
    %v2020 = vpow.pop %v2019
    %v2021 = vmul.f32 %v1998, 1.442695
    %v2022 = vpow.pop %v2021
    %v2023 = vmul.f32 %v1999, 1.442695
    %v2024 = vpow.pop %v2023
    %v2025 = vmul.f32 %v2000, 1.442695
    %v2026 = vpow.pop %v2025
    %v2027 = vmul.f32 %v2001, 1.442695
    %v2028 = vpow.pop %v2027
    %v2029 = vmul.f32 %v2002, 1.442695
    %v2030 = vpow.pop %v2029
    %v2031 = vmul.f32 %v2003, 1.442695
    %v2032 = vpow.pop %v2031
    %v2033 = vmul.f32 %v2004, 1.442695
    %v2034 = vpow.pop %v2033
    %v2035 = vmul.f32 %v2005, 1.442695
    %v2036 = vpow.pop %v2035
    %v2037 = vmul.f32 %v2006, 1.442695
    %v2038 = vpow.pop %v2037
    %2039 = vadd.xlane.f32.xlu0 %v2008
    %v2040 = vpop.xlane.xlu0 %2039
    %2041 = vadd.xlane.f32.xlu0 %v2010
    %v2042 = vpop.xlane.xlu0 %2041
    %2043 = vadd.xlane.f32.xlu0 %v2012
    %v2044 = vpop.xlane.xlu0 %2043
    %2045 = vadd.xlane.f32.xlu0 %v2014
    %v2046 = vpop.xlane.xlu0 %2045
    %2047 = vadd.xlane.f32.xlu0 %v2016
    %v2048 = vpop.xlane.xlu0 %2047
    %2049 = vadd.xlane.f32.xlu0 %v2018
    %v2050 = vpop.xlane.xlu0 %2049
    %2051 = vadd.xlane.f32.xlu0 %v2020
    %v2052 = vpop.xlane.xlu0 %2051
    %2053 = vadd.xlane.f32.xlu0 %v2022
    %v2054 = vpop.xlane.xlu0 %2053
    %2055 = vadd.xlane.f32.xlu0 %v2024
    %v2056 = vpop.xlane.xlu0 %2055
    %2057 = vadd.xlane.f32.xlu0 %v2026
    %v2058 = vpop.xlane.xlu0 %2057
    %2059 = vadd.xlane.f32.xlu0 %v2028
    %v2060 = vpop.xlane.xlu0 %2059
    %2061 = vadd.xlane.f32.xlu0 %v2030
    %v2062 = vpop.xlane.xlu0 %2061
    %2063 = vadd.xlane.f32.xlu0 %v2032
    %v2064 = vpop.xlane.xlu0 %2063
    %2065 = vadd.xlane.f32.xlu0 %v2034
    %v2066 = vpop.xlane.xlu0 %2065
    %2067 = vadd.xlane.f32.xlu0 %v2036
    %v2068 = vpop.xlane.xlu0 %2067
    %2069 = vadd.xlane.f32.xlu0 %v2038
    %v2070 = vpop.xlane.xlu0 %2069
    %v2071 = vrcp.pop %v2040
    %v2072 = vrcp.pop %v2042
    %v2073 = vrcp.pop %v2044
    %v2074 = vrcp.pop %v2046
    %v2075 = vrcp.pop %v2048
    %v2076 = vrcp.pop %v2050
    %v2077 = vrcp.pop %v2052
    %v2078 = vrcp.pop %v2054
    %v2079 = vrcp.pop %v2056
    %v2080 = vrcp.pop %v2058
    %v2081 = vrcp.pop %v2060
    %v2082 = vrcp.pop %v2062
    %v2083 = vrcp.pop %v2064
    %v2084 = vrcp.pop %v2066
    %v2085 = vrcp.pop %v2068
    %v2086 = vrcp.pop %v2070
    %v2087 = vmul.f32 %v2008, %v2071
    %v2088 = vmul.f32 %v2010, %v2072
    %v2089 = vmul.f32 %v2012, %v2073
    %v2090 = vmul.f32 %v2014, %v2074
    %v2091 = vmul.f32 %v2016, %v2075
    %v2092 = vmul.f32 %v2018, %v2076
    %v2093 = vmul.f32 %v2020, %v2077
    %v2094 = vmul.f32 %v2022, %v2078
    %v2095 = vmul.f32 %v2024, %v2079
    %v2096 = vmul.f32 %v2026, %v2080
    %v2097 = vmul.f32 %v2028, %v2081
    %v2098 = vmul.f32 %v2030, %v2082
    %v2099 = vmul.f32 %v2032, %v2083
    %v2100 = vmul.f32 %v2034, %v2084
    %v2101 = vmul.f32 %v2036, %v2085
    %v2102 = vmul.f32 %v2038, %v2086
    %2103 = vrot.lane.b32.xlu0 %v480, 112
    %v2104 = vpop.permute.xlu0 %2103
    %2105 = vrot.lane.b32.xlu0 %v485, 112
    %v2106 = vpop.permute.xlu0 %2105
    %2107 = vrot.lane.b32.xlu0 %v490, 112
    %v2108 = vpop.permute.xlu0 %2107
    %2109 = vrot.lane.b32.xlu0 %v495, 112
    %v2110 = vpop.permute.xlu0 %2109
    %2111 = vrot.lane.b32.xlu0 %v500, 112
    %v2112 = vpop.permute.xlu0 %2111
    %2113 = vrot.lane.b32.xlu0 %v505, 112
    %v2114 = vpop.permute.xlu0 %2113
    %2115 = vrot.lane.b32.xlu0 %v510, 112
    %v2116 = vpop.permute.xlu0 %2115
    %2117 = vrot.lane.b32.xlu0 %v515, 112
    %v2118 = vpop.permute.xlu0 %2117
    %2119 = vrot.lane.b32.xlu0 %v520, 112
    %v2120 = vpop.permute.xlu0 %2119
    %2121 = vrot.lane.b32.xlu0 %v525, 112
    %v2122 = vpop.permute.xlu0 %2121
    %2123 = vrot.lane.b32.xlu0 %v530, 112
    %v2124 = vpop.permute.xlu0 %2123
    %2125 = vrot.lane.b32.xlu0 %v535, 112
    %v2126 = vpop.permute.xlu0 %2125
    %2127 = vrot.lane.b32.xlu0 %v540, 112
    %v2128 = vpop.permute.xlu0 %2127
    %2129 = vrot.lane.b32.xlu0 %v545, 112
    %v2130 = vpop.permute.xlu0 %2129
    %2131 = vrot.lane.b32.xlu0 %v550, 112
    %v2132 = vpop.permute.xlu0 %2131
    %2133 = vrot.lane.b32.xlu0 %v555, 112
    %v2134 = vpop.permute.xlu0 %2133
    %2151 = vmatprep.subr.mxu0 0.0
    %2152 = vmatpush1.msra.mxu0 %v2104
    %2153 = vmatprep.subr.mxu0 0.0
    %2154 = vmatpush1.msra.mxu0 %v2106
    %2155 = vmatprep.subr.mxu0 0.0
    %2156 = vmatpush1.msra.mxu0 %v2108
    %2157 = vmatprep.subr.mxu0 0.0
    %2158 = vmatpush1.msra.mxu0 %v2110
    %2159 = vmatprep.subr.mxu0 0.0
    %2160 = vmatpush1.msra.mxu0 %v2112
    %2161 = vmatprep.subr.mxu0 0.0
    %2162 = vmatpush1.msra.mxu0 %v2114
    %2163 = vmatprep.subr.mxu0 0.0
    %2164 = vmatpush1.msra.mxu0 %v2116
    %2165 = vmatprep.subr.mxu0 0.0
    %2166 = vmatpush1.msra.mxu0 %v2118
    %2167 = vmatprep.subr.mxu0 0.0
    %2168 = vmatpush1.msra.mxu0 %v2120
    %2169 = vmatprep.subr.mxu0 0.0
    %2170 = vmatpush1.msra.mxu0 %v2122
    %2171 = vmatprep.subr.mxu0 0.0
    %2172 = vmatpush1.msra.mxu0 %v2124
    %2173 = vmatprep.subr.mxu0 0.0
    %2174 = vmatpush1.msra.mxu0 %v2126
    %2175 = vmatprep.subr.mxu0 0.0
    %2176 = vmatpush1.msra.mxu0 %v2128
    %2177 = vmatprep.subr.mxu0 0.0
    %2178 = vmatpush1.msra.mxu0 %v2130
    %2179 = vmatprep.subr.mxu0 0.0
    %2180 = vmatpush1.msra.mxu0 %v2132
    %2181 = vmatprep.subr.mxu0 0.0
    %2182 = vmatpush1.msra.mxu0 %v2134
    %2183 = vmatprep.subr.mxu0 0.0
    %2184 = vmatpush1.msra.mxu0 0.0
    %2185 = vmatprep.subr.mxu0 0.0
    %2186 = vmatpush1.msra.mxu0 0.0
    %2187 = vmatprep.subr.mxu0 0.0
    %2188 = vmatpush1.msra.mxu0 0.0
    %2189 = vmatprep.subr.mxu0 0.0
    %2190 = vmatpush1.msra.mxu0 0.0
    %2191 = vmatprep.subr.mxu0 0.0
    %2192 = vmatpush1.msra.mxu0 0.0
    %2193 = vmatprep.subr.mxu0 0.0
    %2194 = vmatpush1.msra.mxu0 0.0
    %2195 = vmatprep.subr.mxu0 0.0
    %2196 = vmatpush1.msra.mxu0 0.0
    %2197 = vmatprep.subr.mxu0 0.0
    %2198 = vmatpush1.msra.mxu0 0.0
    %2199 = vmatprep.subr.mxu0 0.0
    %2200 = vmatpush1.msra.mxu0 0.0
    %2201 = vmatprep.subr.mxu0 0.0
    %2202 = vmatpush1.msra.mxu0 0.0
    %2203 = vmatprep.subr.mxu0 0.0
    %2204 = vmatpush1.msra.mxu0 0.0
    %2205 = vmatprep.subr.mxu0 0.0
    %2206 = vmatpush1.msra.mxu0 0.0
    %2207 = vmatprep.subr.mxu0 0.0
    %2208 = vmatpush1.msra.mxu0 0.0
    %2209 = vmatprep.subr.mxu0 0.0
    %2210 = vmatpush1.msra.mxu0 0.0
    %2211 = vmatprep.subr.mxu0 0.0
    %2212 = vmatpush1.msra.mxu0 0.0
    %2213 = vmatprep.subr.mxu0 0.0
    %2214 = vmatpush1.msra.mxu0 0.0
    %2215 = vmatprep.mubr.f32.mxu0 0.0
    %2216 = vmatmul.mubr.f32.gmra.mrb[0].mxu0 %v2087
    %v2217 = vpop.f32.mrb[0].mxu0
    %v2218 = vadd.f32 0.0, %v2217
    %v2219 = vpop.f32.mrb[0].mxu0
    %2220 = vmatprep.mubr.f32.mxu0 0.0
    %2221 = vmatmul.mubr.f32.gmra.mrb[0].mxu0 %v2088
    %v2222 = vpop.f32.mrb[0].mxu0
    %v2223 = vadd.f32 0.0, %v2222
    %v2224 = vpop.f32.mrb[0].mxu0
    %2225 = vmatprep.mubr.f32.mxu0 0.0
    %2226 = vmatmul.mubr.f32.gmra.mrb[0].mxu0 %v2089
    %v2227 = vpop.f32.mrb[0].mxu0
    %v2228 = vadd.f32 0.0, %v2227
    %v2229 = vpop.f32.mrb[0].mxu0
    %2230 = vmatprep.mubr.f32.mxu0 0.0
    %2231 = vmatmul.mubr.f32.gmra.mrb[0].mxu0 %v2090
    %v2232 = vpop.f32.mrb[0].mxu0
    %v2233 = vadd.f32 0.0, %v2232
    %v2234 = vpop.f32.mrb[0].mxu0
    %2235 = vmatprep.mubr.f32.mxu0 0.0
    %2236 = vmatmul.mubr.f32.gmra.mrb[0].mxu0 %v2091
    %v2237 = vpop.f32.mrb[0].mxu0
    %v2238 = vadd.f32 0.0, %v2237
    %v2239 = vpop.f32.mrb[0].mxu0
    %2240 = vmatprep.mubr.f32.mxu0 0.0
    %2241 = vmatmul.mubr.f32.gmra.mrb[0].mxu0 %v2092
    %v2242 = vpop.f32.mrb[0].mxu0
    %v2243 = vadd.f32 0.0, %v2242
    %v2244 = vpop.f32.mrb[0].mxu0
    %2245 = vmatprep.mubr.f32.mxu0 0.0
    %2246 = vmatmul.mubr.f32.gmra.mrb[0].mxu0 %v2093
    %v2247 = vpop.f32.mrb[0].mxu0
    %v2248 = vadd.f32 0.0, %v2247
    %v2249 = vpop.f32.mrb[0].mxu0
    %2250 = vmatprep.mubr.f32.mxu0 0.0
    %2251 = vmatmul.mubr.f32.gmra.mrb[0].mxu0 %v2094
    %v2252 = vpop.f32.mrb[0].mxu0
    %v2253 = vadd.f32 0.0, %v2252
    %v2254 = vpop.f32.mrb[0].mxu0
    %2255 = vmatprep.mubr.f32.mxu0 0.0
    %2256 = vmatmul.mubr.f32.gmra.mrb[0].mxu0 %v2095
    %v2257 = vpop.f32.mrb[0].mxu0
    %v2258 = vadd.f32 0.0, %v2257
    %v2259 = vpop.f32.mrb[0].mxu0
    %2260 = vmatprep.mubr.f32.mxu0 0.0
    %2261 = vmatmul.mubr.f32.gmra.mrb[0].mxu0 %v2096
    %v2262 = vpop.f32.mrb[0].mxu0
    %v2263 = vadd.f32 0.0, %v2262
    %v2264 = vpop.f32.mrb[0].mxu0
    %2265 = vmatprep.mubr.f32.mxu0 0.0
    %2266 = vmatmul.mubr.f32.gmra.mrb[0].mxu0 %v2097
    %v2267 = vpop.f32.mrb[0].mxu0
    %v2268 = vadd.f32 0.0, %v2267
    %v2269 = vpop.f32.mrb[0].mxu0
    %2270 = vmatprep.mubr.f32.mxu0 0.0
    %2271 = vmatmul.mubr.f32.gmra.mrb[0].mxu0 %v2098
    %v2272 = vpop.f32.mrb[0].mxu0
    %v2273 = vadd.f32 0.0, %v2272
    %v2274 = vpop.f32.mrb[0].mxu0
    %2275 = vmatprep.mubr.f32.mxu0 0.0
    %2276 = vmatmul.mubr.f32.gmra.mrb[0].mxu0 %v2099
    %v2277 = vpop.f32.mrb[0].mxu0
    %v2278 = vadd.f32 0.0, %v2277
    %v2279 = vpop.f32.mrb[0].mxu0
    %2280 = vmatprep.mubr.f32.mxu0 0.0
    %2281 = vmatmul.mubr.f32.gmra.mrb[0].mxu0 %v2100
    %v2282 = vpop.f32.mrb[0].mxu0
    %v2283 = vadd.f32 0.0, %v2282
    %v2284 = vpop.f32.mrb[0].mxu0
    %2285 = vmatprep.mubr.f32.mxu0 0.0
    %2286 = vmatmul.mubr.f32.gmra.mrb[0].mxu0 %v2101
    %v2287 = vpop.f32.mrb[0].mxu0
    %v2288 = vadd.f32 0.0, %v2287
    %v2289 = vpop.f32.mrb[0].mxu0
    %2290 = vmatprep.mubr.f32.mxu0 0.0
    %2291 = vmatmul.mubr.f32.gmra.mrb[0].mxu0 %v2102
    %v2292 = vpop.f32.mrb[0].mxu0
    %v2293 = vadd.f32 0.0, %v2292
    %v2294 = vpop.f32.mrb[0].mxu0
    %2295 = vdwg.mxu0
    %2312 = vrot.lane.b32.xlu0 %v2218, 16
    %v2313 = vpop.permute.xlu0 %2312
    %2314 = vrot.lane.b32.xlu0 %v2223, 16
    %v2315 = vpop.permute.xlu0 %2314
    %2316 = vrot.lane.b32.xlu0 %v2228, 16
    %v2317 = vpop.permute.xlu0 %2316
    %2318 = vrot.lane.b32.xlu0 %v2233, 16
    %v2319 = vpop.permute.xlu0 %2318
    %2320 = vrot.lane.b32.xlu0 %v2238, 16
    %v2321 = vpop.permute.xlu0 %2320
    %2322 = vrot.lane.b32.xlu0 %v2243, 16
    %v2323 = vpop.permute.xlu0 %2322
    %2324 = vrot.lane.b32.xlu0 %v2248, 16
    %v2325 = vpop.permute.xlu0 %2324
    %2326 = vrot.lane.b32.xlu0 %v2253, 16
    %v2327 = vpop.permute.xlu0 %2326
    %2328 = vrot.lane.b32.xlu0 %v2258, 16
    %v2329 = vpop.permute.xlu0 %2328
    %2330 = vrot.lane.b32.xlu0 %v2263, 16
    %v2331 = vpop.permute.xlu0 %2330
    %2332 = vrot.lane.b32.xlu0 %v2268, 16
    %v2333 = vpop.permute.xlu0 %2332
    %2334 = vrot.lane.b32.xlu0 %v2273, 16
    %v2335 = vpop.permute.xlu0 %2334
    %2336 = vrot.lane.b32.xlu0 %v2278, 16
    %v2337 = vpop.permute.xlu0 %2336
    %2338 = vrot.lane.b32.xlu0 %v2283, 16
    %v2339 = vpop.permute.xlu0 %2338
    %2340 = vrot.lane.b32.xlu0 %v2288, 16
    %v2341 = vpop.permute.xlu0 %2340
    %2342 = vrot.lane.b32.xlu0 %v2293, 16
    %v2343 = vpop.permute.xlu0 %2342
    %vm2360 = vcmask 195712
    %2361 = vst.msk [vmem:[#allocation2] sm:$0xff] %vm2360, %v2313
    %2362 = vst.msk [vmem:[#allocation2 + $0x8] sm:$0xff] %vm2360, %v2315
    %2363 = vst.msk [vmem:[#allocation2 + $0x10] sm:$0xff] %vm2360, %v2317
    %2364 = vst.msk [vmem:[#allocation2 + $0x18] sm:$0xff] %vm2360, %v2319
    %2365 = vst.msk [vmem:[#allocation2 + $0x20] sm:$0xff] %vm2360, %v2321
    %2366 = vst.msk [vmem:[#allocation2 + $0x28] sm:$0xff] %vm2360, %v2323
    %2367 = vst.msk [vmem:[#allocation2 + $0x30] sm:$0xff] %vm2360, %v2325
    %2368 = vst.msk [vmem:[#allocation2 + $0x38] sm:$0xff] %vm2360, %v2327
    %2369 = vst.msk [vmem:[#allocation2 + $0x40] sm:$0xff] %vm2360, %v2329
    %2370 = vst.msk [vmem:[#allocation2 + $0x48] sm:$0xff] %vm2360, %v2331
    %2371 = vst.msk [vmem:[#allocation2 + $0x50] sm:$0xff] %vm2360, %v2333
    %2372 = vst.msk [vmem:[#allocation2 + $0x58] sm:$0xff] %vm2360, %v2335
    %2373 = vst.msk [vmem:[#allocation2 + $0x60] sm:$0xff] %vm2360, %v2337
    %2374 = vst.msk [vmem:[#allocation2 + $0x68] sm:$0xff] %vm2360, %v2339
    %2375 = vst.msk [vmem:[#allocation2 + $0x70] sm:$0xff] %vm2360, %v2341
    %2376 = vst.msk [vmem:[#allocation2 + $0x78] sm:$0xff] %vm2360, %v2343
    %s2377 = scalar_lea.vmem [#allocation3], 384
    %v2378 = vld [vmem:[%s2377] sm:$0xff]
    %v2379 = vld [vmem:[%s2377 + $0x8] sm:$0xff]
    %v2380 = vld [vmem:[%s2377 + $0x10] sm:$0xff]
    %v2381 = vld [vmem:[%s2377 + $0x18] sm:$0xff]
    %v2382 = vld [vmem:[%s2377 + $0x20] sm:$0xff]
    %v2383 = vld [vmem:[%s2377 + $0x28] sm:$0xff]
    %v2384 = vld [vmem:[%s2377 + $0x30] sm:$0xff]
    %v2385 = vld [vmem:[%s2377 + $0x38] sm:$0xff]
    %v2386 = vld [vmem:[%s2377 + $0x40] sm:$0xff]
    %v2387 = vld [vmem:[%s2377 + $0x48] sm:$0xff]
    %v2388 = vld [vmem:[%s2377 + $0x50] sm:$0xff]
    %v2389 = vld [vmem:[%s2377 + $0x58] sm:$0xff]
    %v2390 = vld [vmem:[%s2377 + $0x60] sm:$0xff]
    %v2391 = vld [vmem:[%s2377 + $0x68] sm:$0xff]
    %v2392 = vld [vmem:[%s2377 + $0x70] sm:$0xff]
    %v2393 = vld [vmem:[%s2377 + $0x78] sm:$0xff]
    %2394 = vrot.lane.b32.xlu0 %v195, 104
    %v2395 = vpop.permute.xlu0 %2394
    %2396 = vrot.lane.b32.xlu0 %v200, 104
    %v2397 = vpop.permute.xlu0 %2396
    %2398 = vrot.lane.b32.xlu0 %v205, 104
    %v2399 = vpop.permute.xlu0 %2398
    %2400 = vrot.lane.b32.xlu0 %v210, 104
    %v2401 = vpop.permute.xlu0 %2400
    %2402 = vrot.lane.b32.xlu0 %v215, 104
    %v2403 = vpop.permute.xlu0 %2402
    %2404 = vrot.lane.b32.xlu0 %v220, 104
    %v2405 = vpop.permute.xlu0 %2404
    %2406 = vrot.lane.b32.xlu0 %v225, 104
    %v2407 = vpop.permute.xlu0 %2406
    %2408 = vrot.lane.b32.xlu0 %v230, 104
    %v2409 = vpop.permute.xlu0 %2408
    %2410 = vrot.lane.b32.xlu0 %v235, 104
    %v2411 = vpop.permute.xlu0 %2410
    %2412 = vrot.lane.b32.xlu0 %v240, 104
    %v2413 = vpop.permute.xlu0 %2412
    %2414 = vrot.lane.b32.xlu0 %v245, 104
    %v2415 = vpop.permute.xlu0 %2414
    %2416 = vrot.lane.b32.xlu0 %v250, 104
    %v2417 = vpop.permute.xlu0 %2416
    %2418 = vrot.lane.b32.xlu0 %v255, 104
    %v2419 = vpop.permute.xlu0 %2418
    %2420 = vrot.lane.b32.xlu0 %v260, 104
    %v2421 = vpop.permute.xlu0 %2420
    %2422 = vrot.lane.b32.xlu0 %v265, 104
    %v2423 = vpop.permute.xlu0 %2422
    %2424 = vrot.lane.b32.xlu0 %v270, 104
    %v2425 = vpop.permute.xlu0 %2424
    %v2426 = vsel %vm574, %v2395, 0
    %v2428 = vsel %vm574, %v2397, 0
    %v2430 = vsel %vm574, %v2399, 0
    %v2432 = vsel %vm574, %v2401, 0
    %v2434 = vsel %vm574, %v2403, 0
    %v2436 = vsel %vm574, %v2405, 0
    %v2438 = vsel %vm574, %v2407, 0
    %v2440 = vsel %vm574, %v2409, 0
    %v2442 = vsel %vm574, %v2411, 0
    %v2444 = vsel %vm574, %v2413, 0
    %v2446 = vsel %vm574, %v2415, 0
    %v2448 = vsel %vm574, %v2417, 0
    %v2450 = vsel %vm574, %v2419, 0
    %v2452 = vsel %vm574, %v2421, 0
    %v2454 = vsel %vm574, %v2423, 0
    %v2456 = vsel %vm574, %v2425, 0
    %2458 = vmatprep.subr.mxu0 0.0
    %2459 = vmatpush1.msra.mxu0 %v399
    %2460 = vmatprep.subr.mxu0 0.0
    %2461 = vmatpush1.msra.mxu0 0.0
    %2462 = vmatprep.subr.mxu0 0.0
    %2463 = vmatpush1.msra.mxu0 0.0
    %2464 = vmatprep.subr.mxu0 0.0
    %2465 = vmatpush1.msra.mxu0 0.0
    %2466 = vmatprep.subr.mxu0 0.0
    %2467 = vmatpush1.msra.mxu0 0.0
    %2468 = vmatprep.subr.mxu0 0.0
    %2469 = vmatpush1.msra.mxu0 0.0
    %2470 = vmatprep.subr.mxu0 0.0
    %2471 = vmatpush1.msra.mxu0 0.0
    %2472 = vmatprep.subr.mxu0 0.0
    %2473 = vmatpush1.msra.mxu0 0.0
    %2474 = vmatprep.subr.mxu0 0.0
    %2475 = vmatpush1.msra.mxu0 0.0
    %2476 = vmatprep.subr.mxu0 0.0
    %2477 = vmatpush1.msra.mxu0 0.0
    %2478 = vmatprep.subr.mxu0 0.0
    %2479 = vmatpush1.msra.mxu0 0.0
    %2480 = vmatprep.subr.mxu0 0.0
    %2481 = vmatpush1.msra.mxu0 0.0
    %2482 = vmatprep.subr.mxu0 0.0
    %2483 = vmatpush1.msra.mxu0 0.0
    %2484 = vmatprep.subr.mxu0 0.0
    %2485 = vmatpush1.msra.mxu0 0.0
    %2486 = vmatprep.subr.mxu0 0.0
    %2487 = vmatpush1.msra.mxu0 0.0
    %2488 = vmatprep.subr.mxu0 0.0
    %2489 = vmatpush1.msra.mxu0 0.0
    %2490 = vmatprep.subr.mxu0 0.0
    %2491 = vmatpush1.msra.mxu0 0.0
    %2492 = vmatprep.subr.mxu0 0.0
    %2493 = vmatpush1.msra.mxu0 0.0
    %2494 = vmatprep.subr.mxu0 0.0
    %2495 = vmatpush1.msra.mxu0 0.0
    %2496 = vmatprep.subr.mxu0 0.0
    %2497 = vmatpush1.msra.mxu0 0.0
    %2498 = vmatprep.subr.mxu0 0.0
    %2499 = vmatpush1.msra.mxu0 0.0
    %2500 = vmatprep.subr.mxu0 0.0
    %2501 = vmatpush1.msra.mxu0 0.0
    %2502 = vmatprep.subr.mxu0 0.0
    %2503 = vmatpush1.msra.mxu0 0.0
    %2504 = vmatprep.subr.mxu0 0.0
    %2505 = vmatpush1.msra.mxu0 0.0
    %2506 = vmatprep.subr.mxu0 0.0
    %2507 = vmatpush1.msra.mxu0 0.0
    %2508 = vmatprep.subr.mxu0 0.0
    %2509 = vmatpush1.msra.mxu0 0.0
    %2510 = vmatprep.subr.mxu0 0.0
    %2511 = vmatpush1.msra.mxu0 0.0
    %2512 = vmatprep.subr.mxu0 0.0
    %2513 = vmatpush1.msra.mxu0 0.0
    %2514 = vmatprep.subr.mxu0 0.0
    %2515 = vmatpush1.msra.mxu0 0.0
    %2516 = vmatprep.subr.mxu0 0.0
    %2517 = vmatpush1.msra.mxu0 0.0
    %2518 = vmatprep.subr.mxu0 0.0
    %2519 = vmatpush1.msra.mxu0 0.0
    %2520 = vmatprep.subr.mxu0 0.0
    %2521 = vmatpush1.msra.mxu0 0.0
    %2522 = vmatprep.mubr.f32.mxu0 0.0
    %2523 = vmatmul.mubr.f32.gmra.mrb[0].mxu0 %v2426
    %v2524 = vpop.f32.mrb[0].mxu0
    %v2525 = vadd.f32 %v2378, %v2524
    %v2526 = vpop.f32.mrb[0].mxu0
    %2527 = vmatprep.mubr.f32.mxu0 0.0
    %2528 = vmatmul.mubr.f32.gmra.mrb[0].mxu0 %v2428
    %v2529 = vpop.f32.mrb[0].mxu0
    %v2530 = vadd.f32 %v2379, %v2529
    %v2531 = vpop.f32.mrb[0].mxu0
    %2532 = vmatprep.mubr.f32.mxu0 0.0
    %2533 = vmatmul.mubr.f32.gmra.mrb[0].mxu0 %v2430
    %v2534 = vpop.f32.mrb[0].mxu0
    %v2535 = vadd.f32 %v2380, %v2534
    %v2536 = vpop.f32.mrb[0].mxu0
    %2537 = vmatprep.mubr.f32.mxu0 0.0
    %2538 = vmatmul.mubr.f32.gmra.mrb[0].mxu0 %v2432
    %v2539 = vpop.f32.mrb[0].mxu0
    %v2540 = vadd.f32 %v2381, %v2539
    %v2541 = vpop.f32.mrb[0].mxu0
    %2542 = vmatprep.mubr.f32.mxu0 0.0
    %2543 = vmatmul.mubr.f32.gmra.mrb[0].mxu0 %v2434
    %v2544 = vpop.f32.mrb[0].mxu0
    %v2545 = vadd.f32 %v2382, %v2544
    %v2546 = vpop.f32.mrb[0].mxu0
    %2547 = vmatprep.mubr.f32.mxu0 0.0
    %2548 = vmatmul.mubr.f32.gmra.mrb[0].mxu0 %v2436
    %v2549 = vpop.f32.mrb[0].mxu0
    %v2550 = vadd.f32 %v2383, %v2549
    %v2551 = vpop.f32.mrb[0].mxu0
    %2552 = vmatprep.mubr.f32.mxu0 0.0
    %2553 = vmatmul.mubr.f32.gmra.mrb[0].mxu0 %v2438
    %v2554 = vpop.f32.mrb[0].mxu0
    %v2555 = vadd.f32 %v2384, %v2554
    %v2556 = vpop.f32.mrb[0].mxu0
    %2557 = vmatprep.mubr.f32.mxu0 0.0
    %2558 = vmatmul.mubr.f32.gmra.mrb[0].mxu0 %v2440
    %v2559 = vpop.f32.mrb[0].mxu0
    %v2560 = vadd.f32 %v2385, %v2559
    %v2561 = vpop.f32.mrb[0].mxu0
    %2562 = vmatprep.mubr.f32.mxu0 0.0
    %2563 = vmatmul.mubr.f32.gmra.mrb[0].mxu0 %v2442
    %v2564 = vpop.f32.mrb[0].mxu0
    %v2565 = vadd.f32 %v2386, %v2564
    %v2566 = vpop.f32.mrb[0].mxu0
    %2567 = vmatprep.mubr.f32.mxu0 0.0
    %2568 = vmatmul.mubr.f32.gmra.mrb[0].mxu0 %v2444
    %v2569 = vpop.f32.mrb[0].mxu0
    %v2570 = vadd.f32 %v2387, %v2569
    %v2571 = vpop.f32.mrb[0].mxu0
    %2572 = vmatprep.mubr.f32.mxu0 0.0
    %2573 = vmatmul.mubr.f32.gmra.mrb[0].mxu0 %v2446
    %v2574 = vpop.f32.mrb[0].mxu0
    %v2575 = vadd.f32 %v2388, %v2574
    %v2576 = vpop.f32.mrb[0].mxu0
    %2577 = vmatprep.mubr.f32.mxu0 0.0
    %2578 = vmatmul.mubr.f32.gmra.mrb[0].mxu0 %v2448
    %v2579 = vpop.f32.mrb[0].mxu0
    %v2580 = vadd.f32 %v2389, %v2579
    %v2581 = vpop.f32.mrb[0].mxu0
    %2582 = vmatprep.mubr.f32.mxu0 0.0
    %2583 = vmatmul.mubr.f32.gmra.mrb[0].mxu0 %v2450
    %v2584 = vpop.f32.mrb[0].mxu0
    %v2585 = vadd.f32 %v2390, %v2584
    %v2586 = vpop.f32.mrb[0].mxu0
    %2587 = vmatprep.mubr.f32.mxu0 0.0
    %2588 = vmatmul.mubr.f32.gmra.mrb[0].mxu0 %v2452
    %v2589 = vpop.f32.mrb[0].mxu0
    %v2590 = vadd.f32 %v2391, %v2589
    %v2591 = vpop.f32.mrb[0].mxu0
    %2592 = vmatprep.mubr.f32.mxu0 0.0
    %2593 = vmatmul.mubr.f32.gmra.mrb[0].mxu0 %v2454
    %v2594 = vpop.f32.mrb[0].mxu0
    %v2595 = vadd.f32 %v2392, %v2594
    %v2596 = vpop.f32.mrb[0].mxu0
    %2597 = vmatprep.mubr.f32.mxu0 0.0
    %2598 = vmatmul.mubr.f32.gmra.mrb[0].mxu0 %v2456
    %v2599 = vpop.f32.mrb[0].mxu0
    %v2600 = vadd.f32 %v2393, %v2599
    %v2601 = vpop.f32.mrb[0].mxu0
    %2602 = vdwg.mxu0
    %2603 = vmax.xlane.f32.xlu0 %v2525
    %v2604 = vpop.xlane.xlu0 %2603
    %2605 = vmax.xlane.f32.xlu0 %v2530
    %v2606 = vpop.xlane.xlu0 %2605
    %2607 = vmax.xlane.f32.xlu0 %v2535
    %v2608 = vpop.xlane.xlu0 %2607
    %2609 = vmax.xlane.f32.xlu0 %v2540
    %v2610 = vpop.xlane.xlu0 %2609
    %2611 = vmax.xlane.f32.xlu0 %v2545
    %v2612 = vpop.xlane.xlu0 %2611
    %2613 = vmax.xlane.f32.xlu0 %v2550
    %v2614 = vpop.xlane.xlu0 %2613
    %2615 = vmax.xlane.f32.xlu0 %v2555
    %v2616 = vpop.xlane.xlu0 %2615
    %2617 = vmax.xlane.f32.xlu0 %v2560
    %v2618 = vpop.xlane.xlu0 %2617
    %2619 = vmax.xlane.f32.xlu0 %v2565
    %v2620 = vpop.xlane.xlu0 %2619
    %2621 = vmax.xlane.f32.xlu0 %v2570
    %v2622 = vpop.xlane.xlu0 %2621
    %2623 = vmax.xlane.f32.xlu0 %v2575
    %v2624 = vpop.xlane.xlu0 %2623
    %2625 = vmax.xlane.f32.xlu0 %v2580
    %v2626 = vpop.xlane.xlu0 %2625
    %2627 = vmax.xlane.f32.xlu0 %v2585
    %v2628 = vpop.xlane.xlu0 %2627
    %2629 = vmax.xlane.f32.xlu0 %v2590
    %v2630 = vpop.xlane.xlu0 %2629
    %2631 = vmax.xlane.f32.xlu0 %v2595
    %v2632 = vpop.xlane.xlu0 %2631
    %2633 = vmax.xlane.f32.xlu0 %v2600
    %v2634 = vpop.xlane.xlu0 %2633
    %v2635 = vsub.f32 %v2525, %v2604
    %v2636 = vsub.f32 %v2530, %v2606
    %v2637 = vsub.f32 %v2535, %v2608
    %v2638 = vsub.f32 %v2540, %v2610
    %v2639 = vsub.f32 %v2545, %v2612
    %v2640 = vsub.f32 %v2550, %v2614
    %v2641 = vsub.f32 %v2555, %v2616
    %v2642 = vsub.f32 %v2560, %v2618
    %v2643 = vsub.f32 %v2565, %v2620
    %v2644 = vsub.f32 %v2570, %v2622
    %v2645 = vsub.f32 %v2575, %v2624
    %v2646 = vsub.f32 %v2580, %v2626
    %v2647 = vsub.f32 %v2585, %v2628
    %v2648 = vsub.f32 %v2590, %v2630
    %v2649 = vsub.f32 %v2595, %v2632
    %v2650 = vsub.f32 %v2600, %v2634
    %v2651 = vmul.f32 %v2635, 1.442695
    %v2652 = vpow.pop %v2651
    %v2653 = vmul.f32 %v2636, 1.442695
    %v2654 = vpow.pop %v2653
    %v2655 = vmul.f32 %v2637, 1.442695
    %v2656 = vpow.pop %v2655
    %v2657 = vmul.f32 %v2638, 1.442695
    %v2658 = vpow.pop %v2657
    %v2659 = vmul.f32 %v2639, 1.442695
    %v2660 = vpow.pop %v2659
    %v2661 = vmul.f32 %v2640, 1.442695
    %v2662 = vpow.pop %v2661
    %v2663 = vmul.f32 %v2641, 1.442695
    %v2664 = vpow.pop %v2663
    %v2665 = vmul.f32 %v2642, 1.442695
    %v2666 = vpow.pop %v2665
    %v2667 = vmul.f32 %v2643, 1.442695
    %v2668 = vpow.pop %v2667
    %v2669 = vmul.f32 %v2644, 1.442695
    %v2670 = vpow.pop %v2669
    %v2671 = vmul.f32 %v2645, 1.442695
    %v2672 = vpow.pop %v2671
    %v2673 = vmul.f32 %v2646, 1.442695
    %v2674 = vpow.pop %v2673
    %v2675 = vmul.f32 %v2647, 1.442695
    %v2676 = vpow.pop %v2675
    %v2677 = vmul.f32 %v2648, 1.442695
    %v2678 = vpow.pop %v2677
    %v2679 = vmul.f32 %v2649, 1.442695
    %v2680 = vpow.pop %v2679
    %v2681 = vmul.f32 %v2650, 1.442695
    %v2682 = vpow.pop %v2681
    %2683 = vadd.xlane.f32.xlu0 %v2652
    %v2684 = vpop.xlane.xlu0 %2683
    %2685 = vadd.xlane.f32.xlu0 %v2654
    %v2686 = vpop.xlane.xlu0 %2685
    %2687 = vadd.xlane.f32.xlu0 %v2656
    %v2688 = vpop.xlane.xlu0 %2687
    %2689 = vadd.xlane.f32.xlu0 %v2658
    %v2690 = vpop.xlane.xlu0 %2689
    %2691 = vadd.xlane.f32.xlu0 %v2660
    %v2692 = vpop.xlane.xlu0 %2691
    %2693 = vadd.xlane.f32.xlu0 %v2662
    %v2694 = vpop.xlane.xlu0 %2693
    %2695 = vadd.xlane.f32.xlu0 %v2664
    %v2696 = vpop.xlane.xlu0 %2695
    %2697 = vadd.xlane.f32.xlu0 %v2666
    %v2698 = vpop.xlane.xlu0 %2697
    %2699 = vadd.xlane.f32.xlu0 %v2668
    %v2700 = vpop.xlane.xlu0 %2699
    %2701 = vadd.xlane.f32.xlu0 %v2670
    %v2702 = vpop.xlane.xlu0 %2701
    %2703 = vadd.xlane.f32.xlu0 %v2672
    %v2704 = vpop.xlane.xlu0 %2703
    %2705 = vadd.xlane.f32.xlu0 %v2674
    %v2706 = vpop.xlane.xlu0 %2705
    %2707 = vadd.xlane.f32.xlu0 %v2676
    %v2708 = vpop.xlane.xlu0 %2707
    %2709 = vadd.xlane.f32.xlu0 %v2678
    %v2710 = vpop.xlane.xlu0 %2709
    %2711 = vadd.xlane.f32.xlu0 %v2680
    %v2712 = vpop.xlane.xlu0 %2711
    %2713 = vadd.xlane.f32.xlu0 %v2682
    %v2714 = vpop.xlane.xlu0 %2713
    %v2715 = vrcp.pop %v2684
    %v2716 = vrcp.pop %v2686
    %v2717 = vrcp.pop %v2688
    %v2718 = vrcp.pop %v2690
    %v2719 = vrcp.pop %v2692
    %v2720 = vrcp.pop %v2694
    %v2721 = vrcp.pop %v2696
    %v2722 = vrcp.pop %v2698
    %v2723 = vrcp.pop %v2700
    %v2724 = vrcp.pop %v2702
    %v2725 = vrcp.pop %v2704
    %v2726 = vrcp.pop %v2706
    %v2727 = vrcp.pop %v2708
    %v2728 = vrcp.pop %v2710
    %v2729 = vrcp.pop %v2712
    %v2730 = vrcp.pop %v2714
    %v2731 = vmul.f32 %v2652, %v2715
    %v2732 = vmul.f32 %v2654, %v2716
    %v2733 = vmul.f32 %v2656, %v2717
    %v2734 = vmul.f32 %v2658, %v2718
    %v2735 = vmul.f32 %v2660, %v2719
    %v2736 = vmul.f32 %v2662, %v2720
    %v2737 = vmul.f32 %v2664, %v2721
    %v2738 = vmul.f32 %v2666, %v2722
    %v2739 = vmul.f32 %v2668, %v2723
    %v2740 = vmul.f32 %v2670, %v2724
    %v2741 = vmul.f32 %v2672, %v2725
    %v2742 = vmul.f32 %v2674, %v2726
    %v2743 = vmul.f32 %v2676, %v2727
    %v2744 = vmul.f32 %v2678, %v2728
    %v2745 = vmul.f32 %v2680, %v2729
    %v2746 = vmul.f32 %v2682, %v2730
    %2747 = vrot.lane.b32.xlu0 %v480, 104
    %v2748 = vpop.permute.xlu0 %2747
    %2749 = vrot.lane.b32.xlu0 %v485, 104
    %v2750 = vpop.permute.xlu0 %2749
    %2751 = vrot.lane.b32.xlu0 %v490, 104
    %v2752 = vpop.permute.xlu0 %2751
    %2753 = vrot.lane.b32.xlu0 %v495, 104
    %v2754 = vpop.permute.xlu0 %2753
    %2755 = vrot.lane.b32.xlu0 %v500, 104
    %v2756 = vpop.permute.xlu0 %2755
    %2757 = vrot.lane.b32.xlu0 %v505, 104
    %v2758 = vpop.permute.xlu0 %2757
    %2759 = vrot.lane.b32.xlu0 %v510, 104
    %v2760 = vpop.permute.xlu0 %2759
    %2761 = vrot.lane.b32.xlu0 %v515, 104
    %v2762 = vpop.permute.xlu0 %2761
    %2763 = vrot.lane.b32.xlu0 %v520, 104
    %v2764 = vpop.permute.xlu0 %2763
    %2765 = vrot.lane.b32.xlu0 %v525, 104
    %v2766 = vpop.permute.xlu0 %2765
    %2767 = vrot.lane.b32.xlu0 %v530, 104
    %v2768 = vpop.permute.xlu0 %2767
    %2769 = vrot.lane.b32.xlu0 %v535, 104
    %v2770 = vpop.permute.xlu0 %2769
    %2771 = vrot.lane.b32.xlu0 %v540, 104
    %v2772 = vpop.permute.xlu0 %2771
    %2773 = vrot.lane.b32.xlu0 %v545, 104
    %v2774 = vpop.permute.xlu0 %2773
    %2775 = vrot.lane.b32.xlu0 %v550, 104
    %v2776 = vpop.permute.xlu0 %2775
    %2777 = vrot.lane.b32.xlu0 %v555, 104
    %v2778 = vpop.permute.xlu0 %2777
    %2795 = vmatprep.subr.mxu0 0.0
    %2796 = vmatpush1.msra.mxu0 %v2748
    %2797 = vmatprep.subr.mxu0 0.0
    %2798 = vmatpush1.msra.mxu0 %v2750
    %2799 = vmatprep.subr.mxu0 0.0
    %2800 = vmatpush1.msra.mxu0 %v2752
    %2801 = vmatprep.subr.mxu0 0.0
    %2802 = vmatpush1.msra.mxu0 %v2754
    %2803 = vmatprep.subr.mxu0 0.0
    %2804 = vmatpush1.msra.mxu0 %v2756
    %2805 = vmatprep.subr.mxu0 0.0
    %2806 = vmatpush1.msra.mxu0 %v2758
    %2807 = vmatprep.subr.mxu0 0.0
    %2808 = vmatpush1.msra.mxu0 %v2760
    %2809 = vmatprep.subr.mxu0 0.0
    %2810 = vmatpush1.msra.mxu0 %v2762
    %2811 = vmatprep.subr.mxu0 0.0
    %2812 = vmatpush1.msra.mxu0 %v2764
    %2813 = vmatprep.subr.mxu0 0.0
    %2814 = vmatpush1.msra.mxu0 %v2766
    %2815 = vmatprep.subr.mxu0 0.0
    %2816 = vmatpush1.msra.mxu0 %v2768
    %2817 = vmatprep.subr.mxu0 0.0
    %2818 = vmatpush1.msra.mxu0 %v2770
    %2819 = vmatprep.subr.mxu0 0.0
    %2820 = vmatpush1.msra.mxu0 %v2772
    %2821 = vmatprep.subr.mxu0 0.0
    %2822 = vmatpush1.msra.mxu0 %v2774
    %2823 = vmatprep.subr.mxu0 0.0
    %2824 = vmatpush1.msra.mxu0 %v2776
    %2825 = vmatprep.subr.mxu0 0.0
    %2826 = vmatpush1.msra.mxu0 %v2778
    %2827 = vmatprep.subr.mxu0 0.0
    %2828 = vmatpush1.msra.mxu0 0.0
    %2829 = vmatprep.subr.mxu0 0.0
    %2830 = vmatpush1.msra.mxu0 0.0
    %2831 = vmatprep.subr.mxu0 0.0
    %2832 = vmatpush1.msra.mxu0 0.0
    %2833 = vmatprep.subr.mxu0 0.0
    %2834 = vmatpush1.msra.mxu0 0.0
    %2835 = vmatprep.subr.mxu0 0.0
    %2836 = vmatpush1.msra.mxu0 0.0
    %2837 = vmatprep.subr.mxu0 0.0
    %2838 = vmatpush1.msra.mxu0 0.0
    %2839 = vmatprep.subr.mxu0 0.0
    %2840 = vmatpush1.msra.mxu0 0.0
    %2841 = vmatprep.subr.mxu0 0.0
    %2842 = vmatpush1.msra.mxu0 0.0
    %2843 = vmatprep.subr.mxu0 0.0
    %2844 = vmatpush1.msra.mxu0 0.0
    %2845 = vmatprep.subr.mxu0 0.0
    %2846 = vmatpush1.msra.mxu0 0.0
    %2847 = vmatprep.subr.mxu0 0.0
    %2848 = vmatpush1.msra.mxu0 0.0
    %2849 = vmatprep.subr.mxu0 0.0
    %2850 = vmatpush1.msra.mxu0 0.0
    %2851 = vmatprep.subr.mxu0 0.0
    %2852 = vmatpush1.msra.mxu0 0.0
    %2853 = vmatprep.subr.mxu0 0.0
    %2854 = vmatpush1.msra.mxu0 0.0
    %2855 = vmatprep.subr.mxu0 0.0
    %2856 = vmatpush1.msra.mxu0 0.0
    %2857 = vmatprep.subr.mxu0 0.0
    %2858 = vmatpush1.msra.mxu0 0.0
    %2859 = vmatprep.mubr.f32.mxu0 0.0
    %2860 = vmatmul.mubr.f32.gmra.mrb[0].mxu0 %v2731
    %v2861 = vpop.f32.mrb[0].mxu0
    %v2862 = vadd.f32 0.0, %v2861
    %v2863 = vpop.f32.mrb[0].mxu0
    %2864 = vmatprep.mubr.f32.mxu0 0.0
    %2865 = vmatmul.mubr.f32.gmra.mrb[0].mxu0 %v2732
    %v2866 = vpop.f32.mrb[0].mxu0
    %v2867 = vadd.f32 0.0, %v2866
    %v2868 = vpop.f32.mrb[0].mxu0
    %2869 = vmatprep.mubr.f32.mxu0 0.0
    %2870 = vmatmul.mubr.f32.gmra.mrb[0].mxu0 %v2733
    %v2871 = vpop.f32.mrb[0].mxu0
    %v2872 = vadd.f32 0.0, %v2871
    %v2873 = vpop.f32.mrb[0].mxu0
    %2874 = vmatprep.mubr.f32.mxu0 0.0
    %2875 = vmatmul.mubr.f32.gmra.mrb[0].mxu0 %v2734
    %v2876 = vpop.f32.mrb[0].mxu0
    %v2877 = vadd.f32 0.0, %v2876
    %v2878 = vpop.f32.mrb[0].mxu0
    %2879 = vmatprep.mubr.f32.mxu0 0.0
    %2880 = vmatmul.mubr.f32.gmra.mrb[0].mxu0 %v2735
    %v2881 = vpop.f32.mrb[0].mxu0
    %v2882 = vadd.f32 0.0, %v2881
    %v2883 = vpop.f32.mrb[0].mxu0
    %2884 = vmatprep.mubr.f32.mxu0 0.0
    %2885 = vmatmul.mubr.f32.gmra.mrb[0].mxu0 %v2736
    %v2886 = vpop.f32.mrb[0].mxu0
    %v2887 = vadd.f32 0.0, %v2886
    %v2888 = vpop.f32.mrb[0].mxu0
    %2889 = vmatprep.mubr.f32.mxu0 0.0
    %2890 = vmatmul.mubr.f32.gmra.mrb[0].mxu0 %v2737
    %v2891 = vpop.f32.mrb[0].mxu0
    %v2892 = vadd.f32 0.0, %v2891
    %v2893 = vpop.f32.mrb[0].mxu0
    %2894 = vmatprep.mubr.f32.mxu0 0.0
    %2895 = vmatmul.mubr.f32.gmra.mrb[0].mxu0 %v2738
    %v2896 = vpop.f32.mrb[0].mxu0
    %v2897 = vadd.f32 0.0, %v2896
    %v2898 = vpop.f32.mrb[0].mxu0
    %2899 = vmatprep.mubr.f32.mxu0 0.0
    %2900 = vmatmul.mubr.f32.gmra.mrb[0].mxu0 %v2739
    %v2901 = vpop.f32.mrb[0].mxu0
    %v2902 = vadd.f32 0.0, %v2901
    %v2903 = vpop.f32.mrb[0].mxu0
    %2904 = vmatprep.mubr.f32.mxu0 0.0
    %2905 = vmatmul.mubr.f32.gmra.mrb[0].mxu0 %v2740
    %v2906 = vpop.f32.mrb[0].mxu0
    %v2907 = vadd.f32 0.0, %v2906
    %v2908 = vpop.f32.mrb[0].mxu0
    %2909 = vmatprep.mubr.f32.mxu0 0.0
    %2910 = vmatmul.mubr.f32.gmra.mrb[0].mxu0 %v2741
    %v2911 = vpop.f32.mrb[0].mxu0
    %v2912 = vadd.f32 0.0, %v2911
    %v2913 = vpop.f32.mrb[0].mxu0
    %2914 = vmatprep.mubr.f32.mxu0 0.0
    %2915 = vmatmul.mubr.f32.gmra.mrb[0].mxu0 %v2742
    %v2916 = vpop.f32.mrb[0].mxu0
    %v2917 = vadd.f32 0.0, %v2916
    %v2918 = vpop.f32.mrb[0].mxu0
    %2919 = vmatprep.mubr.f32.mxu0 0.0
    %2920 = vmatmul.mubr.f32.gmra.mrb[0].mxu0 %v2743
    %v2921 = vpop.f32.mrb[0].mxu0
    %v2922 = vadd.f32 0.0, %v2921
    %v2923 = vpop.f32.mrb[0].mxu0
    %2924 = vmatprep.mubr.f32.mxu0 0.0
    %2925 = vmatmul.mubr.f32.gmra.mrb[0].mxu0 %v2744
    %v2926 = vpop.f32.mrb[0].mxu0
    %v2927 = vadd.f32 0.0, %v2926
    %v2928 = vpop.f32.mrb[0].mxu0
    %2929 = vmatprep.mubr.f32.mxu0 0.0
    %2930 = vmatmul.mubr.f32.gmra.mrb[0].mxu0 %v2745
    %v2931 = vpop.f32.mrb[0].mxu0
    %v2932 = vadd.f32 0.0, %v2931
    %v2933 = vpop.f32.mrb[0].mxu0
    %2934 = vmatprep.mubr.f32.mxu0 0.0
    %2935 = vmatmul.mubr.f32.gmra.mrb[0].mxu0 %v2746
    %v2936 = vpop.f32.mrb[0].mxu0
    %v2937 = vadd.f32 0.0, %v2936
    %v2938 = vpop.f32.mrb[0].mxu0
    %2939 = vdwg.mxu0
    %2956 = vrot.lane.b32.xlu0 %v2862, 24
    %v2957 = vpop.permute.xlu0 %2956
    %2958 = vrot.lane.b32.xlu0 %v2867, 24
    %v2959 = vpop.permute.xlu0 %2958
    %2960 = vrot.lane.b32.xlu0 %v2872, 24
    %v2961 = vpop.permute.xlu0 %2960
    %2962 = vrot.lane.b32.xlu0 %v2877, 24
    %v2963 = vpop.permute.xlu0 %2962
    %2964 = vrot.lane.b32.xlu0 %v2882, 24
    %v2965 = vpop.permute.xlu0 %2964
    %2966 = vrot.lane.b32.xlu0 %v2887, 24
    %v2967 = vpop.permute.xlu0 %2966
    %2968 = vrot.lane.b32.xlu0 %v2892, 24
    %v2969 = vpop.permute.xlu0 %2968
    %2970 = vrot.lane.b32.xlu0 %v2897, 24
    %v2971 = vpop.permute.xlu0 %2970
    %2972 = vrot.lane.b32.xlu0 %v2902, 24
    %v2973 = vpop.permute.xlu0 %2972
    %2974 = vrot.lane.b32.xlu0 %v2907, 24
    %v2975 = vpop.permute.xlu0 %2974
    %2976 = vrot.lane.b32.xlu0 %v2912, 24
    %v2977 = vpop.permute.xlu0 %2976
    %2978 = vrot.lane.b32.xlu0 %v2917, 24
    %v2979 = vpop.permute.xlu0 %2978
    %2980 = vrot.lane.b32.xlu0 %v2922, 24
    %v2981 = vpop.permute.xlu0 %2980
    %2982 = vrot.lane.b32.xlu0 %v2927, 24
    %v2983 = vpop.permute.xlu0 %2982
    %2984 = vrot.lane.b32.xlu0 %v2932, 24
    %v2985 = vpop.permute.xlu0 %2984
    %2986 = vrot.lane.b32.xlu0 %v2937, 24
    %v2987 = vpop.permute.xlu0 %2986
    %vm3004 = vcmask 261312
    %3005 = vst.msk [vmem:[#allocation2] sm:$0xff] %vm3004, %v2957
    %3006 = vst.msk [vmem:[#allocation2 + $0x8] sm:$0xff] %vm3004, %v2959
    %3007 = vst.msk [vmem:[#allocation2 + $0x10] sm:$0xff] %vm3004, %v2961
    %3008 = vst.msk [vmem:[#allocation2 + $0x18] sm:$0xff] %vm3004, %v2963
    %3009 = vst.msk [vmem:[#allocation2 + $0x20] sm:$0xff] %vm3004, %v2965
    %3010 = vst.msk [vmem:[#allocation2 + $0x28] sm:$0xff] %vm3004, %v2967
    %3011 = vst.msk [vmem:[#allocation2 + $0x30] sm:$0xff] %vm3004, %v2969
    %3012 = vst.msk [vmem:[#allocation2 + $0x38] sm:$0xff] %vm3004, %v2971
    %3013 = vst.msk [vmem:[#allocation2 + $0x40] sm:$0xff] %vm3004, %v2973
    %3014 = vst.msk [vmem:[#allocation2 + $0x48] sm:$0xff] %vm3004, %v2975
    %3015 = vst.msk [vmem:[#allocation2 + $0x50] sm:$0xff] %vm3004, %v2977
    %3016 = vst.msk [vmem:[#allocation2 + $0x58] sm:$0xff] %vm3004, %v2979
    %3017 = vst.msk [vmem:[#allocation2 + $0x60] sm:$0xff] %vm3004, %v2981
    %3018 = vst.msk [vmem:[#allocation2 + $0x68] sm:$0xff] %vm3004, %v2983
    %3019 = vst.msk [vmem:[#allocation2 + $0x70] sm:$0xff] %vm3004, %v2985
    %3020 = vst.msk [vmem:[#allocation2 + $0x78] sm:$0xff] %vm3004, %v2987
    %v3021 = vld [vmem:[#allocation2] sm:$0xff]
    %v3022 = vld [vmem:[#allocation2 + $0x8] sm:$0xff]
    %v3023 = vld [vmem:[#allocation2 + $0x10] sm:$0xff]
    %v3024 = vld [vmem:[#allocation2 + $0x18] sm:$0xff]
    %v3025 = vld [vmem:[#allocation2 + $0x20] sm:$0xff]
    %v3026 = vld [vmem:[#allocation2 + $0x28] sm:$0xff]
    %v3027 = vld [vmem:[#allocation2 + $0x30] sm:$0xff]
    %v3028 = vld [vmem:[#allocation2 + $0x38] sm:$0xff]
    %v3029 = vld [vmem:[#allocation2 + $0x40] sm:$0xff]
    %v3030 = vld [vmem:[#allocation2 + $0x48] sm:$0xff]
    %v3031 = vld [vmem:[#allocation2 + $0x50] sm:$0xff]
    %v3032 = vld [vmem:[#allocation2 + $0x58] sm:$0xff]
    %v3033 = vld [vmem:[#allocation2 + $0x60] sm:$0xff]
    %v3034 = vld [vmem:[#allocation2 + $0x68] sm:$0xff]
    %v3035 = vld [vmem:[#allocation2 + $0x70] sm:$0xff]
    %v3036 = vld [vmem:[#allocation2 + $0x78] sm:$0xff]
    %v3037 = vld [vmem:[%s9] sm:$0xff]
    %v3038 = vld [vmem:[%s9 + $0x8] sm:$0xff]
    %v3039 = vld [vmem:[%s9 + $0x10] sm:$0xff]
    %v3040 = vld [vmem:[%s9 + $0x18] sm:$0xff]
    %v3041 = vld [vmem:[%s10] sm:$0x1]
    %v3043 = vlaneseq
    %v3044 = vshrl.u32 %v3043, 7
    %v3045 = vsub.s32 0, %v3044
    %v3046 = vrot.slane %v3041, %v3045
    %v3049 = vsel %vm79, %v3021, 0
    %v3052 = vsel %vm79, %v3022, 0
    %v3055 = vsel %vm79, %v3023, 0
    %v3058 = vsel %vm79, %v3024, 0
    %v3061 = vsel %vm79, %v3025, 0
    %v3064 = vsel %vm79, %v3026, 0
    %v3067 = vsel %vm79, %v3027, 0
    %v3070 = vsel %vm79, %v3028, 0
    %v3073 = vsel %vm79, %v3029, 0
    %v3076 = vsel %vm79, %v3030, 0
    %v3079 = vsel %vm79, %v3031, 0
    %v3082 = vsel %vm79, %v3032, 0
    %v3085 = vsel %vm79, %v3033, 0
    %v3088 = vsel %vm79, %v3034, 0
    %v3091 = vsel %vm79, %v3035, 0
    %v3094 = vsel %vm79, %v3036, 0
    %3096 = vmatprep.subr.mxu0 0.0
    %3097 = vmatpush1.msra.mxu0 %v3037
    %3098 = vmatprep.subr.mxu0 0.0
    %3099 = vmatpush1.msra.mxu0 %v3038
    %3100 = vmatprep.subr.mxu0 0.0
    %3101 = vmatpush1.msra.mxu0 %v3039
    %3102 = vmatprep.subr.mxu0 0.0
    %3103 = vmatpush1.msra.mxu0 %v3040
    %3104 = vmatprep.subr.mxu0 0.0
    %3105 = vmatpush1.msra.mxu0 0.0
    %3106 = vmatprep.subr.mxu0 0.0
    %3107 = vmatpush1.msra.mxu0 0.0
    %3108 = vmatprep.subr.mxu0 0.0
    %3109 = vmatpush1.msra.mxu0 0.0
    %3110 = vmatprep.subr.mxu0 0.0
    %3111 = vmatpush1.msra.mxu0 0.0
    %3112 = vmatprep.subr.mxu0 0.0
    %3113 = vmatpush1.msra.mxu0 0.0
    %3114 = vmatprep.subr.mxu0 0.0
    %3115 = vmatpush1.msra.mxu0 0.0
    %3116 = vmatprep.subr.mxu0 0.0
    %3117 = vmatpush1.msra.mxu0 0.0
    %3118 = vmatprep.subr.mxu0 0.0
    %3119 = vmatpush1.msra.mxu0 0.0
    %3120 = vmatprep.subr.mxu0 0.0
    %3121 = vmatpush1.msra.mxu0 0.0
    %3122 = vmatprep.subr.mxu0 0.0
    %3123 = vmatpush1.msra.mxu0 0.0
    %3124 = vmatprep.subr.mxu0 0.0
    %3125 = vmatpush1.msra.mxu0 0.0
    %3126 = vmatprep.subr.mxu0 0.0
    %3127 = vmatpush1.msra.mxu0 0.0
    %3128 = vmatprep.subr.mxu0 0.0
    %3129 = vmatpush1.msra.mxu0 0.0
    %3130 = vmatprep.subr.mxu0 0.0
    %3131 = vmatpush1.msra.mxu0 0.0
    %3132 = vmatprep.subr.mxu0 0.0
    %3133 = vmatpush1.msra.mxu0 0.0
    %3134 = vmatprep.subr.mxu0 0.0
    %3135 = vmatpush1.msra.mxu0 0.0
    %3136 = vmatprep.subr.mxu0 0.0
    %3137 = vmatpush1.msra.mxu0 0.0
    %3138 = vmatprep.subr.mxu0 0.0
    %3139 = vmatpush1.msra.mxu0 0.0
    %3140 = vmatprep.subr.mxu0 0.0
    %3141 = vmatpush1.msra.mxu0 0.0
    %3142 = vmatprep.subr.mxu0 0.0
    %3143 = vmatpush1.msra.mxu0 0.0
    %3144 = vmatprep.subr.mxu0 0.0
    %3145 = vmatpush1.msra.mxu0 0.0
    %3146 = vmatprep.subr.mxu0 0.0
    %3147 = vmatpush1.msra.mxu0 0.0
    %3148 = vmatprep.subr.mxu0 0.0
    %3149 = vmatpush1.msra.mxu0 0.0
    %3150 = vmatprep.subr.mxu0 0.0
    %3151 = vmatpush1.msra.mxu0 0.0
    %3152 = vmatprep.subr.mxu0 0.0
    %3153 = vmatpush1.msra.mxu0 0.0
    %3154 = vmatprep.subr.mxu0 0.0
    %3155 = vmatpush1.msra.mxu0 0.0
    %3156 = vmatprep.subr.mxu0 0.0
    %3157 = vmatpush1.msra.mxu0 0.0
    %3158 = vmatprep.subr.mxu0 0.0
    %3159 = vmatpush1.msra.mxu0 0.0
    %3160 = vmatprep.mubr.f32.mxu0 0.0
    %3161 = vmatmul.mubr.f32.gmra.mrb[0].mxu0 %v3049
    %v3162 = vpop.f32.mrb[0].mxu0
    %v3163 = vadd.f32 %v3046, %v3162
    %v3164 = vpop.f32.mrb[0].mxu0
    %3165 = vmatprep.mubr.f32.mxu0 0.0
    %3166 = vmatmul.mubr.f32.gmra.mrb[0].mxu0 %v3052
    %v3167 = vpop.f32.mrb[0].mxu0
    %v3168 = vadd.f32 %v3046, %v3167
    %v3169 = vpop.f32.mrb[0].mxu0
    %3170 = vmatprep.mubr.f32.mxu0 0.0
    %3171 = vmatmul.mubr.f32.gmra.mrb[0].mxu0 %v3055
    %v3172 = vpop.f32.mrb[0].mxu0
    %v3173 = vadd.f32 %v3046, %v3172
    %v3174 = vpop.f32.mrb[0].mxu0
    %3175 = vmatprep.mubr.f32.mxu0 0.0
    %3176 = vmatmul.mubr.f32.gmra.mrb[0].mxu0 %v3058
    %v3177 = vpop.f32.mrb[0].mxu0
    %v3178 = vadd.f32 %v3046, %v3177
    %v3179 = vpop.f32.mrb[0].mxu0
    %3180 = vmatprep.mubr.f32.mxu0 0.0
    %3181 = vmatmul.mubr.f32.gmra.mrb[0].mxu0 %v3061
    %v3182 = vpop.f32.mrb[0].mxu0
    %v3183 = vadd.f32 %v3046, %v3182
    %v3184 = vpop.f32.mrb[0].mxu0
    %3185 = vmatprep.mubr.f32.mxu0 0.0
    %3186 = vmatmul.mubr.f32.gmra.mrb[0].mxu0 %v3064
    %v3187 = vpop.f32.mrb[0].mxu0
    %v3188 = vadd.f32 %v3046, %v3187
    %v3189 = vpop.f32.mrb[0].mxu0
    %3190 = vmatprep.mubr.f32.mxu0 0.0
    %3191 = vmatmul.mubr.f32.gmra.mrb[0].mxu0 %v3067
    %v3192 = vpop.f32.mrb[0].mxu0
    %v3193 = vadd.f32 %v3046, %v3192
    %v3194 = vpop.f32.mrb[0].mxu0
    %3195 = vmatprep.mubr.f32.mxu0 0.0
    %3196 = vmatmul.mubr.f32.gmra.mrb[0].mxu0 %v3070
    %v3197 = vpop.f32.mrb[0].mxu0
    %v3198 = vadd.f32 %v3046, %v3197
    %v3199 = vpop.f32.mrb[0].mxu0
    %3200 = vmatprep.mubr.f32.mxu0 0.0
    %3201 = vmatmul.mubr.f32.gmra.mrb[0].mxu0 %v3073
    %v3202 = vpop.f32.mrb[0].mxu0
    %v3203 = vadd.f32 %v3046, %v3202
    %v3204 = vpop.f32.mrb[0].mxu0
    %3205 = vmatprep.mubr.f32.mxu0 0.0
    %3206 = vmatmul.mubr.f32.gmra.mrb[0].mxu0 %v3076
    %v3207 = vpop.f32.mrb[0].mxu0
    %v3208 = vadd.f32 %v3046, %v3207
    %v3209 = vpop.f32.mrb[0].mxu0
    %3210 = vmatprep.mubr.f32.mxu0 0.0
    %3211 = vmatmul.mubr.f32.gmra.mrb[0].mxu0 %v3079
    %v3212 = vpop.f32.mrb[0].mxu0
    %v3213 = vadd.f32 %v3046, %v3212
    %v3214 = vpop.f32.mrb[0].mxu0
    %3215 = vmatprep.mubr.f32.mxu0 0.0
    %3216 = vmatmul.mubr.f32.gmra.mrb[0].mxu0 %v3082
    %v3217 = vpop.f32.mrb[0].mxu0
    %v3218 = vadd.f32 %v3046, %v3217
    %v3219 = vpop.f32.mrb[0].mxu0
    %3220 = vmatprep.mubr.f32.mxu0 0.0
    %3221 = vmatmul.mubr.f32.gmra.mrb[0].mxu0 %v3085
    %v3222 = vpop.f32.mrb[0].mxu0
    %v3223 = vadd.f32 %v3046, %v3222
    %v3224 = vpop.f32.mrb[0].mxu0
    %3225 = vmatprep.mubr.f32.mxu0 0.0
    %3226 = vmatmul.mubr.f32.gmra.mrb[0].mxu0 %v3088
    %v3227 = vpop.f32.mrb[0].mxu0
    %v3228 = vadd.f32 %v3046, %v3227
    %v3229 = vpop.f32.mrb[0].mxu0
    %3230 = vmatprep.mubr.f32.mxu0 0.0
    %3231 = vmatmul.mubr.f32.gmra.mrb[0].mxu0 %v3091
    %v3232 = vpop.f32.mrb[0].mxu0
    %v3233 = vadd.f32 %v3046, %v3232
    %v3234 = vpop.f32.mrb[0].mxu0
    %3235 = vmatprep.mubr.f32.mxu0 0.0
    %3236 = vmatmul.mubr.f32.gmra.mrb[0].mxu0 %v3094
    %v3237 = vpop.f32.mrb[0].mxu0
    %v3238 = vadd.f32 %v3046, %v3237
    %v3239 = vpop.f32.mrb[0].mxu0
    %3240 = vdwg.mxu0
    %3241 = vst.msk [vmem:[%s11] sm:$0xff] %vm79, %v3163
    %3242 = vst.msk [vmem:[%s11 + $0x8] sm:$0xff] %vm79, %v3168
    %3243 = vst.msk [vmem:[%s11 + $0x10] sm:$0xff] %vm79, %v3173
    %3244 = vst.msk [vmem:[%s11 + $0x18] sm:$0xff] %vm79, %v3178
    %3245 = vst.msk [vmem:[%s11 + $0x20] sm:$0xff] %vm79, %v3183
    %3246 = vst.msk [vmem:[%s11 + $0x28] sm:$0xff] %vm79, %v3188
    %3247 = vst.msk [vmem:[%s11 + $0x30] sm:$0xff] %vm79, %v3193
    %3248 = vst.msk [vmem:[%s11 + $0x38] sm:$0xff] %vm79, %v3198
    %3249 = vst.msk [vmem:[%s11 + $0x40] sm:$0xff] %vm79, %v3203
    %3250 = vst.msk [vmem:[%s11 + $0x48] sm:$0xff] %vm79, %v3208
    %3251 = vst.msk [vmem:[%s11 + $0x50] sm:$0xff] %vm79, %v3213
    %3252 = vst.msk [vmem:[%s11 + $0x58] sm:$0xff] %vm79, %v3218
    %3253 = vst.msk [vmem:[%s11 + $0x60] sm:$0xff] %vm79, %v3223
    %3254 = vst.msk [vmem:[%s11 + $0x68] sm:$0xff] %vm79, %v3228
    %3255 = vst.msk [vmem:[%s11 + $0x70] sm:$0xff] %vm79, %v3233
    %3256 = vst.msk [vmem:[%s11 + $0x78] sm:$0xff] %vm79, %v3238
    // Predicated region
    $region50: #{tpu_custom_call.1} parent=1 // pred_check
      _
    $region51: #{tpu_custom_call.1} parent=1 // pred_check_branch
      %3258 = sbr.rel (0) target = $region53
    $region52: #{tpu_custom_call.1} parent=1 // pred_region
      _
    $region53: #{tpu_custom_call.1} parent=1 // pred_fallthru
      _
    // Predicated region
    $region54: #{tpu_custom_call.1} parent=1 // pred_check
      _
    $region55: #{tpu_custom_call.1} parent=1 // pred_check_branch
      %3260 = sbr.rel (0) target = $region57
    $region56: #{tpu_custom_call.1} parent=1 // pred_region
      _
    $region57: #{tpu_custom_call.1} parent=1 // pred_fallthru
      _
    %3261 = vsyncpa [#allocation4], 1

</llo_original>
